<compile_context>
chip_gen: v7x
topology: tpu7x:2x2x1
jax: 0.10.0
libtpu: 0.0.40
codegen_flags: <defaults>
</compile_context>

<pallas_src>
import math
import functools

import jax
import jax.numpy as jnp
from jax import lax
from jax.experimental import pallas as pl
from jax.experimental.pallas import tpu as pltpu


# ----------------------------------------------------------------------------
# Fused flash-style self-attention kernel (all heads handled inside one program)
# ----------------------------------------------------------------------------
def _flash_sa_kernel(xq_ref, xkv_ref, wq_ref, wkv_ref, o_ref,
                     q_sc, m_sc, l_sc, acc_sc,
                     *, num_heads, dq, dv, k_out):
    # xq_ref : (1, C_in, tq)   x slab for the query tile       (bf16)
    # xkv_ref: (1, C_in, tk)   x slab for the key/value tile   (bf16)
    # wq_ref : (q_out, C_in)   query weights, 1/sqrt(N) folded in (bf16)
    # wkv_ref: (k_out+v_out, C_in)  [Wk ; Wv]                   (bf16)
    # o_ref  : (1, v_out, tq)  output block, points on lanes    (f32)
    # q_sc   : (q_out, tq)     cached scaled queries            (bf16 scratch)
    # m_sc/l_sc: (H, 1, tq)    running max / denom              (f32 scratch)
    # acc_sc : (H, dv, tq)     running numerator (transposed)   (f32 scratch)
    ki = pl.program_id(2)
    last_kv = pl.num_programs(2) - 1

    @pl.when(ki == 0)
    def _init():
        # Head-fused query projection, once per (batch, q-tile). Scale already folded into Wq.
        q_t = jnp.dot(wq_ref[...], xq_ref[0],
                      preferred_element_type=jnp.float32)          # (q_out, tq)
        q_sc[...] = q_t.astype(jnp.bfloat16)
        m_sc[...] = jnp.full(m_sc.shape, -jnp.inf, dtype=m_sc.dtype)
        l_sc[...] = jnp.zeros(l_sc.shape, dtype=l_sc.dtype)
        acc_sc[...] = jnp.zeros(acc_sc.shape, dtype=acc_sc.dtype)

    # Head-fused key/value projection for this kv tile: one full-width MXU matmul.
    kv_t = jnp.dot(wkv_ref[...], xkv_ref[0],
                   preferred_element_type=jnp.float32).astype(jnp.bfloat16)  # (k_out+v_out, tk)
    q_all = q_sc[...]                                                         # (q_out, tq) bf16

    # H is small and static: fully unrolled head loop (head slabs are clean sublane slices).
    for h in range(num_heads):
        q_h = q_all[h * dq:(h + 1) * dq, :]                        # (dq, tq)
        k_h = kv_t[h * dq:(h + 1) * dq, :]                         # (dq, tk)   (dk == dq)
        v_h = kv_t[k_out + h * dv:k_out + (h + 1) * dv, :]         # (dv, tk)

        # transposed scores: s_t[m, n] = <k_m, q_n>  (1/sqrt(N) already inside q)
        s_t = lax.dot_general(k_h, q_h, (((0,), (0,)), ((), ())),
                              preferred_element_type=jnp.float32)  # (tk, tq)

        m_prev = m_sc[h]                                           # (1, tq)
        m_new = jnp.maximum(m_prev, jnp.max(s_t, axis=0, keepdims=True))
        alpha = jnp.exp(m_prev - m_new)                            # (1, tq)
        p_t = jnp.exp(s_t - m_new)                                 # (tk, tq) f32
        l_sc[h] = alpha * l_sc[h] + jnp.sum(p_t, axis=0, keepdims=True)
        acc_sc[h] = alpha * acc_sc[h] + lax.dot_general(
            v_h, p_t.astype(jnp.bfloat16), (((1,), (0,)), ((), ())),
            preferred_element_type=jnp.float32)                    # (dv, tq)
        m_sc[h] = m_new

    @pl.when(ki == last_kv)
    def _finalize():
        inv_l = pl.reciprocal(l_sc[...], approx=True)              # (H, 1, tq)
        out = acc_sc[...] * inv_l                                  # (H, dv, tq)
        o_ref[0] = out.reshape(num_heads * dv, out.shape[-1]).astype(o_ref.dtype)


def _pick_tile(n):
    # 256 balances the 0.35us/step grid overhead against VMEM across generations
    # (256x256 f32 score + p tiles = 0.5 MiB, well under v5e's 16 MiB scoped default)
    # while keeping >= 2 q tiles at realistic point counts for v7x's 2 TensorCores.
    for t in (256, 128):
        if n % t == 0:
            return t
    return n  # tiny / ragged N: single full-N tile (masked stores, fine for demos)


def self_attention(x_bcn, wq, wk, wv, num_heads):
    """x_bcn: (B, C_in, N); wq/wk/wv: (out, in) Conv1d(1x1, bias=False) weights.
    Returns (B, v_out, N), matching the PyTorch module's output layout exactly."""
    B, C_in, N = x_bcn.shape
    q_out, k_out, v_out = wq.shape[0], wk.shape[0], wv.shape[0]
    H = num_heads
    dq, dk, dv = q_out // H, k_out // H, v_out // H
    assert dq == dk, "q_out must equal k_out (same per-head depth)"
    assert q_out % H == 0 and k_out % H == 0 and v_out % H == 0

    # module: softmax(energy / sqrt(x.shape[-1])) with x of shape (B, C, N) -> scale = 1/sqrt(N),
    # folded into Wq (in f32, before the bf16 cast) so the (tk, tq) score tile is never scaled.
    scale = 1.0 / math.sqrt(N)

    x_bf = x_bcn.astype(jnp.bfloat16)                                  # (B, C_in, N)  bf16 DMA
    wq_s = (wq * scale).astype(jnp.bfloat16)                           # (q_out, C_in)
    wkv = jnp.concatenate([wk, wv], axis=0).astype(jnp.bfloat16)       # (k_out + v_out, C_in)

    tq = tk = _pick_tile(N)
    n_q, n_kv = N // tq, N // tk

    kernel = functools.partial(_flash_sa_kernel,
                               num_heads=H, dq=dq, dv=dv, k_out=k_out)

    out = pl.pallas_call(
        kernel,
        out_shape=jax.ShapeDtypeStruct((B, v_out, N), jnp.float32),
        grid=(B, n_q, n_kv),
        in_specs=[
            pl.BlockSpec((1, C_in, tq), lambda b, qi, ki: (b, 0, qi)),        # x (query tile)
            pl.BlockSpec((1, C_in, tk), lambda b, qi, ki: (b, 0, ki)),        # x (kv tile)
            pl.BlockSpec((q_out, C_in), lambda b, qi, ki: (0, 0)),            # Wq * 1/sqrt(N)
            pl.BlockSpec((k_out + v_out, C_in), lambda b, qi, ki: (0, 0)),    # [Wk ; Wv]
        ],
        out_specs=pl.BlockSpec((1, v_out, tq), lambda b, qi, ki: (b, 0, qi)),
        scratch_shapes=[
            pltpu.VMEM((q_out, tq), jnp.bfloat16),   # cached scaled queries for the current q tile
            pltpu.VMEM((H, 1, tq), jnp.float32),     # running max  m
            pltpu.VMEM((H, 1, tq), jnp.float32),     # running sum  l
            pltpu.VMEM((H, dv, tq), jnp.float32),    # running numerator (Dv x points)
        ],
        compiler_params=pltpu.CompilerParams(
            dimension_semantics=("parallel", "parallel", "arbitrary"),
            vmem_limit_bytes=48 * 1024 * 1024),      # headroom under v7x's 64 MiB physical VMEM
    )(x_bf, x_bf, wq_s, wkv)
    return out


def point2point_embedding(x_bcn, params, num_heads):
    return self_attention(x_bcn, params["wq"], params["wk"], params["wv"], num_heads)


# ----------------------------------------------------------------------------
# Pure-JAX reference (mirrors the PyTorch forward exactly) for a correctness check
# ----------------------------------------------------------------------------
def self_attention_ref(x_bcn, wq, wk, wv, num_heads):
    B, C_in, N = x_bcn.shape
    H = num_heads
    q = jnp.einsum("oc,bcn->bon", wq, x_bcn)
    k = jnp.einsum("oc,bcn->bon", wk, x_bcn)
    v = jnp.einsum("oc,bcn->bon", wv, x_bcn)
    dq, dv = q.shape[1] // H, v.shape[1] // H
    q = q.reshape(B, H, dq, N)
    k = k.reshape(B, H, dq, N)
    v = v.reshape(B, H, dv, N)
    energy = jnp.einsum("bhdn,bhdm->bhnm", q, k) / math.sqrt(N)
    attn = jax.nn.softmax(energy, axis=-1)
    out = jnp.einsum("bhnm,bhdm->bhdn", attn, v)          # (B, H, dv, N)
    return out.reshape(B, H * dv, N)


if __name__ == "__main__":
    # small shapes consistent with the module: x (B, C_in, N), q_out = k_out = v_out, H heads.
    # N=512 -> tq=tk=256, grid=(2,2,2): exercises the online-softmax accumulation and q-tile reuse.
    B, C_in, N = 2, 64, 512
    q_out = k_out = v_out = 64
    num_heads = 4

    key = jax.random.PRNGKey(0)
    kx, kq, kk, kv = jax.random.split(key, 4)
    x = jax.random.normal(kx, (B, C_in, N), jnp.float32)
    # Conv1d(C, C_out, 1, bias=False) weights (kernel dim squeezed), torch-style init scale
    bound = 1.0 / math.sqrt(C_in)
    params = dict(
        wq=jax.random.uniform(kq, (q_out, C_in), jnp.float32, -bound, bound),
        wk=jax.random.uniform(kk, (k_out, C_in), jnp.float32, -bound, bound),
        wv=jax.random.uniform(kv, (v_out, C_in), jnp.float32, -bound, bound),
    )

    fwd = jax.jit(functools.partial(point2point_embedding, num_heads=num_heads))
    out = jax.block_until_ready(fwd(x, params))

    assert out.shape == (B, v_out, N), out.shape
    assert bool(jnp.all(jnp.isfinite(out)))

    ref = self_attention_ref(x, params["wq"], params["wk"], params["wv"], num_heads)
    max_err = float(jnp.max(jnp.abs(out - ref)))
    rel_err = float(jnp.linalg.norm(out - ref) / (jnp.linalg.norm(ref) + 1e-12))
    # bf16 operands / f32 accumulation / approx-reciprocal softmax denominator tolerance
    assert max_err < 5e-2, f"max abs err {max_err}"
    assert rel_err < 5e-2, f"rel err {rel_err}"

    print("KERNEL_OK")
</pallas_src>

<mosaic_0001>
module attributes {stable_mosaic.version = 11 : i64} {
  func.func @_flash_sa_kernel(%arg0: i32, %arg1: i32, %arg2: i32, %arg3: memref<1x64x256xbf16, #tpu.memory_space<vmem>>, %arg4: memref<1x64x256xbf16, #tpu.memory_space<vmem>>, %arg5: memref<64x64xbf16, #tpu.memory_space<vmem>>, %arg6: memref<128x64xbf16, #tpu.memory_space<vmem>>, %arg7: memref<1x64x256xf32, #tpu.memory_space<vmem>>, %arg8: memref<64x256xbf16, #tpu.memory_space<vmem>>, %arg9: memref<4x1x256xf32, #tpu.memory_space<vmem>>, %arg10: memref<4x1x256xf32, #tpu.memory_space<vmem>>, %arg11: memref<4x16x256xf32, #tpu.memory_space<vmem>>) attributes {dimension_semantics = [#tpu.dimension_semantics<parallel>, #tpu.dimension_semantics<parallel>, #tpu.dimension_semantics<arbitrary>], iteration_bounds = array<i64: 2, 2, 2>, scalar_prefetch = 0 : i64, scratch_operands = 4 : i64, tpu.core_type = #tpu.core_type<tc>, window_params = [{transform_indices = @transform_0, window_bounds = array<i64: 1, 64, 256>}, {transform_indices = @transform_1, window_bounds = array<i64: 1, 64, 256>}, {pipeline_mode = #tpu.pipeline_mode<synchronous>, transform_indices = @transform_2, window_bounds = array<i64: 64, 64>}, {pipeline_mode = #tpu.pipeline_mode<synchronous>, transform_indices = @transform_3, window_bounds = array<i64: 128, 64>}, {transform_indices = @transform_4, window_bounds = array<i64: 1, 64, 256>}]} {
    %c0_i32 = arith.constant 0 : i32
    %0 = arith.cmpi eq, %arg2, %c0_i32 : i32
    %1 = arith.extui %0 : i1 to i32
    %c0_i32_0 = arith.constant 0 : i32
    %2 = arith.cmpi ne, %1, %c0_i32_0 : i32
    scf.if %2 {
      %c0_93 = arith.constant 0 : index
      %c0_94 = arith.constant 0 : index
      %156 = vector.load %arg5[%c0_93, %c0_94] : memref<64x64xbf16, #tpu.memory_space<vmem>>, vector<64x64xbf16>
      %c0_95 = arith.constant 0 : index
      %c0_96 = arith.constant 0 : index
      %c0_97 = arith.constant 0 : index
      %157 = vector.load %arg3[%c0_95, %c0_96, %c0_97] : memref<1x64x256xbf16, #tpu.memory_space<vmem>>, vector<1x64x256xbf16>
      %158 = vector.shape_cast %157 : vector<1x64x256xbf16> to vector<64x256xbf16>
      %cst_98 = arith.constant dense<0.000000e+00> : vector<64x256xf32>
      %159 = tpu.matmul %156, %158, %cst_98 {dimension_numbers = #tpu.dot_dimension_numbers<[1], [0], [0], [1], [0, 0, 1, 1], [], []>} : vector<64x64xbf16>, vector<64x256xbf16>, vector<64x256xf32> -> vector<64x256xf32>
      %160 = arith.truncf %159 : vector<64x256xf32> to vector<64x256xbf16>
      %c0_99 = arith.constant 0 : index
      %c0_100 = arith.constant 0 : index
      %161 = vector.load %arg8[%c0_99, %c0_100] : memref<64x256xbf16, #tpu.memory_space<vmem>>, vector<64x256xbf16>
      tpu.vector_store %arg8[%c0_99, %c0_100], %160 {strides = array<i32>} : memref<64x256xbf16, #tpu.memory_space<vmem>>, vector<64x256xbf16>,
      %cst_101 = arith.constant 0xFF800000 : f32
      %162 = vector.broadcast %cst_101 : f32 to vector<4x1x256xf32>
      %c0_102 = arith.constant 0 : index
      %c0_103 = arith.constant 0 : index
      %c0_104 = arith.constant 0 : index
      %163 = vector.load %arg9[%c0_102, %c0_103, %c0_104] : memref<4x1x256xf32, #tpu.memory_space<vmem>>, vector<4x1x256xf32>
      tpu.vector_store %arg9[%c0_102, %c0_103, %c0_104], %162 {strides = array<i32>} : memref<4x1x256xf32, #tpu.memory_space<vmem>>, vector<4x1x256xf32>,
      %cst_105 = arith.constant 0.000000e+00 : f32
      %164 = vector.broadcast %cst_105 : f32 to vector<4x1x256xf32>
      %c0_106 = arith.constant 0 : index
      %c0_107 = arith.constant 0 : index
      %c0_108 = arith.constant 0 : index
      %165 = vector.load %arg10[%c0_106, %c0_107, %c0_108] : memref<4x1x256xf32, #tpu.memory_space<vmem>>, vector<4x1x256xf32>
      tpu.vector_store %arg10[%c0_106, %c0_107, %c0_108], %164 {strides = array<i32>} : memref<4x1x256xf32, #tpu.memory_space<vmem>>, vector<4x1x256xf32>,
      %cst_109 = arith.constant 0.000000e+00 : f32
      %166 = vector.broadcast %cst_109 : f32 to vector<4x16x256xf32>
      %c0_110 = arith.constant 0 : index
      %c0_111 = arith.constant 0 : index
      %c0_112 = arith.constant 0 : index
      %167 = vector.load %arg11[%c0_110, %c0_111, %c0_112] : memref<4x16x256xf32, #tpu.memory_space<vmem>>, vector<4x16x256xf32>
      tpu.vector_store %arg11[%c0_110, %c0_111, %c0_112], %166 {strides = array<i32>} : memref<4x16x256xf32, #tpu.memory_space<vmem>>, vector<4x16x256xf32>,
    } else {
    }
    %c0 = arith.constant 0 : index
    %c0_1 = arith.constant 0 : index
    %3 = vector.load %arg6[%c0, %c0_1] : memref<128x64xbf16, #tpu.memory_space<vmem>>, vector<128x64xbf16>
    %c0_2 = arith.constant 0 : index
    %c0_3 = arith.constant 0 : index
    %c0_4 = arith.constant 0 : index
    %4 = vector.load %arg4[%c0_2, %c0_3, %c0_4] : memref<1x64x256xbf16, #tpu.memory_space<vmem>>, vector<1x64x256xbf16>
    %5 = vector.shape_cast %4 : vector<1x64x256xbf16> to vector<64x256xbf16>
    %cst = arith.constant dense<0.000000e+00> : vector<128x256xf32>
    %6 = tpu.matmul %3, %5, %cst {dimension_numbers = #tpu.dot_dimension_numbers<[1], [0], [0], [1], [0, 0, 1, 1], [], []>} : vector<128x64xbf16>, vector<64x256xbf16>, vector<128x256xf32> -> vector<128x256xf32>
    %7 = arith.truncf %6 : vector<128x256xf32> to vector<128x256xbf16>
    %c0_5 = arith.constant 0 : index
    %c0_6 = arith.constant 0 : index
    %8 = vector.load %arg8[%c0_5, %c0_6] : memref<64x256xbf16, #tpu.memory_space<vmem>>, vector<64x256xbf16>
    %9 = vector.extract_strided_slice %8 {offsets = [0, 0], sizes = [16, 256], strides = [1, 1]} : vector<64x256xbf16> to vector<16x256xbf16>
    %10 = vector.extract_strided_slice %7 {offsets = [0, 0], sizes = [16, 256], strides = [1, 1]} : vector<128x256xbf16> to vector<16x256xbf16>
    %11 = vector.extract_strided_slice %7 {offsets = [64, 0], sizes = [16, 256], strides = [1, 1]} : vector<128x256xbf16> to vector<16x256xbf16>
    %cst_7 = arith.constant dense<0.000000e+00> : vector<256x256xf32>
    %12 = tpu.matmul %10, %9, %cst_7 {dimension_numbers = #tpu.dot_dimension_numbers<[0], [0], [1], [1], [0, 1, 1, 1], [], []>} : vector<16x256xbf16>, vector<16x256xbf16>, vector<256x256xf32> -> vector<256x256xf32>
    %c0_8 = arith.constant 0 : index
    %c0_9 = arith.constant 0 : index
    %c0_10 = arith.constant 0 : index
    %13 = vector.load %arg9[%c0_8, %c0_9, %c0_10] : memref<4x1x256xf32, #tpu.memory_space<vmem>>, vector<1x1x256xf32>
    %14 = vector.shape_cast %13 : vector<1x1x256xf32> to vector<1x256xf32>
    %cst_11 = arith.constant dense<0xFF800000> : vector<256xf32>
    %15 = vector.multi_reduction <maximumf>, %12, %cst_11 [0] : vector<256x256xf32> to vector<256xf32>
    %16 = vector.shape_cast %15 : vector<256xf32> to vector<1x256xf32>
    %17 = arith.maximumf %14, %16 : vector<1x256xf32>
    %18 = arith.subf %14, %17 : vector<1x256xf32>
    %19 = math.exp %18 : vector<1x256xf32>
    %20 = vector.broadcast %17 : vector<1x256xf32> to vector<256x256xf32>
    %21 = arith.subf %12, %20 : vector<256x256xf32>
    %22 = math.exp %21 : vector<256x256xf32>
    %c0_12 = arith.constant 0 : index
    %c0_13 = arith.constant 0 : index
    %c0_14 = arith.constant 0 : index
    %23 = vector.load %arg10[%c0_12, %c0_13, %c0_14] : memref<4x1x256xf32, #tpu.memory_space<vmem>>, vector<1x1x256xf32>
    %24 = vector.shape_cast %23 : vector<1x1x256xf32> to vector<1x256xf32>
    %25 = arith.mulf %19, %24 : vector<1x256xf32>
    %cst_15 = arith.constant dense<0.000000e+00> : vector<256xf32>
    %26 = vector.multi_reduction <add>, %22, %cst_15 [0] : vector<256x256xf32> to vector<256xf32>
    %27 = vector.shape_cast %26 : vector<256xf32> to vector<1x256xf32>
    %28 = arith.addf %25, %27 : vector<1x256xf32>
    %c0_16 = arith.constant 0 : index
    %c0_17 = arith.constant 0 : index
    %c0_18 = arith.constant 0 : index
    %29 = vector.load %arg10[%c0_16, %c0_17, %c0_18] : memref<4x1x256xf32, #tpu.memory_space<vmem>>, vector<1x1x256xf32>
    %30 = vector.shape_cast %29 : vector<1x1x256xf32> to vector<1x256xf32>
    %31 = vector.shape_cast %28 : vector<1x256xf32> to vector<1x1x256xf32>
    tpu.vector_store %arg10[%c0_16, %c0_17, %c0_18], %31 {strides = array<i32>} : memref<4x1x256xf32, #tpu.memory_space<vmem>>, vector<1x1x256xf32>,
    %c0_19 = arith.constant 0 : index
    %c0_20 = arith.constant 0 : index
    %c0_21 = arith.constant 0 : index
    %32 = vector.load %arg11[%c0_19, %c0_20, %c0_21] : memref<4x16x256xf32, #tpu.memory_space<vmem>>, vector<1x16x256xf32>
    %33 = vector.shape_cast %32 : vector<1x16x256xf32> to vector<16x256xf32>
    %34 = vector.broadcast %19 : vector<1x256xf32> to vector<16x256xf32>
    %35 = arith.mulf %34, %33 : vector<16x256xf32>
    %36 = arith.truncf %22 : vector<256x256xf32> to vector<256x256xbf16>
    %cst_22 = arith.constant dense<0.000000e+00> : vector<16x256xf32>
    %37 = tpu.matmul %11, %36, %cst_22 {dimension_numbers = #tpu.dot_dimension_numbers<[1], [0], [0], [1], [0, 0, 1, 1], [], []>} : vector<16x256xbf16>, vector<256x256xbf16>, vector<16x256xf32> -> vector<16x256xf32>
    %38 = arith.addf %35, %37 : vector<16x256xf32>
    %c0_23 = arith.constant 0 : index
    %c0_24 = arith.constant 0 : index
    %c0_25 = arith.constant 0 : index
    %39 = vector.load %arg11[%c0_23, %c0_24, %c0_25] : memref<4x16x256xf32, #tpu.memory_space<vmem>>, vector<1x16x256xf32>
    %40 = vector.shape_cast %39 : vector<1x16x256xf32> to vector<16x256xf32>
    %41 = vector.shape_cast %38 : vector<16x256xf32> to vector<1x16x256xf32>
    tpu.vector_store %arg11[%c0_23, %c0_24, %c0_25], %41 {strides = array<i32>} : memref<4x16x256xf32, #tpu.memory_space<vmem>>, vector<1x16x256xf32>,
    %c0_26 = arith.constant 0 : index
    %c0_27 = arith.constant 0 : index
    %c0_28 = arith.constant 0 : index
    %42 = vector.load %arg9[%c0_26, %c0_27, %c0_28] : memref<4x1x256xf32, #tpu.memory_space<vmem>>, vector<1x1x256xf32>
    %43 = vector.shape_cast %42 : vector<1x1x256xf32> to vector<1x256xf32>
    %44 = vector.shape_cast %17 : vector<1x256xf32> to vector<1x1x256xf32>
    tpu.vector_store %arg9[%c0_26, %c0_27, %c0_28], %44 {strides = array<i32>} : memref<4x1x256xf32, #tpu.memory_space<vmem>>, vector<1x1x256xf32>,
    %45 = vector.extract_strided_slice %8 {offsets = [16, 0], sizes = [16, 256], strides = [1, 1]} : vector<64x256xbf16> to vector<16x256xbf16>
    %46 = vector.extract_strided_slice %7 {offsets = [16, 0], sizes = [16, 256], strides = [1, 1]} : vector<128x256xbf16> to vector<16x256xbf16>
    %47 = vector.extract_strided_slice %7 {offsets = [80, 0], sizes = [16, 256], strides = [1, 1]} : vector<128x256xbf16> to vector<16x256xbf16>
    %cst_29 = arith.constant dense<0.000000e+00> : vector<256x256xf32>
    %48 = tpu.matmul %46, %45, %cst_29 {dimension_numbers = #tpu.dot_dimension_numbers<[0], [0], [1], [1], [0, 1, 1, 1], [], []>} : vector<16x256xbf16>, vector<16x256xbf16>, vector<256x256xf32> -> vector<256x256xf32>
    %c1 = arith.constant 1 : index
    %c0_30 = arith.constant 0 : index
    %c0_31 = arith.constant 0 : index
    %49 = vector.load %arg9[%c1, %c0_30, %c0_31] : memref<4x1x256xf32, #tpu.memory_space<vmem>>, vector<1x1x256xf32>
    %50 = vector.shape_cast %49 : vector<1x1x256xf32> to vector<1x256xf32>
    %cst_32 = arith.constant dense<0xFF800000> : vector<256xf32>
    %51 = vector.multi_reduction <maximumf>, %48, %cst_32 [0] : vector<256x256xf32> to vector<256xf32>
    %52 = vector.shape_cast %51 : vector<256xf32> to vector<1x256xf32>
    %53 = arith.maximumf %50, %52 : vector<1x256xf32>
    %54 = arith.subf %50, %53 : vector<1x256xf32>
    %55 = math.exp %54 : vector<1x256xf32>
    %56 = vector.broadcast %53 : vector<1x256xf32> to vector<256x256xf32>
    %57 = arith.subf %48, %56 : vector<256x256xf32>
    %58 = math.exp %57 : vector<256x256xf32>
    %c1_33 = arith.constant 1 : index
    %c0_34 = arith.constant 0 : index
    %c0_35 = arith.constant 0 : index
    %59 = vector.load %arg10[%c1_33, %c0_34, %c0_35] : memref<4x1x256xf32, #tpu.memory_space<vmem>>, vector<1x1x256xf32>
    %60 = vector.shape_cast %59 : vector<1x1x256xf32> to vector<1x256xf32>
    %61 = arith.mulf %55, %60 : vector<1x256xf32>
    %cst_36 = arith.constant dense<0.000000e+00> : vector<256xf32>
    %62 = vector.multi_reduction <add>, %58, %cst_36 [0] : vector<256x256xf32> to vector<256xf32>
    %63 = vector.shape_cast %62 : vector<256xf32> to vector<1x256xf32>
    %64 = arith.addf %61, %63 : vector<1x256xf32>
    %c1_37 = arith.constant 1 : index
    %c0_38 = arith.constant 0 : index
    %c0_39 = arith.constant 0 : index
    %65 = vector.load %arg10[%c1_37, %c0_38, %c0_39] : memref<4x1x256xf32, #tpu.memory_space<vmem>>, vector<1x1x256xf32>
    %66 = vector.shape_cast %65 : vector<1x1x256xf32> to vector<1x256xf32>
    %67 = vector.shape_cast %64 : vector<1x256xf32> to vector<1x1x256xf32>
    tpu.vector_store %arg10[%c1_37, %c0_38, %c0_39], %67 {strides = array<i32>} : memref<4x1x256xf32, #tpu.memory_space<vmem>>, vector<1x1x256xf32>,
    %c1_40 = arith.constant 1 : index
    %c0_41 = arith.constant 0 : index
    %c0_42 = arith.constant 0 : index
    %68 = vector.load %arg11[%c1_40, %c0_41, %c0_42] : memref<4x16x256xf32, #tpu.memory_space<vmem>>, vector<1x16x256xf32>
    %69 = vector.shape_cast %68 : vector<1x16x256xf32> to vector<16x256xf32>
    %70 = vector.broadcast %55 : vector<1x256xf32> to vector<16x256xf32>
    %71 = arith.mulf %70, %69 : vector<16x256xf32>
    %72 = arith.truncf %58 : vector<256x256xf32> to vector<256x256xbf16>
    %cst_43 = arith.constant dense<0.000000e+00> : vector<16x256xf32>
    %73 = tpu.matmul %47, %72, %cst_43 {dimension_numbers = #tpu.dot_dimension_numbers<[1], [0], [0], [1], [0, 0, 1, 1], [], []>} : vector<16x256xbf16>, vector<256x256xbf16>, vector<16x256xf32> -> vector<16x256xf32>
    %74 = arith.addf %71, %73 : vector<16x256xf32>
    %c1_44 = arith.constant 1 : index
    %c0_45 = arith.constant 0 : index
    %c0_46 = arith.constant 0 : index
    %75 = vector.load %arg11[%c1_44, %c0_45, %c0_46] : memref<4x16x256xf32, #tpu.memory_space<vmem>>, vector<1x16x256xf32>
    %76 = vector.shape_cast %75 : vector<1x16x256xf32> to vector<16x256xf32>
    %77 = vector.shape_cast %74 : vector<16x256xf32> to vector<1x16x256xf32>
    tpu.vector_store %arg11[%c1_44, %c0_45, %c0_46], %77 {strides = array<i32>} : memref<4x16x256xf32, #tpu.memory_space<vmem>>, vector<1x16x256xf32>,
    %c1_47 = arith.constant 1 : index
    %c0_48 = arith.constant 0 : index
    %c0_49 = arith.constant 0 : index
    %78 = vector.load %arg9[%c1_47, %c0_48, %c0_49] : memref<4x1x256xf32, #tpu.memory_space<vmem>>, vector<1x1x256xf32>
    %79 = vector.shape_cast %78 : vector<1x1x256xf32> to vector<1x256xf32>
    %80 = vector.shape_cast %53 : vector<1x256xf32> to vector<1x1x256xf32>
    tpu.vector_store %arg9[%c1_47, %c0_48, %c0_49], %80 {strides = array<i32>} : memref<4x1x256xf32, #tpu.memory_space<vmem>>, vector<1x1x256xf32>,
    %81 = vector.extract_strided_slice %8 {offsets = [32, 0], sizes = [16, 256], strides = [1, 1]} : vector<64x256xbf16> to vector<16x256xbf16>
    %82 = vector.extract_strided_slice %7 {offsets = [32, 0], sizes = [16, 256], strides = [1, 1]} : vector<128x256xbf16> to vector<16x256xbf16>
    %83 = vector.extract_strided_slice %7 {offsets = [96, 0], sizes = [16, 256], strides = [1, 1]} : vector<128x256xbf16> to vector<16x256xbf16>
    %cst_50 = arith.constant dense<0.000000e+00> : vector<256x256xf32>
    %84 = tpu.matmul %82, %81, %cst_50 {dimension_numbers = #tpu.dot_dimension_numbers<[0], [0], [1], [1], [0, 1, 1, 1], [], []>} : vector<16x256xbf16>, vector<16x256xbf16>, vector<256x256xf32> -> vector<256x256xf32>
    %c2 = arith.constant 2 : index
    %c0_51 = arith.constant 0 : index
    %c0_52 = arith.constant 0 : index
    %85 = vector.load %arg9[%c2, %c0_51, %c0_52] : memref<4x1x256xf32, #tpu.memory_space<vmem>>, vector<1x1x256xf32>
    %86 = vector.shape_cast %85 : vector<1x1x256xf32> to vector<1x256xf32>
    %cst_53 = arith.constant dense<0xFF800000> : vector<256xf32>
    %87 = vector.multi_reduction <maximumf>, %84, %cst_53 [0] : vector<256x256xf32> to vector<256xf32>
    %88 = vector.shape_cast %87 : vector<256xf32> to vector<1x256xf32>
    %89 = arith.maximumf %86, %88 : vector<1x256xf32>
    %90 = arith.subf %86, %89 : vector<1x256xf32>
    %91 = math.exp %90 : vector<1x256xf32>
    %92 = vector.broadcast %89 : vector<1x256xf32> to vector<256x256xf32>
    %93 = arith.subf %84, %92 : vector<256x256xf32>
    %94 = math.exp %93 : vector<256x256xf32>
    %c2_54 = arith.constant 2 : index
    %c0_55 = arith.constant 0 : index
    %c0_56 = arith.constant 0 : index
    %95 = vector.load %arg10[%c2_54, %c0_55, %c0_56] : memref<4x1x256xf32, #tpu.memory_space<vmem>>, vector<1x1x256xf32>
    %96 = vector.shape_cast %95 : vector<1x1x256xf32> to vector<1x256xf32>
    %97 = arith.mulf %91, %96 : vector<1x256xf32>
    %cst_57 = arith.constant dense<0.000000e+00> : vector<256xf32>
    %98 = vector.multi_reduction <add>, %94, %cst_57 [0] : vector<256x256xf32> to vector<256xf32>
    %99 = vector.shape_cast %98 : vector<256xf32> to vector<1x256xf32>
    %100 = arith.addf %97, %99 : vector<1x256xf32>
    %c2_58 = arith.constant 2 : index
    %c0_59 = arith.constant 0 : index
    %c0_60 = arith.constant 0 : index
    %101 = vector.load %arg10[%c2_58, %c0_59, %c0_60] : memref<4x1x256xf32, #tpu.memory_space<vmem>>, vector<1x1x256xf32>
    %102 = vector.shape_cast %101 : vector<1x1x256xf32> to vector<1x256xf32>
    %103 = vector.shape_cast %100 : vector<1x256xf32> to vector<1x1x256xf32>
    tpu.vector_store %arg10[%c2_58, %c0_59, %c0_60], %103 {strides = array<i32>} : memref<4x1x256xf32, #tpu.memory_space<vmem>>, vector<1x1x256xf32>,
    %c2_61 = arith.constant 2 : index
    %c0_62 = arith.constant 0 : index
    %c0_63 = arith.constant 0 : index
    %104 = vector.load %arg11[%c2_61, %c0_62, %c0_63] : memref<4x16x256xf32, #tpu.memory_space<vmem>>, vector<1x16x256xf32>
    %105 = vector.shape_cast %104 : vector<1x16x256xf32> to vector<16x256xf32>
    %106 = vector.broadcast %91 : vector<1x256xf32> to vector<16x256xf32>
    %107 = arith.mulf %106, %105 : vector<16x256xf32>
    %108 = arith.truncf %94 : vector<256x256xf32> to vector<256x256xbf16>
    %cst_64 = arith.constant dense<0.000000e+00> : vector<16x256xf32>
    %109 = tpu.matmul %83, %108, %cst_64 {dimension_numbers = #tpu.dot_dimension_numbers<[1], [0], [0], [1], [0, 0, 1, 1], [], []>} : vector<16x256xbf16>, vector<256x256xbf16>, vector<16x256xf32> -> vector<16x256xf32>
    %110 = arith.addf %107, %109 : vector<16x256xf32>
    %c2_65 = arith.constant 2 : index
    %c0_66 = arith.constant 0 : index
    %c0_67 = arith.constant 0 : index
    %111 = vector.load %arg11[%c2_65, %c0_66, %c0_67] : memref<4x16x256xf32, #tpu.memory_space<vmem>>, vector<1x16x256xf32>
    %112 = vector.shape_cast %111 : vector<1x16x256xf32> to vector<16x256xf32>
    %113 = vector.shape_cast %110 : vector<16x256xf32> to vector<1x16x256xf32>
    tpu.vector_store %arg11[%c2_65, %c0_66, %c0_67], %113 {strides = array<i32>} : memref<4x16x256xf32, #tpu.memory_space<vmem>>, vector<1x16x256xf32>,
    %c2_68 = arith.constant 2 : index
    %c0_69 = arith.constant 0 : index
    %c0_70 = arith.constant 0 : index
    %114 = vector.load %arg9[%c2_68, %c0_69, %c0_70] : memref<4x1x256xf32, #tpu.memory_space<vmem>>, vector<1x1x256xf32>
    %115 = vector.shape_cast %114 : vector<1x1x256xf32> to vector<1x256xf32>
    %116 = vector.shape_cast %89 : vector<1x256xf32> to vector<1x1x256xf32>
    tpu.vector_store %arg9[%c2_68, %c0_69, %c0_70], %116 {strides = array<i32>} : memref<4x1x256xf32, #tpu.memory_space<vmem>>, vector<1x1x256xf32>,
    %117 = vector.extract_strided_slice %8 {offsets = [48, 0], sizes = [16, 256], strides = [1, 1]} : vector<64x256xbf16> to vector<16x256xbf16>
    %118 = vector.extract_strided_slice %7 {offsets = [48, 0], sizes = [16, 256], strides = [1, 1]} : vector<128x256xbf16> to vector<16x256xbf16>
    %119 = vector.extract_strided_slice %7 {offsets = [112, 0], sizes = [16, 256], strides = [1, 1]} : vector<128x256xbf16> to vector<16x256xbf16>
    %cst_71 = arith.constant dense<0.000000e+00> : vector<256x256xf32>
    %120 = tpu.matmul %118, %117, %cst_71 {dimension_numbers = #tpu.dot_dimension_numbers<[0], [0], [1], [1], [0, 1, 1, 1], [], []>} : vector<16x256xbf16>, vector<16x256xbf16>, vector<256x256xf32> -> vector<256x256xf32>
    %c3 = arith.constant 3 : index
    %c0_72 = arith.constant 0 : index
    %c0_73 = arith.constant 0 : index
    %121 = vector.load %arg9[%c3, %c0_72, %c0_73] : memref<4x1x256xf32, #tpu.memory_space<vmem>>, vector<1x1x256xf32>
    %122 = vector.shape_cast %121 : vector<1x1x256xf32> to vector<1x256xf32>
    %cst_74 = arith.constant dense<0xFF800000> : vector<256xf32>
    %123 = vector.multi_reduction <maximumf>, %120, %cst_74 [0] : vector<256x256xf32> to vector<256xf32>
    %124 = vector.shape_cast %123 : vector<256xf32> to vector<1x256xf32>
    %125 = arith.maximumf %122, %124 : vector<1x256xf32>
    %126 = arith.subf %122, %125 : vector<1x256xf32>
    %127 = math.exp %126 : vector<1x256xf32>
    %128 = vector.broadcast %125 : vector<1x256xf32> to vector<256x256xf32>
    %129 = arith.subf %120, %128 : vector<256x256xf32>
    %130 = math.exp %129 : vector<256x256xf32>
    %c3_75 = arith.constant 3 : index
    %c0_76 = arith.constant 0 : index
    %c0_77 = arith.constant 0 : index
    %131 = vector.load %arg10[%c3_75, %c0_76, %c0_77] : memref<4x1x256xf32, #tpu.memory_space<vmem>>, vector<1x1x256xf32>
    %132 = vector.shape_cast %131 : vector<1x1x256xf32> to vector<1x256xf32>
    %133 = arith.mulf %127, %132 : vector<1x256xf32>
    %cst_78 = arith.constant dense<0.000000e+00> : vector<256xf32>
    %134 = vector.multi_reduction <add>, %130, %cst_78 [0] : vector<256x256xf32> to vector<256xf32>
    %135 = vector.shape_cast %134 : vector<256xf32> to vector<1x256xf32>
    %136 = arith.addf %133, %135 : vector<1x256xf32>
    %c3_79 = arith.constant 3 : index
    %c0_80 = arith.constant 0 : index
    %c0_81 = arith.constant 0 : index
    %137 = vector.load %arg10[%c3_79, %c0_80, %c0_81] : memref<4x1x256xf32, #tpu.memory_space<vmem>>, vector<1x1x256xf32>
    %138 = vector.shape_cast %137 : vector<1x1x256xf32> to vector<1x256xf32>
    %139 = vector.shape_cast %136 : vector<1x256xf32> to vector<1x1x256xf32>
    tpu.vector_store %arg10[%c3_79, %c0_80, %c0_81], %139 {strides = array<i32>} : memref<4x1x256xf32, #tpu.memory_space<vmem>>, vector<1x1x256xf32>,
    %c3_82 = arith.constant 3 : index
    %c0_83 = arith.constant 0 : index
    %c0_84 = arith.constant 0 : index
    %140 = vector.load %arg11[%c3_82, %c0_83, %c0_84] : memref<4x16x256xf32, #tpu.memory_space<vmem>>, vector<1x16x256xf32>
    %141 = vector.shape_cast %140 : vector<1x16x256xf32> to vector<16x256xf32>
    %142 = vector.broadcast %127 : vector<1x256xf32> to vector<16x256xf32>
    %143 = arith.mulf %142, %141 : vector<16x256xf32>
    %144 = arith.truncf %130 : vector<256x256xf32> to vector<256x256xbf16>
    %cst_85 = arith.constant dense<0.000000e+00> : vector<16x256xf32>
    %145 = tpu.matmul %119, %144, %cst_85 {dimension_numbers = #tpu.dot_dimension_numbers<[1], [0], [0], [1], [0, 0, 1, 1], [], []>} : vector<16x256xbf16>, vector<256x256xbf16>, vector<16x256xf32> -> vector<16x256xf32>
    %146 = arith.addf %143, %145 : vector<16x256xf32>
    %c3_86 = arith.constant 3 : index
    %c0_87 = arith.constant 0 : index
    %c0_88 = arith.constant 0 : index
    %147 = vector.load %arg11[%c3_86, %c0_87, %c0_88] : memref<4x16x256xf32, #tpu.memory_space<vmem>>, vector<1x16x256xf32>
    %148 = vector.shape_cast %147 : vector<1x16x256xf32> to vector<16x256xf32>
    %149 = vector.shape_cast %146 : vector<16x256xf32> to vector<1x16x256xf32>
    tpu.vector_store %arg11[%c3_86, %c0_87, %c0_88], %149 {strides = array<i32>} : memref<4x16x256xf32, #tpu.memory_space<vmem>>, vector<1x16x256xf32>,
    %c3_89 = arith.constant 3 : index
    %c0_90 = arith.constant 0 : index
    %c0_91 = arith.constant 0 : index
    %150 = vector.load %arg9[%c3_89, %c0_90, %c0_91] : memref<4x1x256xf32, #tpu.memory_space<vmem>>, vector<1x1x256xf32>
    %151 = vector.shape_cast %150 : vector<1x1x256xf32> to vector<1x256xf32>
    %152 = vector.shape_cast %125 : vector<1x256xf32> to vector<1x1x256xf32>
    tpu.vector_store %arg9[%c3_89, %c0_90, %c0_91], %152 {strides = array<i32>} : memref<4x1x256xf32, #tpu.memory_space<vmem>>, vector<1x1x256xf32>,
    %c1_i32 = arith.constant 1 : i32
    %153 = arith.cmpi eq, %arg2, %c1_i32 : i32
    %154 = arith.extui %153 : i1 to i32
    %c0_i32_92 = arith.constant 0 : i32
    %155 = arith.cmpi ne, %154, %c0_i32_92 : i32
    scf.if %155 {
      %c0_93 = arith.constant 0 : index
      %c0_94 = arith.constant 0 : index
      %c0_95 = arith.constant 0 : index
      %156 = vector.load %arg10[%c0_93, %c0_94, %c0_95] : memref<4x1x256xf32, #tpu.memory_space<vmem>>, vector<4x1x256xf32>
      %157 = tpu.reciprocal %156 {approx = true} : vector<4x1x256xf32> -> vector<4x1x256xf32>
      %c0_96 = arith.constant 0 : index
      %c0_97 = arith.constant 0 : index
      %c0_98 = arith.constant 0 : index
      %158 = vector.load %arg11[%c0_96, %c0_97, %c0_98] : memref<4x16x256xf32, #tpu.memory_space<vmem>>, vector<4x16x256xf32>
      %159 = vector.broadcast %157 : vector<4x1x256xf32> to vector<4x16x256xf32>
      %160 = arith.mulf %158, %159 : vector<4x16x256xf32>
      %161 = vector.shape_cast %160 : vector<4x16x256xf32> to vector<64x256xf32>
      %c0_99 = arith.constant 0 : index
      %c0_100 = arith.constant 0 : index
      %c0_101 = arith.constant 0 : index
      %162 = vector.load %arg7[%c0_99, %c0_100, %c0_101] : memref<1x64x256xf32, #tpu.memory_space<vmem>>, vector<1x64x256xf32>
      %163 = vector.shape_cast %162 : vector<1x64x256xf32> to vector<64x256xf32>
      %164 = vector.shape_cast %161 : vector<64x256xf32> to vector<1x64x256xf32>
      tpu.vector_store %arg7[%c0_99, %c0_100, %c0_101], %164 {strides = array<i32>} : memref<1x64x256xf32, #tpu.memory_space<vmem>>, vector<1x64x256xf32>,
    } else {
    }
    return
  }
  func.func @transform_0(%arg0: i32, %arg1: i32, %arg2: i32) -> (i32, i32, i32) {
    %c0_i32 = arith.constant 0 : i32
    %c0_i32_0 = arith.constant 0 : i32
    return %arg0, %c0_i32, %arg1 : i32, i32, i32
  }
  func.func @transform_1(%arg0: i32, %arg1: i32, %arg2: i32) -> (i32, i32, i32) {
    %c0_i32 = arith.constant 0 : i32
    %c0_i32_0 = arith.constant 0 : i32
    return %arg0, %c0_i32, %arg2 : i32, i32, i32
  }
  func.func @transform_2(%arg0: i32, %arg1: i32, %arg2: i32) -> (i32, i32) {
    %c0_i32 = arith.constant 0 : i32
    %c0_i32_0 = arith.constant 0 : i32
    %c0_i32_1 = arith.constant 0 : i32
    return %c0_i32, %c0_i32_0 : i32, i32
  }
  func.func @transform_3(%arg0: i32, %arg1: i32, %arg2: i32) -> (i32, i32) {
    %c0_i32 = arith.constant 0 : i32
    %c0_i32_0 = arith.constant 0 : i32
    %c0_i32_1 = arith.constant 0 : i32
    return %c0_i32, %c0_i32_0 : i32, i32
  }
  func.func @transform_4(%arg0: i32, %arg1: i32, %arg2: i32) -> (i32, i32, i32) {
    %c0_i32 = arith.constant 0 : i32
    %c0_i32_0 = arith.constant 0 : i32
    return %arg0, %c0_i32, %arg1 : i32, i32, i32
  }
}

</mosaic_0001>

<llo_original>
// kernel: point2point_embedding.1
$region0: #{point2point_embedding.1}
  #allocation0 [shape = 'u32[]', space=smem, size = 0x4, offset = 0x4, fixed_abs, tag = 'smem constant byte address 0x4 - core index']
  #allocation1 [shape = 'u32[144,128]{1,0:T(1,128)}', space=vmem, size = 0x12000, scoped, tag = 'internal scratch']
  #allocation2 [shape = 'bf16[64,256]{1,0:T(16,128)(2,1)}', space=vmem, size = 0x8000, scoped, tag = 'scratch operand']
  #allocation3 [shape = 'f32[4,1,256]{2,1,0:T(1,128)}', space=vmem, size = 0x1000, scoped, tag = 'scratch operand']
  #allocation4 [shape = 'f32[4,1,256]{2,1,0:T(1,128)}', space=vmem, size = 0x1000, scoped, tag = 'scratch operand']
  #allocation5 [shape = 'f32[4,16,256]{2,1,0:T(8,128)}', space=vmem, size = 0x10000, scoped, tag = 'scratch operand']
  %s0 = inlined_call_operand.vmem [shape: bf16[2,64,512], index: 0, kind: input, shape index: {}, may-alias: {0,1}]
  %s1 = inlined_call_operand.vmem [shape: bf16[2,64,512], index: 1, kind: input, shape index: {}, may-alias: {0,1}]
  %s2 = inlined_call_operand.vmem [shape: bf16[64,64], index: 2, kind: input, shape index: {}]
  %s3 = inlined_call_operand.vmem [shape: bf16[128,64], index: 3, kind: input, shape index: {}]
  %s4 = inlined_call_operand.hbm [shape: f32[2,64,512], index: 4, kind: output, shape index: {}]
  %s5 = sld [smem:[#allocation0]]
  $region133: #{point2point_embedding.1} parent=0
    _
  %s7 = ssub.s32 1, %s5
  %s8 = scalar_select 0, %s7, %s5
  $region1: #{point2point_embedding.1} parent=0
    #allocation6 [shape = 'u8[65536]{0}', space=vmem, size = 0x10000, scoped, tag = 'input window, operand 0']
    #allocation7 [shape = 'u8[65536]{0}', space=vmem, size = 0x10000, scoped, tag = 'input window, operand 1']
    #allocation8 [shape = 'u8[131072]{0}', space=vmem, size = 0x20000, scoped, tag = 'output window, operand 0']
    #allocation9 [shape = 's32[2]{0}', space=sflag, size = 0x8, scoped, tag = 'scoped memory for point2point_embedding.1']
    %9 = vsyncpa [#allocation9], 0
    %s10 = scalar_lea.sflag [#allocation9], 1
    %11 = vsyncpa %s10, 0
    loop: start=0, step=1, limit=10
    $region2: #{point2point_embedding.1} parent=1 // loop_pre_header
      _
    $region3: #{point2point_embedding.1} parent=1 // loop_header
      %s13 = sphi 0, %s17
      %p14 = scmp.ge.s32.totalorder %s13, 10
      %s20 = sphi 0, %s39
      %s21 = sphi 0, %s35
      %s22 = sphi 0, %s31
      %s23 = sphi 0, %s20
      %s24 = sphi 0, %s21
      %s25 = sphi 0, %s22
      %s26 = sphi 0, %s23
      %s27 = sphi 0, %s24
      %s28 = sphi 0, %s25
      %s44 = sphi 0, %s46
      %s47 = sphi 0, %s44
      %s48 = sphi 0, %s47
      %s64 = sphi 0, %s48
      %s72 = sphi 0, %s74
      %s75 = sphi 0, %s72
      %s76 = sphi 0, %s75
      %s92 = sphi 0, %s76
      %s96 = sphi 0, %s96
      %s98 = sphi 0, %s96
      %s99 = sphi 0, %s98
      %s113 = sphi 0, %s99
      %s117 = sphi 0, %s117
      %s119 = sphi 0, %s117
      %s120 = sphi 0, %s119
      %s134 = sphi 0, %s120
      %s142 = sphi 0, %s144
      %s145 = sphi 0, %s142
      %s146 = sphi 0, %s145
      %s162 = sphi 0, %s146
    $region4: #{point2point_embedding.1} parent=1 // loop_header_branch
      %16 = sbr.rel (%p14) target = $region8
    $region5: #{point2point_embedding.1} parent=1 // loop_body
      %s18 = ssub.s32 %s13, 1
      %s19 = ssub.s32 %s13, 2
      %s29 = sadd.s32 1, %s22
      %p30 = scmp.ge.s32.totalorder %s29, 2
      %s31 = scalar_select %p30, 0, %s29
      %s32 = sadd.s32 1, %s21
      %s33 = scalar_select %p30, %s32, %s21
      %p34 = scmp.ge.s32.totalorder %s33, 2
      %s35 = scalar_select %p34, 0, %s33
      %s36 = sadd.s32 1, %s20
      %s37 = scalar_select %p34, %s36, %s20
      %p38 = scmp.ge.s32.totalorder %s37, 2
      %s39 = scalar_select %p38, 0, %s37
      %s40 = ssub.s32 %s20, %s39
      %s41 = ssub.s32 %s21, %s35
      %s42 = sor.u32 %s40, %s41
      %p43 = scmp.eq.s32.totalorder %s42, 0
      %s45 = sadd.s32 %s44, 1
      %s46 = scalar_select %p43, %s44, %s45
      %p49 = pneg %p43
      %p50 = scmp.eq.s32.totalorder %s13, 7
      %p51 = por %p49, %p50
      %p52 = scmp.ne.s32.totalorder %s44, %s47
      %p53 = scmp.eq.s32.totalorder %s13, 0
      %p54 = por %p52, %p53
      %p55 = scmp.ne.s32.totalorder %s44, %s47
      %p56 = scmp.eq.s32.totalorder %s18, 7
      %p57 = por %p55, %p56
      %p58 = scmp.ne.s32.totalorder %s47, %s48
      %p59 = scmp.eq.s32.totalorder %s18, 0
      %p60 = por %p58, %p59
      %p61 = scmp.ne.s32.totalorder %s47, %s48
      %p62 = scmp.eq.s32.totalorder %s19, 7
      %p63 = por %p61, %p62
      %p65 = scmp.ne.s32.totalorder %s48, %s64
      %p66 = scmp.eq.s32.totalorder %s19, 0
      %p67 = por %p65, %p66
      %s68 = ssub.s32 %s20, %s39
      %s69 = ssub.s32 %s22, %s31
      %s70 = sor.u32 %s68, %s69
      %p71 = scmp.eq.s32.totalorder %s70, 0
      %s73 = sadd.s32 %s72, 1
      %s74 = scalar_select %p71, %s72, %s73
      %p77 = pneg %p71
      %p78 = scmp.eq.s32.totalorder %s13, 7
      %p79 = por %p77, %p78
      %p80 = scmp.ne.s32.totalorder %s72, %s75
      %p81 = scmp.eq.s32.totalorder %s13, 0
      %p82 = por %p80, %p81
      %p83 = scmp.ne.s32.totalorder %s72, %s75
      %p84 = scmp.eq.s32.totalorder %s18, 7
      %p85 = por %p83, %p84
      %p86 = scmp.ne.s32.totalorder %s75, %s76
      %p87 = scmp.eq.s32.totalorder %s18, 0
      %p88 = por %p86, %p87
      %p89 = scmp.ne.s32.totalorder %s75, %s76
      %p90 = scmp.eq.s32.totalorder %s19, 7
      %p91 = por %p89, %p90
      %p93 = scmp.ne.s32.totalorder %s76, %s92
      %p94 = scmp.eq.s32.totalorder %s19, 0
      %p95 = por %p93, %p94
      %s97 = sadd.s32 %s96, 1
      %p100 = scmp.eq.s32.totalorder %s13, 7
      %p101 = scmp.ne.s32.totalorder %s96, %s98
      %p102 = scmp.eq.s32.totalorder %s13, 0
      %p103 = por %p101, %p102
      %p104 = scmp.ne.s32.totalorder %s96, %s98
      %p105 = scmp.eq.s32.totalorder %s18, 7
      %p106 = por %p104, %p105
      %p107 = scmp.ne.s32.totalorder %s98, %s99
      %p108 = scmp.eq.s32.totalorder %s18, 0
      %p109 = por %p107, %p108
      %p110 = scmp.ne.s32.totalorder %s98, %s99
      %p111 = scmp.eq.s32.totalorder %s19, 7
      %p112 = por %p110, %p111
      %p114 = scmp.ne.s32.totalorder %s99, %s113
      %p115 = scmp.eq.s32.totalorder %s19, 0
      %p116 = por %p114, %p115
      %s118 = sadd.s32 %s117, 1
      %p121 = scmp.eq.s32.totalorder %s13, 7
      %p122 = scmp.ne.s32.totalorder %s117, %s119
      %p123 = scmp.eq.s32.totalorder %s13, 0
      %p124 = por %p122, %p123
      %p125 = scmp.ne.s32.totalorder %s117, %s119
      %p126 = scmp.eq.s32.totalorder %s18, 7
      %p127 = por %p125, %p126
      %p128 = scmp.ne.s32.totalorder %s119, %s120
      %p129 = scmp.eq.s32.totalorder %s18, 0
      %p130 = por %p128, %p129
      %p131 = scmp.ne.s32.totalorder %s119, %s120
      %p132 = scmp.eq.s32.totalorder %s19, 7
      %p133 = por %p131, %p132
      %p135 = scmp.ne.s32.totalorder %s120, %s134
      %p136 = scmp.eq.s32.totalorder %s19, 0
      %p137 = por %p135, %p136
      %s138 = ssub.s32 %s20, %s39
      %s139 = ssub.s32 %s21, %s35
      %s140 = sor.u32 %s138, %s139
      %p141 = scmp.eq.s32.totalorder %s140, 0
      %s143 = sadd.s32 %s142, 1
      %s144 = scalar_select %p141, %s142, %s143
      %p147 = pneg %p141
      %p148 = scmp.eq.s32.totalorder %s13, 7
      %p149 = por %p147, %p148
      %p150 = scmp.ne.s32.totalorder %s142, %s145
      %p151 = scmp.eq.s32.totalorder %s13, 0
      %p152 = por %p150, %p151
      %p153 = scmp.ne.s32.totalorder %s142, %s145
      %p154 = scmp.eq.s32.totalorder %s18, 7
      %p155 = por %p153, %p154
      %p156 = scmp.ne.s32.totalorder %s145, %s146
      %p157 = scmp.eq.s32.totalorder %s18, 0
      %p158 = por %p156, %p157
      %p159 = scmp.ne.s32.totalorder %s145, %s146
      %p160 = scmp.eq.s32.totalorder %s19, 7
      %p161 = por %p159, %p160
      %p163 = scmp.ne.s32.totalorder %s146, %s162
      %p164 = scmp.eq.s32.totalorder %s19, 0
      %p165 = por %p163, %p164
      %p166 = scmp.le.s32.totalorder 1, %s13
      %p167 = scmp.lt.s32.totalorder %s13, 9
      %p168 = pnand %p166, %p167
      %p169 = pneg %p168
      // Predicated region
      $region9: #{point2point_embedding.1} parent=5 // pred_check
        _
      $region10: #{point2point_embedding.1} parent=5 // pred_check_branch
        %171 = sbr.rel (%p168) target = $region12
      $region11: #{point2point_embedding.1} parent=5 // pred_region
        %s172 = ssub.s32 %s13, 1
        // Predicated region
        $region13: #{point2point_embedding.1} parent=11 // pred_check
          %p173 = pneg %p109
        $region14: #{point2point_embedding.1} parent=11 // pred_check_branch
          %175 = sbr.rel (%p173) target = $region16
        $region15: #{point2point_embedding.1} parent=11 // pred_region
          _
        $region16: #{point2point_embedding.1} parent=11 // pred_fallthru
          _
        // Predicated region
        $region17: #{point2point_embedding.1} parent=11 // pred_check
          %p176 = pneg %p130
        $region18: #{point2point_embedding.1} parent=11 // pred_check_branch
          %178 = sbr.rel (%p176) target = $region20
        $region19: #{point2point_embedding.1} parent=11 // pred_region
          _
        $region20: #{point2point_embedding.1} parent=11 // pred_fallthru
          _
      $region12: #{point2point_embedding.1} parent=5 // pred_fallthru
        _
      %p179 = scmp.lt.s32.totalorder %s13, 8
      // Predicated region
      $region21: #{point2point_embedding.1} parent=5 // pred_check
        %p180 = pneg %p179
      $region22: #{point2point_embedding.1} parent=5 // pred_check_branch
        %182 = sbr.rel (%p180) target = $region24
      $region23: #{point2point_embedding.1} parent=5 // pred_region
        // Predicated region
        $region25: #{point2point_embedding.1} parent=23 // pred_check
          %p183 = pneg %p54
        $region26: #{point2point_embedding.1} parent=23 // pred_check_branch
          %185 = sbr.rel (%p183) target = $region28
        $region27: #{point2point_embedding.1} parent=23 // pred_region
          %s186 = sand.u32 %s44, 1
          %s187 = sand.u32 %s44, 1
          %s188 = smul.addr %s187, 64
          %s189 = scalar_lea.vmem [#allocation6], %s188
          %s190 = smul.u32 2, %s21
          %s191 = smul.addr %s20, 32
          %s192 = sadd.s32 %s190, %s191
          %s193 = smul.addr %s192, 4
          %s194 = scalar_lea.vmem %s0, %s193
          // Predicated region
          $region29: #{point2point_embedding.1} parent=27 // pred_check
            _
          $region30: #{point2point_embedding.1} parent=27 // pred_check_branch
            %196 = sbr.rel (0) target = $region32
          $region31: #{point2point_embedding.1} parent=27 // pred_region
            // Predicated region
            $region33: #{point2point_embedding.1} parent=31 // pred_check
              _
            $region34: #{point2point_embedding.1} parent=31 // pred_check_branch
              %198 = sbr.rel (0) target = $region36
            $region35: #{point2point_embedding.1} parent=31 // pred_region
              // Predicated region
              $region48: #{point2point_embedding.1} parent=35 // pred_check
                _
              $region49: #{point2point_embedding.1} parent=35 // pred_check_branch
                %227 = sbr.rel (0) target = $region51
              $region50: #{point2point_embedding.1} parent=35 // pred_region
                loop: start=0, step=1, limit=1
                $region52: #{point2point_embedding.1} parent=50 // loop_pre_header
                  _
                $region53: #{point2point_embedding.1} parent=50 // loop_header
                  %s229 = sphi 0, %s233
                  %p230 = scmp.ge.s32.totalorder %s229, 1
                  %s234 = sphi %s194, %s194
                  %s235 = sphi %s189, %s189
                $region54: #{point2point_embedding.1} parent=50 // loop_header_branch
                  %232 = sbr.rel (%p230) target = $region58
                $region55: #{point2point_embedding.1} parent=50 // loop_body
                  %v236 = vld [vmem:[%s234] sm:$0xff]
                  %237 = vst [vmem:[%s235] sm:$0xff] %v236
                  %v238 = vld [vmem:[%s234 + $0x10] sm:$0xff]
                  %239 = vst [vmem:[%s235 + $0x8] sm:$0xff] %v238
                  %v240 = vld [vmem:[%s234 + $0x20] sm:$0xff]
                  %241 = vst [vmem:[%s235 + $0x10] sm:$0xff] %v240
                  %v242 = vld [vmem:[%s234 + $0x30] sm:$0xff]
                  %243 = vst [vmem:[%s235 + $0x18] sm:$0xff] %v242
                  %v244 = vld [vmem:[%s234 + $0x40] sm:$0xff]
                  %245 = vst [vmem:[%s235 + $0x20] sm:$0xff] %v244
                  %v246 = vld [vmem:[%s234 + $0x50] sm:$0xff]
                  %247 = vst [vmem:[%s235 + $0x28] sm:$0xff] %v246
                  %v248 = vld [vmem:[%s234 + $0x60] sm:$0xff]
                  %249 = vst [vmem:[%s235 + $0x30] sm:$0xff] %v248
                  %v250 = vld [vmem:[%s234 + $0x70] sm:$0xff]
                  %251 = vst [vmem:[%s235 + $0x38] sm:$0xff] %v250
                $region56: #{point2point_embedding.1} parent=50 // loop_footer
                  %s233 = sadd.s32 1, %s229
                $region57: #{point2point_embedding.1} parent=50 // loop_footer_branch
                  %228 = sbr.rel target = $region53
                $region58: #{point2point_embedding.1} parent=50 // loop_exit
                  _
              $region51: #{point2point_embedding.1} parent=35 // pred_fallthru
                _
              // Predicated region
              $region59: #{point2point_embedding.1} parent=35 // pred_check
                _
              $region60: #{point2point_embedding.1} parent=35 // pred_check_branch
                %253 = sbr.rel target = $region62
              $region61: #{point2point_embedding.1} parent=35 // pred_region
                _
              $region62: #{point2point_embedding.1} parent=35 // pred_fallthru
                _
            $region36: #{point2point_embedding.1} parent=31 // pred_fallthru
              _
            // Predicated region
            $region37: #{point2point_embedding.1} parent=31 // pred_check
              _
            $region38: #{point2point_embedding.1} parent=31 // pred_check_branch
              %200 = sbr.rel target = $region40
            $region39: #{point2point_embedding.1} parent=31 // pred_region
              loop: start=0, step=1, limit=1
              $region41: #{point2point_embedding.1} parent=39 // loop_pre_header
                _
              $region42: #{point2point_embedding.1} parent=39 // loop_header
                %s203 = sphi 0, %s207
                %p204 = scmp.ge.s32.totalorder %s203, 1
                %s208 = sphi %s194, %s194
                %s209 = sphi %s189, %s189
              $region43: #{point2point_embedding.1} parent=39 // loop_header_branch
                %206 = sbr.rel (%p204) target = $region47
              $region44: #{point2point_embedding.1} parent=39 // loop_body
                %v210 = vld [vmem:[%s208] sm:$0xff]
                %211 = vst [vmem:[%s209] sm:$0xff] %v210
                %v212 = vld [vmem:[%s208 + $0x10] sm:$0xff]
                %213 = vst [vmem:[%s209 + $0x8] sm:$0xff] %v212
                %v214 = vld [vmem:[%s208 + $0x20] sm:$0xff]
                %215 = vst [vmem:[%s209 + $0x10] sm:$0xff] %v214
                %v216 = vld [vmem:[%s208 + $0x30] sm:$0xff]
                %217 = vst [vmem:[%s209 + $0x18] sm:$0xff] %v216
                %v218 = vld [vmem:[%s208 + $0x40] sm:$0xff]
                %219 = vst [vmem:[%s209 + $0x20] sm:$0xff] %v218
                %v220 = vld [vmem:[%s208 + $0x50] sm:$0xff]
                %221 = vst [vmem:[%s209 + $0x28] sm:$0xff] %v220
                %v222 = vld [vmem:[%s208 + $0x60] sm:$0xff]
                %223 = vst [vmem:[%s209 + $0x30] sm:$0xff] %v222
                %v224 = vld [vmem:[%s208 + $0x70] sm:$0xff]
                %225 = vst [vmem:[%s209 + $0x38] sm:$0xff] %v224
              $region45: #{point2point_embedding.1} parent=39 // loop_footer
                %s207 = sadd.s32 1, %s203
              $region46: #{point2point_embedding.1} parent=39 // loop_footer_branch
                %202 = sbr.rel target = $region42
              $region47: #{point2point_embedding.1} parent=39 // loop_exit
                _
            $region40: #{point2point_embedding.1} parent=31 // pred_fallthru
              _
          $region32: #{point2point_embedding.1} parent=27 // pred_fallthru
            _
          %254 = vnop
        $region28: #{point2point_embedding.1} parent=23 // pred_fallthru
          _
        // Predicated region
        $region63: #{point2point_embedding.1} parent=23 // pred_check
          %p255 = pneg %p82
        $region64: #{point2point_embedding.1} parent=23 // pred_check_branch
          %257 = sbr.rel (%p255) target = $region66
        $region65: #{point2point_embedding.1} parent=23 // pred_region
          %s258 = sand.u32 %s72, 1
          %s259 = sand.u32 %s72, 1
          %s260 = smul.addr %s259, 64
          %s261 = scalar_lea.vmem [#allocation7], %s260
          %s262 = smul.u32 2, %s22
          %s263 = smul.addr %s20, 32
          %s264 = sadd.s32 %s262, %s263
          %s265 = smul.addr %s264, 4
          %s266 = scalar_lea.vmem %s1, %s265
          // Predicated region
          $region67: #{point2point_embedding.1} parent=65 // pred_check
            _
          $region68: #{point2point_embedding.1} parent=65 // pred_check_branch
            %268 = sbr.rel (0) target = $region70
          $region69: #{point2point_embedding.1} parent=65 // pred_region
            // Predicated region
            $region71: #{point2point_embedding.1} parent=69 // pred_check
              _
            $region72: #{point2point_embedding.1} parent=69 // pred_check_branch
              %270 = sbr.rel (0) target = $region74
            $region73: #{point2point_embedding.1} parent=69 // pred_region
              // Predicated region
              $region86: #{point2point_embedding.1} parent=73 // pred_check
                _
              $region87: #{point2point_embedding.1} parent=73 // pred_check_branch
                %299 = sbr.rel (0) target = $region89
              $region88: #{point2point_embedding.1} parent=73 // pred_region
                loop: start=0, step=1, limit=1
                $region90: #{point2point_embedding.1} parent=88 // loop_pre_header
                  _
                $region91: #{point2point_embedding.1} parent=88 // loop_header
                  %s301 = sphi 0, %s305
                  %p302 = scmp.ge.s32.totalorder %s301, 1
                  %s306 = sphi %s266, %s266
                  %s307 = sphi %s261, %s261
                $region92: #{point2point_embedding.1} parent=88 // loop_header_branch
                  %304 = sbr.rel (%p302) target = $region96
                $region93: #{point2point_embedding.1} parent=88 // loop_body
                  %v308 = vld [vmem:[%s306] sm:$0xff]
                  %309 = vst [vmem:[%s307] sm:$0xff] %v308
                  %v310 = vld [vmem:[%s306 + $0x10] sm:$0xff]
                  %311 = vst [vmem:[%s307 + $0x8] sm:$0xff] %v310
                  %v312 = vld [vmem:[%s306 + $0x20] sm:$0xff]
                  %313 = vst [vmem:[%s307 + $0x10] sm:$0xff] %v312
                  %v314 = vld [vmem:[%s306 + $0x30] sm:$0xff]
                  %315 = vst [vmem:[%s307 + $0x18] sm:$0xff] %v314
                  %v316 = vld [vmem:[%s306 + $0x40] sm:$0xff]
                  %317 = vst [vmem:[%s307 + $0x20] sm:$0xff] %v316
                  %v318 = vld [vmem:[%s306 + $0x50] sm:$0xff]
                  %319 = vst [vmem:[%s307 + $0x28] sm:$0xff] %v318
                  %v320 = vld [vmem:[%s306 + $0x60] sm:$0xff]
                  %321 = vst [vmem:[%s307 + $0x30] sm:$0xff] %v320
                  %v322 = vld [vmem:[%s306 + $0x70] sm:$0xff]
                  %323 = vst [vmem:[%s307 + $0x38] sm:$0xff] %v322
                $region94: #{point2point_embedding.1} parent=88 // loop_footer
                  %s305 = sadd.s32 1, %s301
                $region95: #{point2point_embedding.1} parent=88 // loop_footer_branch
                  %300 = sbr.rel target = $region91
                $region96: #{point2point_embedding.1} parent=88 // loop_exit
                  _
              $region89: #{point2point_embedding.1} parent=73 // pred_fallthru
                _
              // Predicated region
              $region97: #{point2point_embedding.1} parent=73 // pred_check
                _
              $region98: #{point2point_embedding.1} parent=73 // pred_check_branch
                %325 = sbr.rel target = $region100
              $region99: #{point2point_embedding.1} parent=73 // pred_region
                _
              $region100: #{point2point_embedding.1} parent=73 // pred_fallthru
                _
            $region74: #{point2point_embedding.1} parent=69 // pred_fallthru
              _
            // Predicated region
            $region75: #{point2point_embedding.1} parent=69 // pred_check
              _
            $region76: #{point2point_embedding.1} parent=69 // pred_check_branch
              %272 = sbr.rel target = $region78
            $region77: #{point2point_embedding.1} parent=69 // pred_region
              loop: start=0, step=1, limit=1
              $region79: #{point2point_embedding.1} parent=77 // loop_pre_header
                _
              $region80: #{point2point_embedding.1} parent=77 // loop_header
                %s275 = sphi 0, %s279
                %p276 = scmp.ge.s32.totalorder %s275, 1
                %s280 = sphi %s266, %s266
                %s281 = sphi %s261, %s261
              $region81: #{point2point_embedding.1} parent=77 // loop_header_branch
                %278 = sbr.rel (%p276) target = $region85
              $region82: #{point2point_embedding.1} parent=77 // loop_body
                %v282 = vld [vmem:[%s280] sm:$0xff]
                %283 = vst [vmem:[%s281] sm:$0xff] %v282
                %v284 = vld [vmem:[%s280 + $0x10] sm:$0xff]
                %285 = vst [vmem:[%s281 + $0x8] sm:$0xff] %v284
                %v286 = vld [vmem:[%s280 + $0x20] sm:$0xff]
                %287 = vst [vmem:[%s281 + $0x10] sm:$0xff] %v286
                %v288 = vld [vmem:[%s280 + $0x30] sm:$0xff]
                %289 = vst [vmem:[%s281 + $0x18] sm:$0xff] %v288
                %v290 = vld [vmem:[%s280 + $0x40] sm:$0xff]
                %291 = vst [vmem:[%s281 + $0x20] sm:$0xff] %v290
                %v292 = vld [vmem:[%s280 + $0x50] sm:$0xff]
                %293 = vst [vmem:[%s281 + $0x28] sm:$0xff] %v292
                %v294 = vld [vmem:[%s280 + $0x60] sm:$0xff]
                %295 = vst [vmem:[%s281 + $0x30] sm:$0xff] %v294
                %v296 = vld [vmem:[%s280 + $0x70] sm:$0xff]
                %297 = vst [vmem:[%s281 + $0x38] sm:$0xff] %v296
              $region83: #{point2point_embedding.1} parent=77 // loop_footer
                %s279 = sadd.s32 1, %s275
              $region84: #{point2point_embedding.1} parent=77 // loop_footer_branch
                %274 = sbr.rel target = $region80
              $region85: #{point2point_embedding.1} parent=77 // loop_exit
                _
            $region78: #{point2point_embedding.1} parent=69 // pred_fallthru
              _
          $region70: #{point2point_embedding.1} parent=65 // pred_fallthru
            _
          %326 = vnop
        $region66: #{point2point_embedding.1} parent=23 // pred_fallthru
          _
      $region24: #{point2point_embedding.1} parent=5 // pred_fallthru
        _
      %p327 = scmp.le.s32.totalorder 1, %s13
      %p328 = scmp.lt.s32.totalorder %s13, 9
      %p329 = pnand %p327, %p328
      %p330 = pneg %p329
      // Predicated region
      $region101: #{point2point_embedding.1} parent=5 // pred_check
        _
      $region102: #{point2point_embedding.1} parent=5 // pred_check_branch
        %332 = sbr.rel (%p329) target = $region104
      $region103: #{point2point_embedding.1} parent=5 // pred_region
        %s333 = ssub.s32 %s13, 1
        %s334 = sand.u32 %s47, 1
        %s335 = sand.u32 %s47, 1
        %s336 = smul.addr %s335, 64
        %s337 = scalar_lea.vmem [#allocation6], %s336
        // Predicated region
        $region105: #{point2point_embedding.1} parent=103 // pred_check
          %p338 = pneg %p60
        $region106: #{point2point_embedding.1} parent=103 // pred_check_branch
          %340 = sbr.rel (%p338) target = $region108
        $region107: #{point2point_embedding.1} parent=103 // pred_region
          _
        $region108: #{point2point_embedding.1} parent=103 // pred_fallthru
          _
        %s341 = sand.u32 %s75, 1
        %s342 = sand.u32 %s75, 1
        %s343 = smul.addr %s342, 64
        %s344 = scalar_lea.vmem [#allocation7], %s343
        // Predicated region
        $region109: #{point2point_embedding.1} parent=103 // pred_check
          %p345 = pneg %p88
        $region110: #{point2point_embedding.1} parent=103 // pred_check_branch
          %347 = sbr.rel (%p345) target = $region112
        $region111: #{point2point_embedding.1} parent=103 // pred_region
          _
        $region112: #{point2point_embedding.1} parent=103 // pred_fallthru
          _
        %s348 = sand.u32 %s47, 1
        %s349 = sand.u32 %s47, 1
        %s350 = smul.addr %s349, 64
        %s351 = scalar_lea.vmem [#allocation6], %s350
        %p352 = pneg %p60
        %p353 = pneg %p57
        %s354 = sand.u32 %s75, 1
        %s355 = sand.u32 %s75, 1
        %s356 = smul.addr %s355, 64
        %s357 = scalar_lea.vmem [#allocation7], %s356
        %p358 = pneg %p88
        %p359 = pneg %p85
        %p360 = pneg %p109
        %p361 = pneg %p106
        %p362 = pneg %p130
        %p363 = pneg %p127
        %p364 = pneg %p158
        %p365 = pneg %p155
        %s366 = sand.u32 %s145, 1
        %s367 = scalar_lea.sflag [#allocation9], %s366
        %s368 = sand.u32 %s145, 1
        %s369 = smul.addr %s368, 128
        %s370 = scalar_lea.vmem [#allocation8], %s369
        %s371 = smul.u32 2, %s24
        %s372 = smul.u32 2, %s25
        %s373 = smul.u32 2, %s24
        %p375 = scmp.eq.s32.totalorder %s25, 0
        // Predicated region
        $region113: #{point2point_embedding.1} parent=103 // pred_check
          %p376 = pneg %p375
        $region114: #{point2point_embedding.1} parent=103 // pred_check_branch
          %378 = sbr.rel (%p376) target = $region116
        $region115: #{point2point_embedding.1} parent=103 // pred_region
          %v379 = vld [vmem:[%s2] sm:$0xf]
          %v380 = vld [vmem:[%s2 + $0x4] sm:$0xf]
          %v381 = vld [vmem:[%s2 + $0x8] sm:$0xf]
          %v382 = vld [vmem:[%s2 + $0xc] sm:$0xf]
          %v383 = vld [vmem:[%s2 + $0x10] sm:$0xf]
          %v384 = vld [vmem:[%s2 + $0x14] sm:$0xf]
          %v385 = vld [vmem:[%s2 + $0x18] sm:$0xf]
          %v386 = vld [vmem:[%s2 + $0x1c] sm:$0xf]
          %v387 = vld [vmem:[%s337] sm:$0xff]
          %v388 = vld [vmem:[%s337 + $0x8] sm:$0xff]
          %v389 = vld [vmem:[%s337 + $0x10] sm:$0xff]
          %v390 = vld [vmem:[%s337 + $0x18] sm:$0xff]
          %v391 = vld [vmem:[%s337 + $0x20] sm:$0xff]
          %v392 = vld [vmem:[%s337 + $0x28] sm:$0xff]
          %v393 = vld [vmem:[%s337 + $0x30] sm:$0xff]
          %v394 = vld [vmem:[%s337 + $0x38] sm:$0xff]
          %v403 = vunpack.c.l.b16 %v379
          %v404 = vunpack.c.l.b16 %v380
          %v405 = vunpack.c.l.b16 %v381
          %v406 = vunpack.c.l.b16 %v382
          %v407 = vunpack.c.l.b16 %v383
          %v408 = vunpack.c.l.b16 %v384
          %v409 = vunpack.c.l.b16 %v385
          %v410 = vunpack.c.l.b16 %v386
          %v411 = vpack.c.b16 %v404, %v403
          %v412 = vpack.c.b16 %v406, %v405
          %v413 = vpack.c.b16 %v408, %v407
          %v414 = vpack.c.b16 %v410, %v409
          %v423 = vunpack.c.l.b16 %v387
          %v424 = vunpack.c.h.b16 %v387
          %v425 = vunpack.c.l.b16 %v388
          %v426 = vunpack.c.h.b16 %v388
          %v427 = vunpack.c.l.b16 %v389
          %v428 = vunpack.c.h.b16 %v389
          %v429 = vunpack.c.l.b16 %v390
          %v430 = vunpack.c.h.b16 %v390
          %v431 = vunpack.c.l.b16 %v391
          %v432 = vunpack.c.h.b16 %v391
          %v433 = vunpack.c.l.b16 %v392
          %v434 = vunpack.c.h.b16 %v392
          %v435 = vunpack.c.l.b16 %v393
          %v436 = vunpack.c.h.b16 %v393
          %v437 = vunpack.c.l.b16 %v394
          %v438 = vunpack.c.h.b16 %v394
          %v439 = vpack.c.b16 %v425, %v423
          %v440 = vpack.c.b16 %v426, %v424
          %v441 = vpack.c.b16 %v429, %v427
          %v442 = vpack.c.b16 %v430, %v428
          %v443 = vpack.c.b16 %v433, %v431
          %v444 = vpack.c.b16 %v434, %v432
          %v445 = vpack.c.b16 %v437, %v435
          %v446 = vpack.c.b16 %v438, %v436
          %vm455 = vcmask 523264
          %v457 = vsel %vm455, %v411, 0
          %v460 = vsel %vm455, %v412, 0
          %v463 = vsel %vm455, %v413, 0
          %v466 = vsel %vm455, %v414, 0
          %468 = vmatprep.subr.bf16.mxu0 %v440
          %469 = vmatpush1.bf16.msra.mxu0 %v439
          %470 = vmatprep.subr.bf16.mxu0 %v442
          %471 = vmatpush1.bf16.msra.mxu0 %v441
          %472 = vmatprep.subr.bf16.mxu0 %v444
          %473 = vmatpush1.bf16.msra.mxu0 %v443
          %474 = vmatprep.subr.bf16.mxu0 %v446
          %475 = vmatpush1.bf16.msra.mxu0 %v445
          %476 = vmatprep.subr.bf16.mxu0 0
          %477 = vmatpush1.bf16.msra.mxu0 0
          %478 = vmatprep.subr.bf16.mxu0 0
          %479 = vmatpush1.bf16.msra.mxu0 0
          %480 = vmatprep.subr.bf16.mxu0 0
          %481 = vmatpush1.bf16.msra.mxu0 0
          %482 = vmatprep.subr.bf16.mxu0 0
          %483 = vmatpush1.bf16.msra.mxu0 0
          %484 = vmatprep.subr.bf16.mxu0 0
          %485 = vmatpush1.bf16.msra.mxu0 0
          %486 = vmatprep.subr.bf16.mxu0 0
          %487 = vmatpush1.bf16.msra.mxu0 0
          %488 = vmatprep.subr.bf16.mxu0 0
          %489 = vmatpush1.bf16.msra.mxu0 0
          %490 = vmatprep.subr.bf16.mxu0 0
          %491 = vmatpush1.bf16.msra.mxu0 0
          %492 = vmatprep.subr.bf16.mxu0 0
          %493 = vmatpush1.bf16.msra.mxu0 0
          %494 = vmatprep.subr.bf16.mxu0 0
          %495 = vmatpush1.bf16.msra.mxu0 0
          %496 = vmatprep.subr.bf16.mxu0 0
          %497 = vmatpush1.bf16.msra.mxu0 0
          %498 = vmatprep.subr.bf16.mxu0 0
          %499 = vmatpush1.bf16.msra.mxu0 0
          %500 = vmatprep.mubr.bf16.mxu0 0
          %501 = vmatmul.mubr.bf16.gmra.mrb[0].mxu0 %v457
          %v502 = vpop.f32.mrb[0].mxu0
          %v503 = vadd.f32 0.0, %v502
          %v504 = vpop.f32.mrb[0].mxu0
          %v505 = vadd.f32 0.0, %v504
          %v506 = vpop.f32.mrb[0].mxu0
          %v507 = vadd.f32 0.0, %v506
          %v508 = vpop.f32.mrb[0].mxu0
          %v509 = vadd.f32 0.0, %v508
          %510 = vmatprep.mubr.bf16.mxu0 0
          %511 = vmatmul.mubr.bf16.gmra.mrb[0].mxu0 %v460
          %v512 = vpop.f32.mrb[0].mxu0
          %v513 = vadd.f32 0.0, %v512
          %v514 = vpop.f32.mrb[0].mxu0
          %v515 = vadd.f32 0.0, %v514
          %v516 = vpop.f32.mrb[0].mxu0
          %v517 = vadd.f32 0.0, %v516
          %v518 = vpop.f32.mrb[0].mxu0
          %v519 = vadd.f32 0.0, %v518
          %520 = vmatprep.mubr.bf16.mxu0 0
          %521 = vmatmul.mubr.bf16.gmra.mrb[0].mxu0 %v463
          %v522 = vpop.f32.mrb[0].mxu0
          %v523 = vadd.f32 0.0, %v522
          %v524 = vpop.f32.mrb[0].mxu0
          %v525 = vadd.f32 0.0, %v524
          %v526 = vpop.f32.mrb[0].mxu0
          %v527 = vadd.f32 0.0, %v526
          %v528 = vpop.f32.mrb[0].mxu0
          %v529 = vadd.f32 0.0, %v528
          %530 = vmatprep.mubr.bf16.mxu0 0
          %531 = vmatmul.mubr.bf16.gmra.mrb[0].mxu0 %v466
          %v532 = vpop.f32.mrb[0].mxu0
          %v533 = vadd.f32 0.0, %v532
          %v534 = vpop.f32.mrb[0].mxu0
          %v535 = vadd.f32 0.0, %v534
          %v536 = vpop.f32.mrb[0].mxu0
          %v537 = vadd.f32 0.0, %v536
          %v538 = vpop.f32.mrb[0].mxu0
          %v539 = vadd.f32 0.0, %v538
          %540 = vdwg.mxu0
          %v541 = vpack.c.bf16 %v507, %v503
          %v542 = vpack.c.bf16 %v509, %v505
          %v543 = vpack.c.bf16 %v517, %v513
          %v544 = vpack.c.bf16 %v519, %v515
          %v545 = vpack.c.bf16 %v527, %v523
          %v546 = vpack.c.bf16 %v529, %v525
          %v547 = vpack.c.bf16 %v537, %v533
          %v548 = vpack.c.bf16 %v539, %v535
          %549 = vst [vmem:[#allocation2] sm:$0xff] %v541
          %550 = vst [vmem:[#allocation2 + $0x8] sm:$0xff] %v542
          %551 = vst [vmem:[#allocation2 + $0x10] sm:$0xff] %v543
          %552 = vst [vmem:[#allocation2 + $0x18] sm:$0xff] %v544
          %553 = vst [vmem:[#allocation2 + $0x20] sm:$0xff] %v545
          %554 = vst [vmem:[#allocation2 + $0x28] sm:$0xff] %v546
          %555 = vst [vmem:[#allocation2 + $0x30] sm:$0xff] %v547
          %556 = vst [vmem:[#allocation2 + $0x38] sm:$0xff] %v548
          %v557 = vlaneseq
          %vm558 = vcmp.ge.s32.totalorder %v557, 0
          %vm559 = vcmp.lt.s32.totalorder %v557, 256
          %vm560 = vmand %vm558, %vm559
          %561 = vst.msk [vmem:[#allocation3] sm:$0x3] %vm560, -inf
          %562 = vst.msk [vmem:[#allocation3 + $0x2] sm:$0x3] %vm560, -inf
          %563 = vst.msk [vmem:[#allocation3 + $0x4] sm:$0x3] %vm560, -inf
          %564 = vst.msk [vmem:[#allocation3 + $0x6] sm:$0x3] %vm560, -inf
          %565 = vst.msk [vmem:[#allocation4] sm:$0x3] %vm560, 0.0
          %566 = vst.msk [vmem:[#allocation4 + $0x2] sm:$0x3] %vm560, 0.0
          %567 = vst.msk [vmem:[#allocation4 + $0x4] sm:$0x3] %vm560, 0.0
          %568 = vst.msk [vmem:[#allocation4 + $0x6] sm:$0x3] %vm560, 0.0
          %569 = vst [vmem:[#allocation5] sm:$0xff] 0.0
          %570 = vst [vmem:[#allocation5 + $0x8] sm:$0xff] 0.0
          %571 = vst [vmem:[#allocation5 + $0x10] sm:$0xff] 0.0
          %572 = vst [vmem:[#allocation5 + $0x18] sm:$0xff] 0.0
          %573 = vst [vmem:[#allocation5 + $0x20] sm:$0xff] 0.0
          %574 = vst [vmem:[#allocation5 + $0x28] sm:$0xff] 0.0
          %575 = vst [vmem:[#allocation5 + $0x30] sm:$0xff] 0.0
          %576 = vst [vmem:[#allocation5 + $0x38] sm:$0xff] 0.0
          %577 = vst [vmem:[#allocation5 + $0x40] sm:$0xff] 0.0
          %578 = vst [vmem:[#allocation5 + $0x48] sm:$0xff] 0.0
          %579 = vst [vmem:[#allocation5 + $0x50] sm:$0xff] 0.0
          %580 = vst [vmem:[#allocation5 + $0x58] sm:$0xff] 0.0
          %581 = vst [vmem:[#allocation5 + $0x60] sm:$0xff] 0.0
          %582 = vst [vmem:[#allocation5 + $0x68] sm:$0xff] 0.0
          %583 = vst [vmem:[#allocation5 + $0x70] sm:$0xff] 0.0
          %584 = vst [vmem:[#allocation5 + $0x78] sm:$0xff] 0.0
        $region116: #{point2point_embedding.1} parent=103 // pred_fallthru
          _
        %v585 = vld [vmem:[%s3] sm:$0xf]
        %v586 = vld [vmem:[%s3 + $0x4] sm:$0xf]
        %v587 = vld [vmem:[%s3 + $0x8] sm:$0xf]
        %v588 = vld [vmem:[%s3 + $0xc] sm:$0xf]
        %v589 = vld [vmem:[%s3 + $0x10] sm:$0xf]
        %v590 = vld [vmem:[%s3 + $0x14] sm:$0xf]
        %v591 = vld [vmem:[%s3 + $0x18] sm:$0xf]
        %v592 = vld [vmem:[%s3 + $0x1c] sm:$0xf]
        %v593 = vld [vmem:[%s3 + $0x20] sm:$0xf]
        %v594 = vld [vmem:[%s3 + $0x24] sm:$0xf]
        %v595 = vld [vmem:[%s3 + $0x28] sm:$0xf]
        %v596 = vld [vmem:[%s3 + $0x2c] sm:$0xf]
        %v597 = vld [vmem:[%s3 + $0x30] sm:$0xf]
        %v598 = vld [vmem:[%s3 + $0x34] sm:$0xf]
        %v599 = vld [vmem:[%s3 + $0x38] sm:$0xf]
        %v600 = vld [vmem:[%s3 + $0x3c] sm:$0xf]
        %v601 = vld [vmem:[%s344] sm:$0xff]
        %v602 = vld [vmem:[%s344 + $0x8] sm:$0xff]
        %v603 = vld [vmem:[%s344 + $0x10] sm:$0xff]
        %v604 = vld [vmem:[%s344 + $0x18] sm:$0xff]
        %v605 = vld [vmem:[%s344 + $0x20] sm:$0xff]
        %v606 = vld [vmem:[%s344 + $0x28] sm:$0xff]
        %v607 = vld [vmem:[%s344 + $0x30] sm:$0xff]
        %v608 = vld [vmem:[%s344 + $0x38] sm:$0xff]
        %v625 = vunpack.c.l.b16 %v585
        %v626 = vunpack.c.l.b16 %v586
        %v627 = vunpack.c.l.b16 %v587
        %v628 = vunpack.c.l.b16 %v588
        %v629 = vunpack.c.l.b16 %v589
        %v630 = vunpack.c.l.b16 %v590
        %v631 = vunpack.c.l.b16 %v591
        %v632 = vunpack.c.l.b16 %v592
        %v633 = vunpack.c.l.b16 %v593
        %v634 = vunpack.c.l.b16 %v594
        %v635 = vunpack.c.l.b16 %v595
        %v636 = vunpack.c.l.b16 %v596
        %v637 = vunpack.c.l.b16 %v597
        %v638 = vunpack.c.l.b16 %v598
        %v639 = vunpack.c.l.b16 %v599
        %v640 = vunpack.c.l.b16 %v600
        %v641 = vpack.c.b16 %v626, %v625
        %v642 = vpack.c.b16 %v628, %v627
        %v643 = vpack.c.b16 %v630, %v629
        %v644 = vpack.c.b16 %v632, %v631
        %v645 = vpack.c.b16 %v634, %v633
        %v646 = vpack.c.b16 %v636, %v635
        %v647 = vpack.c.b16 %v638, %v637
        %v648 = vpack.c.b16 %v640, %v639
        %v657 = vunpack.c.l.b16 %v601
        %v658 = vunpack.c.h.b16 %v601
        %v659 = vunpack.c.l.b16 %v602
        %v660 = vunpack.c.h.b16 %v602
        %v661 = vunpack.c.l.b16 %v603
        %v662 = vunpack.c.h.b16 %v603
        %v663 = vunpack.c.l.b16 %v604
        %v664 = vunpack.c.h.b16 %v604
        %v665 = vunpack.c.l.b16 %v605
        %v666 = vunpack.c.h.b16 %v605
        %v667 = vunpack.c.l.b16 %v606
        %v668 = vunpack.c.h.b16 %v606
        %v669 = vunpack.c.l.b16 %v607
        %v670 = vunpack.c.h.b16 %v607
        %v671 = vunpack.c.l.b16 %v608
        %v672 = vunpack.c.h.b16 %v608
        %v673 = vpack.c.b16 %v659, %v657
        %v674 = vpack.c.b16 %v660, %v658
        %v675 = vpack.c.b16 %v663, %v661
        %v676 = vpack.c.b16 %v664, %v662
        %v677 = vpack.c.b16 %v667, %v665
        %v678 = vpack.c.b16 %v668, %v666
        %v679 = vpack.c.b16 %v671, %v669
        %v680 = vpack.c.b16 %v672, %v670
        %vm689 = vcmask 523264
        %v691 = vsel %vm689, %v641, 0
        %v694 = vsel %vm689, %v642, 0
        %v697 = vsel %vm689, %v643, 0
        %v700 = vsel %vm689, %v644, 0
        %v703 = vsel %vm689, %v645, 0
        %v706 = vsel %vm689, %v646, 0
        %v709 = vsel %vm689, %v647, 0
        %v712 = vsel %vm689, %v648, 0
        %714 = vmatprep.subr.bf16.mxu0 %v674
        %715 = vmatpush1.bf16.msra.mxu0 %v673
        %716 = vmatprep.subr.bf16.mxu0 %v676
        %717 = vmatpush1.bf16.msra.mxu0 %v675
        %718 = vmatprep.subr.bf16.mxu0 %v678
        %719 = vmatpush1.bf16.msra.mxu0 %v677
        %720 = vmatprep.subr.bf16.mxu0 %v680
        %721 = vmatpush1.bf16.msra.mxu0 %v679
        %722 = vmatprep.subr.bf16.mxu0 0
        %723 = vmatpush1.bf16.msra.mxu0 0
        %724 = vmatprep.subr.bf16.mxu0 0
        %725 = vmatpush1.bf16.msra.mxu0 0
        %726 = vmatprep.subr.bf16.mxu0 0
        %727 = vmatpush1.bf16.msra.mxu0 0
        %728 = vmatprep.subr.bf16.mxu0 0
        %729 = vmatpush1.bf16.msra.mxu0 0
        %730 = vmatprep.subr.bf16.mxu0 0
        %731 = vmatpush1.bf16.msra.mxu0 0
        %732 = vmatprep.subr.bf16.mxu0 0
        %733 = vmatpush1.bf16.msra.mxu0 0
        %734 = vmatprep.subr.bf16.mxu0 0
        %735 = vmatpush1.bf16.msra.mxu0 0
        %736 = vmatprep.subr.bf16.mxu0 0
        %737 = vmatpush1.bf16.msra.mxu0 0
        %738 = vmatprep.subr.bf16.mxu0 0
        %739 = vmatpush1.bf16.msra.mxu0 0
        %740 = vmatprep.subr.bf16.mxu0 0
        %741 = vmatpush1.bf16.msra.mxu0 0
        %742 = vmatprep.subr.bf16.mxu0 0
        %743 = vmatpush1.bf16.msra.mxu0 0
        %744 = vmatprep.subr.bf16.mxu0 0
        %745 = vmatpush1.bf16.msra.mxu0 0
        %746 = vmatprep.mubr.bf16.mxu0 0
        %747 = vmatmul.mubr.bf16.gmra.mrb[0].mxu0 %v691
        %v748 = vpop.f32.mrb[0].mxu0
        %v749 = vadd.f32 0.0, %v748
        %v750 = vpop.f32.mrb[0].mxu0
        %v751 = vadd.f32 0.0, %v750
        %v752 = vpop.f32.mrb[0].mxu0
        %v753 = vadd.f32 0.0, %v752
        %v754 = vpop.f32.mrb[0].mxu0
        %v755 = vadd.f32 0.0, %v754
        %756 = vmatprep.mubr.bf16.mxu0 0
        %757 = vmatmul.mubr.bf16.gmra.mrb[0].mxu0 %v694
        %v758 = vpop.f32.mrb[0].mxu0
        %v759 = vadd.f32 0.0, %v758
        %v760 = vpop.f32.mrb[0].mxu0
        %v761 = vadd.f32 0.0, %v760
        %v762 = vpop.f32.mrb[0].mxu0
        %v763 = vadd.f32 0.0, %v762
        %v764 = vpop.f32.mrb[0].mxu0
        %v765 = vadd.f32 0.0, %v764
        %766 = vmatprep.mubr.bf16.mxu0 0
        %767 = vmatmul.mubr.bf16.gmra.mrb[0].mxu0 %v697
        %v768 = vpop.f32.mrb[0].mxu0
        %v769 = vadd.f32 0.0, %v768
        %v770 = vpop.f32.mrb[0].mxu0
        %v771 = vadd.f32 0.0, %v770
        %v772 = vpop.f32.mrb[0].mxu0
        %v773 = vadd.f32 0.0, %v772
        %v774 = vpop.f32.mrb[0].mxu0
        %v775 = vadd.f32 0.0, %v774
        %776 = vmatprep.mubr.bf16.mxu0 0
        %777 = vmatmul.mubr.bf16.gmra.mrb[0].mxu0 %v700
        %v778 = vpop.f32.mrb[0].mxu0
        %v779 = vadd.f32 0.0, %v778
        %v780 = vpop.f32.mrb[0].mxu0
        %v781 = vadd.f32 0.0, %v780
        %v782 = vpop.f32.mrb[0].mxu0
        %v783 = vadd.f32 0.0, %v782
        %v784 = vpop.f32.mrb[0].mxu0
        %v785 = vadd.f32 0.0, %v784
        %786 = vmatprep.mubr.bf16.mxu0 0
        %787 = vmatmul.mubr.bf16.gmra.mrb[0].mxu0 %v703
        %v788 = vpop.f32.mrb[0].mxu0
        %v789 = vadd.f32 0.0, %v788
        %v790 = vpop.f32.mrb[0].mxu0
        %v791 = vadd.f32 0.0, %v790
        %v792 = vpop.f32.mrb[0].mxu0
        %v793 = vadd.f32 0.0, %v792
        %v794 = vpop.f32.mrb[0].mxu0
        %v795 = vadd.f32 0.0, %v794
        %796 = vmatprep.mubr.bf16.mxu0 0
        %797 = vmatmul.mubr.bf16.gmra.mrb[0].mxu0 %v706
        %v798 = vpop.f32.mrb[0].mxu0
        %v799 = vadd.f32 0.0, %v798
        %v800 = vpop.f32.mrb[0].mxu0
        %v801 = vadd.f32 0.0, %v800
        %v802 = vpop.f32.mrb[0].mxu0
        %v803 = vadd.f32 0.0, %v802
        %v804 = vpop.f32.mrb[0].mxu0
        %v805 = vadd.f32 0.0, %v804
        %806 = vmatprep.mubr.bf16.mxu0 0
        %807 = vmatmul.mubr.bf16.gmra.mrb[0].mxu0 %v709
        %v808 = vpop.f32.mrb[0].mxu0
        %v809 = vadd.f32 0.0, %v808
        %v810 = vpop.f32.mrb[0].mxu0
        %v811 = vadd.f32 0.0, %v810
        %v812 = vpop.f32.mrb[0].mxu0
        %v813 = vadd.f32 0.0, %v812
        %v814 = vpop.f32.mrb[0].mxu0
        %v815 = vadd.f32 0.0, %v814
        %816 = vmatprep.mubr.bf16.mxu0 0
        %817 = vmatmul.mubr.bf16.gmra.mrb[0].mxu0 %v712
        %v818 = vpop.f32.mrb[0].mxu0
        %v819 = vadd.f32 0.0, %v818
        %v820 = vpop.f32.mrb[0].mxu0
        %v821 = vadd.f32 0.0, %v820
        %v822 = vpop.f32.mrb[0].mxu0
        %v823 = vadd.f32 0.0, %v822
        %v824 = vpop.f32.mrb[0].mxu0
        %v825 = vadd.f32 0.0, %v824
        %826 = vdwg.mxu0
        %v827 = vpack.c.bf16 %v753, %v749
        %v828 = vpack.c.bf16 %v755, %v751
        %v829 = vpack.c.bf16 %v763, %v759
        %v830 = vpack.c.bf16 %v765, %v761
        %v831 = vpack.c.bf16 %v773, %v769
        %v832 = vpack.c.bf16 %v775, %v771
        %v833 = vpack.c.bf16 %v783, %v779
        %v834 = vpack.c.bf16 %v785, %v781
        %v835 = vpack.c.bf16 %v793, %v789
        %v836 = vpack.c.bf16 %v795, %v791
        %v837 = vpack.c.bf16 %v803, %v799
        %v838 = vpack.c.bf16 %v805, %v801
        %v839 = vpack.c.bf16 %v813, %v809
        %v840 = vpack.c.bf16 %v815, %v811
        %v841 = vpack.c.bf16 %v823, %v819
        %v842 = vpack.c.bf16 %v825, %v821
        %v843 = vld [vmem:[#allocation2] sm:$0xff]
        %v844 = vld [vmem:[#allocation2 + $0x8] sm:$0xff]
        %v845 = vld [vmem:[#allocation2 + $0x10] sm:$0xff]
        %v846 = vld [vmem:[#allocation2 + $0x18] sm:$0xff]
        %v847 = vld [vmem:[#allocation2 + $0x20] sm:$0xff]
        %v848 = vld [vmem:[#allocation2 + $0x28] sm:$0xff]
        %v849 = vld [vmem:[#allocation2 + $0x30] sm:$0xff]
        %v850 = vld [vmem:[#allocation2 + $0x38] sm:$0xff]
        %851 = vxpose.xlu0.c.b16.start [1/8] %v827, 128
        %852 = vxpose.xlu0.c.b16.cont [2/8] 0, 128
        %853 = vxpose.xlu0.c.b16.cont [3/8] 0, 128
        %854 = vxpose.xlu0.c.b16.cont [4/8] 0, 128
        %855 = vxpose.xlu0.c.b16.cont [5/8] 0, 128
        %856 = vxpose.xlu0.c.b16.cont [6/8] 0, 128
        %857 = vxpose.xlu0.c.b16.cont [7/8] 0, 128
        %858 = vxpose.xlu0.c.b16.end [8/8] 0, 128
        %v859 = vpop.trf.xlu0
        %v860 = vpop.trf.xlu0
        %v861 = vpop.trf.xlu0
        %v862 = vpop.trf.xlu0
        %v863 = vpop.trf.xlu0
        %v864 = vpop.trf.xlu0
        %v865 = vpop.trf.xlu0
        %v866 = vpop.trf.xlu0
        %867 = vxpose.xlu0.c.b16.start [1/8] %v828, 128
        %868 = vxpose.xlu0.c.b16.cont [2/8] 0, 128
        %869 = vxpose.xlu0.c.b16.cont [3/8] 0, 128
        %870 = vxpose.xlu0.c.b16.cont [4/8] 0, 128
        %871 = vxpose.xlu0.c.b16.cont [5/8] 0, 128
        %872 = vxpose.xlu0.c.b16.cont [6/8] 0, 128
        %873 = vxpose.xlu0.c.b16.cont [7/8] 0, 128
        %874 = vxpose.xlu0.c.b16.end [8/8] 0, 128
        %v875 = vpop.trf.xlu0
        %v876 = vpop.trf.xlu0
        %v877 = vpop.trf.xlu0
        %v878 = vpop.trf.xlu0
        %v879 = vpop.trf.xlu0
        %v880 = vpop.trf.xlu0
        %v881 = vpop.trf.xlu0
        %v882 = vpop.trf.xlu0
        %vm883 = vcmask 130048
        %v885 = vsel %vm883, %v859, 0
        %v888 = vsel %vm883, %v860, 0
        %v891 = vsel %vm883, %v861, 0
        %v894 = vsel %vm883, %v862, 0
        %v897 = vsel %vm883, %v863, 0
        %v900 = vsel %vm883, %v864, 0
        %v903 = vsel %vm883, %v865, 0
        %v906 = vsel %vm883, %v866, 0
        %v909 = vsel %vm883, %v875, 0
        %v912 = vsel %vm883, %v876, 0
        %v915 = vsel %vm883, %v877, 0
        %v918 = vsel %vm883, %v878, 0
        %v921 = vsel %vm883, %v879, 0
        %v924 = vsel %vm883, %v880, 0
        %v927 = vsel %vm883, %v881, 0
        %v930 = vsel %vm883, %v882, 0
        %932 = vmatprep.subr.bf16.mxu0 %v844
        %933 = vmatpush1.bf16.msra.mxu0 %v843
        %934 = vmatprep.subr.bf16.mxu0 0
        %935 = vmatpush1.bf16.msra.mxu0 0
        %936 = vmatprep.subr.bf16.mxu0 0
        %937 = vmatpush1.bf16.msra.mxu0 0
        %938 = vmatprep.subr.bf16.mxu0 0
        %939 = vmatpush1.bf16.msra.mxu0 0
        %940 = vmatprep.subr.bf16.mxu0 0
        %941 = vmatpush1.bf16.msra.mxu0 0
        %942 = vmatprep.subr.bf16.mxu0 0
        %943 = vmatpush1.bf16.msra.mxu0 0
        %944 = vmatprep.subr.bf16.mxu0 0
        %945 = vmatpush1.bf16.msra.mxu0 0
        %946 = vmatprep.subr.bf16.mxu0 0
        %947 = vmatpush1.bf16.msra.mxu0 0
        %948 = vmatprep.subr.bf16.mxu0 0
        %949 = vmatpush1.bf16.msra.mxu0 0
        %950 = vmatprep.subr.bf16.mxu0 0
        %951 = vmatpush1.bf16.msra.mxu0 0
        %952 = vmatprep.subr.bf16.mxu0 0
        %953 = vmatpush1.bf16.msra.mxu0 0
        %954 = vmatprep.subr.bf16.mxu0 0
        %955 = vmatpush1.bf16.msra.mxu0 0
        %956 = vmatprep.subr.bf16.mxu0 0
        %957 = vmatpush1.bf16.msra.mxu0 0
        %958 = vmatprep.subr.bf16.mxu0 0
        %959 = vmatpush1.bf16.msra.mxu0 0
        %960 = vmatprep.subr.bf16.mxu0 0
        %961 = vmatpush1.bf16.msra.mxu0 0
        %962 = vmatprep.subr.bf16.mxu0 0
        %963 = vmatpush1.bf16.msra.mxu0 0
        %964 = vmatprep.mubr.bf16.mxu0 0
        %965 = vmatmul.mubr.bf16.gmra.mrb[0].mxu0 %v885
        %v966 = vpop.f32.mrb[0].mxu0
        %v967 = vadd.f32 0.0, %v966
        %v968 = vpop.f32.mrb[0].mxu0
        %v969 = vadd.f32 0.0, %v968
        %v970 = vpop.f32.mrb[0].mxu0
        %v971 = vadd.f32 0.0, %v970
        %v972 = vpop.f32.mrb[0].mxu0
        %v973 = vadd.f32 0.0, %v972
        %974 = vmatprep.mubr.bf16.mxu0 0
        %975 = vmatmul.mubr.bf16.gmra.mrb[0].mxu0 %v888
        %v976 = vpop.f32.mrb[0].mxu0
        %v977 = vadd.f32 0.0, %v976
        %v978 = vpop.f32.mrb[0].mxu0
        %v979 = vadd.f32 0.0, %v978
        %v980 = vpop.f32.mrb[0].mxu0
        %v981 = vadd.f32 0.0, %v980
        %v982 = vpop.f32.mrb[0].mxu0
        %v983 = vadd.f32 0.0, %v982
        %984 = vmatprep.mubr.bf16.mxu0 0
        %985 = vmatmul.mubr.bf16.gmra.mrb[0].mxu0 %v891
        %v986 = vpop.f32.mrb[0].mxu0
        %v987 = vadd.f32 0.0, %v986
        %v988 = vpop.f32.mrb[0].mxu0
        %v989 = vadd.f32 0.0, %v988
        %v990 = vpop.f32.mrb[0].mxu0
        %v991 = vadd.f32 0.0, %v990
        %v992 = vpop.f32.mrb[0].mxu0
        %v993 = vadd.f32 0.0, %v992
        %994 = vmatprep.mubr.bf16.mxu0 0
        %995 = vmatmul.mubr.bf16.gmra.mrb[0].mxu0 %v894
        %v996 = vpop.f32.mrb[0].mxu0
        %v997 = vadd.f32 0.0, %v996
        %v998 = vpop.f32.mrb[0].mxu0
        %v999 = vadd.f32 0.0, %v998
        %v1000 = vpop.f32.mrb[0].mxu0
        %v1001 = vadd.f32 0.0, %v1000
        %v1002 = vpop.f32.mrb[0].mxu0
        %v1003 = vadd.f32 0.0, %v1002
        %1004 = vmatprep.mubr.bf16.mxu0 0
        %1005 = vmatmul.mubr.bf16.gmra.mrb[0].mxu0 %v897
        %v1006 = vpop.f32.mrb[0].mxu0
        %v1007 = vadd.f32 0.0, %v1006
        %v1008 = vpop.f32.mrb[0].mxu0
        %v1009 = vadd.f32 0.0, %v1008
        %v1010 = vpop.f32.mrb[0].mxu0
        %v1011 = vadd.f32 0.0, %v1010
        %v1012 = vpop.f32.mrb[0].mxu0
        %v1013 = vadd.f32 0.0, %v1012
        %1014 = vmatprep.mubr.bf16.mxu0 0
        %1015 = vmatmul.mubr.bf16.gmra.mrb[0].mxu0 %v900
        %v1016 = vpop.f32.mrb[0].mxu0
        %v1017 = vadd.f32 0.0, %v1016
        %v1018 = vpop.f32.mrb[0].mxu0
        %v1019 = vadd.f32 0.0, %v1018
        %v1020 = vpop.f32.mrb[0].mxu0
        %v1021 = vadd.f32 0.0, %v1020
        %v1022 = vpop.f32.mrb[0].mxu0
        %v1023 = vadd.f32 0.0, %v1022
        %1024 = vmatprep.mubr.bf16.mxu0 0
        %1025 = vmatmul.mubr.bf16.gmra.mrb[0].mxu0 %v903
        %v1026 = vpop.f32.mrb[0].mxu0
        %v1027 = vadd.f32 0.0, %v1026
        %v1028 = vpop.f32.mrb[0].mxu0
        %v1029 = vadd.f32 0.0, %v1028
        %v1030 = vpop.f32.mrb[0].mxu0
        %v1031 = vadd.f32 0.0, %v1030
        %v1032 = vpop.f32.mrb[0].mxu0
        %v1033 = vadd.f32 0.0, %v1032
        %1034 = vmatprep.mubr.bf16.mxu0 0
        %1035 = vmatmul.mubr.bf16.gmra.mrb[0].mxu0 %v906
        %v1036 = vpop.f32.mrb[0].mxu0
        %v1037 = vadd.f32 0.0, %v1036
        %v1038 = vpop.f32.mrb[0].mxu0
        %v1039 = vadd.f32 0.0, %v1038
        %v1040 = vpop.f32.mrb[0].mxu0
        %v1041 = vadd.f32 0.0, %v1040
        %v1042 = vpop.f32.mrb[0].mxu0
        %v1043 = vadd.f32 0.0, %v1042
        %1044 = vmatprep.mubr.bf16.mxu0 0
        %1045 = vmatmul.mubr.bf16.gmra.mrb[0].mxu0 %v909
        %v1046 = vpop.f32.mrb[0].mxu0
        %v1047 = vadd.f32 0.0, %v1046
        %v1048 = vpop.f32.mrb[0].mxu0
        %v1049 = vadd.f32 0.0, %v1048
        %v1050 = vpop.f32.mrb[0].mxu0
        %v1051 = vadd.f32 0.0, %v1050
        %v1052 = vpop.f32.mrb[0].mxu0
        %v1053 = vadd.f32 0.0, %v1052
        %1054 = vmatprep.mubr.bf16.mxu0 0
        %1055 = vmatmul.mubr.bf16.gmra.mrb[0].mxu0 %v912
        %v1056 = vpop.f32.mrb[0].mxu0
        %v1057 = vadd.f32 0.0, %v1056
        %v1058 = vpop.f32.mrb[0].mxu0
        %v1059 = vadd.f32 0.0, %v1058
        %v1060 = vpop.f32.mrb[0].mxu0
        %v1061 = vadd.f32 0.0, %v1060
        %v1062 = vpop.f32.mrb[0].mxu0
        %v1063 = vadd.f32 0.0, %v1062
        %1064 = vmatprep.mubr.bf16.mxu0 0
        %1065 = vmatmul.mubr.bf16.gmra.mrb[0].mxu0 %v915
        %v1066 = vpop.f32.mrb[0].mxu0
        %v1067 = vadd.f32 0.0, %v1066
        %v1068 = vpop.f32.mrb[0].mxu0
        %v1069 = vadd.f32 0.0, %v1068
        %v1070 = vpop.f32.mrb[0].mxu0
        %v1071 = vadd.f32 0.0, %v1070
        %v1072 = vpop.f32.mrb[0].mxu0
        %v1073 = vadd.f32 0.0, %v1072
        %1074 = vmatprep.mubr.bf16.mxu0 0
        %1075 = vmatmul.mubr.bf16.gmra.mrb[0].mxu0 %v918
        %v1076 = vpop.f32.mrb[0].mxu0
        %v1077 = vadd.f32 0.0, %v1076
        %v1078 = vpop.f32.mrb[0].mxu0
        %v1079 = vadd.f32 0.0, %v1078
        %v1080 = vpop.f32.mrb[0].mxu0
        %v1081 = vadd.f32 0.0, %v1080
        %v1082 = vpop.f32.mrb[0].mxu0
        %v1083 = vadd.f32 0.0, %v1082
        %1084 = vmatprep.mubr.bf16.mxu0 0
        %1085 = vmatmul.mubr.bf16.gmra.mrb[0].mxu0 %v921
        %v1086 = vpop.f32.mrb[0].mxu0
        %v1087 = vadd.f32 0.0, %v1086
        %v1088 = vpop.f32.mrb[0].mxu0
        %v1089 = vadd.f32 0.0, %v1088
        %v1090 = vpop.f32.mrb[0].mxu0
        %v1091 = vadd.f32 0.0, %v1090
        %v1092 = vpop.f32.mrb[0].mxu0
        %v1093 = vadd.f32 0.0, %v1092
        %1094 = vmatprep.mubr.bf16.mxu0 0
        %1095 = vmatmul.mubr.bf16.gmra.mrb[0].mxu0 %v924
        %v1096 = vpop.f32.mrb[0].mxu0
        %v1097 = vadd.f32 0.0, %v1096
        %v1098 = vpop.f32.mrb[0].mxu0
        %v1099 = vadd.f32 0.0, %v1098
        %v1100 = vpop.f32.mrb[0].mxu0
        %v1101 = vadd.f32 0.0, %v1100
        %v1102 = vpop.f32.mrb[0].mxu0
        %v1103 = vadd.f32 0.0, %v1102
        %1104 = vmatprep.mubr.bf16.mxu0 0
        %1105 = vmatmul.mubr.bf16.gmra.mrb[0].mxu0 %v927
        %v1106 = vpop.f32.mrb[0].mxu0
        %v1107 = vadd.f32 0.0, %v1106
        %v1108 = vpop.f32.mrb[0].mxu0
        %v1109 = vadd.f32 0.0, %v1108
        %v1110 = vpop.f32.mrb[0].mxu0
        %v1111 = vadd.f32 0.0, %v1110
        %v1112 = vpop.f32.mrb[0].mxu0
        %v1113 = vadd.f32 0.0, %v1112
        %1114 = vmatprep.mubr.bf16.mxu0 0
        %1115 = vmatmul.mubr.bf16.gmra.mrb[0].mxu0 %v930
        %v1116 = vpop.f32.mrb[0].mxu0
        %v1117 = vadd.f32 0.0, %v1116
        %v1118 = vpop.f32.mrb[0].mxu0
        %v1119 = vadd.f32 0.0, %v1118
        %v1120 = vpop.f32.mrb[0].mxu0
        %v1121 = vadd.f32 0.0, %v1120
        %v1122 = vpop.f32.mrb[0].mxu0
        %v1123 = vadd.f32 0.0, %v1122
        %1124 = vdwg.mxu0
        %v1125 = vld [vmem:[#allocation3] sm:$0x3]
        %v1126 = vmax.f32 %v967, %v977
        %v1127 = vmax.f32 %v971, %v981
        %v1128 = vmax.f32 %v1126, %v987
        %v1129 = vmax.f32 %v1127, %v991
        %v1130 = vmax.f32 %v1128, %v997
        %v1131 = vmax.f32 %v1129, %v1001
        %v1132 = vmax.f32 %v1130, %v1007
        %v1133 = vmax.f32 %v1131, %v1011
        %v1134 = vmax.f32 %v1132, %v1017
        %v1135 = vmax.f32 %v1133, %v1021
        %v1136 = vmax.f32 %v1134, %v1027
        %v1137 = vmax.f32 %v1135, %v1031
        %v1138 = vmax.f32 %v1136, %v1037
        %v1139 = vmax.f32 %v1137, %v1041
        %v1140 = vmax.f32 %v1138, %v1047
        %v1141 = vmax.f32 %v1139, %v1051
        %v1142 = vmax.f32 %v1140, %v1057
        %v1143 = vmax.f32 %v1141, %v1061
        %v1144 = vmax.f32 %v1142, %v1067
        %v1145 = vmax.f32 %v1143, %v1071
        %v1146 = vmax.f32 %v1144, %v1077
        %v1147 = vmax.f32 %v1145, %v1081
        %v1148 = vmax.f32 %v1146, %v1087
        %v1149 = vmax.f32 %v1147, %v1091
        %v1150 = vmax.f32 %v1148, %v1097
        %v1151 = vmax.f32 %v1149, %v1101
        %v1152 = vmax.f32 %v1150, %v1107
        %v1153 = vmax.f32 %v1151, %v1111
        %v1154 = vmax.f32 %v1152, %v1117
        %v1155 = vmax.f32 %v1153, %v1121
        %v1156 = vmax.f32 %v1154, %v1155
        %v1157 = vrot.slane %v1156, 4
        %v1158 = vmax.f32 %v1156, %v1157
        %v1159 = vrot.slane %v1158, 2
        %v1160 = vmax.f32 %v1158, %v1159
        %v1161 = vrot.slane %v1160, 1
        %v1162 = vmax.f32 %v1160, %v1161
        %v1163 = vmax.f32 %v969, %v979
        %v1164 = vmax.f32 %v973, %v983
        %v1165 = vmax.f32 %v1163, %v989
        %v1166 = vmax.f32 %v1164, %v993
        %v1167 = vmax.f32 %v1165, %v999
        %v1168 = vmax.f32 %v1166, %v1003
        %v1169 = vmax.f32 %v1167, %v1009
        %v1170 = vmax.f32 %v1168, %v1013
        %v1171 = vmax.f32 %v1169, %v1019
        %v1172 = vmax.f32 %v1170, %v1023
        %v1173 = vmax.f32 %v1171, %v1029
        %v1174 = vmax.f32 %v1172, %v1033
        %v1175 = vmax.f32 %v1173, %v1039
        %v1176 = vmax.f32 %v1174, %v1043
        %v1177 = vmax.f32 %v1175, %v1049
        %v1178 = vmax.f32 %v1176, %v1053
        %v1179 = vmax.f32 %v1177, %v1059
        %v1180 = vmax.f32 %v1178, %v1063
        %v1181 = vmax.f32 %v1179, %v1069
        %v1182 = vmax.f32 %v1180, %v1073
        %v1183 = vmax.f32 %v1181, %v1079
        %v1184 = vmax.f32 %v1182, %v1083
        %v1185 = vmax.f32 %v1183, %v1089
        %v1186 = vmax.f32 %v1184, %v1093
        %v1187 = vmax.f32 %v1185, %v1099
        %v1188 = vmax.f32 %v1186, %v1103
        %v1189 = vmax.f32 %v1187, %v1109
        %v1190 = vmax.f32 %v1188, %v1113
        %v1191 = vmax.f32 %v1189, %v1119
        %v1192 = vmax.f32 %v1190, %v1123
        %v1193 = vmax.f32 %v1191, %v1192
        %v1194 = vrot.slane %v1193, 4
        %v1195 = vmax.f32 %v1193, %v1194
        %v1196 = vrot.slane %v1195, 2
        %v1197 = vmax.f32 %v1195, %v1196
        %v1198 = vrot.slane %v1197, 1
        %v1199 = vmax.f32 %v1197, %v1198
        %v1202 = vcombine.low %v1162, %v1199
        %v1204 = vunpack.c.l.s4 1966171168
        %v1205 = vunpack.c.0.s8 %v1204
        %v1206 = vlaneseq
        %v1207 = vshrl.u32 %v1206, 7
        %v1208 = vsub.s32 %v1205, %v1207
        %v1209 = vrot.slane %v1202, %v1208
        %v1211 = vunpack.c.l.s4 1966171168
        %v1212 = vunpack.c.0.s8 %v1211
        %v1213 = vlaneseq
        %v1214 = vshrl.u32 %v1213, 7
        %v1215 = vsub.s32 %v1212, %v1214
        %v1216 = vrot.slane %v1209, %v1215
        %v1218 = vmax.f32 %v1125, %v1216
        %v1219 = vsub.f32 %v1125, %v1218
        %v1220 = vmul.f32 %v1219, 1.442695
        %v1221 = vpow.pop %v1220
        %v1223 = vlaneseq
        %v1224 = vshrl.u32 %v1223, 7
        %v1225 = vsub.s32 0, %v1224
        %v1226 = vrot.slane %v1218, %v1225
        %v1227 = vlaneseq
        %v1228 = vshrl.u32 %v1227, 7
        %v1229 = vsub.s32 1, %v1228
        %v1230 = vrot.slane %v1218, %v1229
        %v1233 = vsub.f32 %v967, %v1226
        %v1234 = vsub.f32 %v969, %v1230
        %v1235 = vsub.f32 %v971, %v1226
        %v1236 = vsub.f32 %v973, %v1230
        %v1237 = vsub.f32 %v977, %v1226
        %v1238 = vsub.f32 %v979, %v1230
        %v1239 = vsub.f32 %v981, %v1226
        %v1240 = vsub.f32 %v983, %v1230
        %v1241 = vsub.f32 %v987, %v1226
        %v1242 = vsub.f32 %v989, %v1230
        %v1243 = vsub.f32 %v991, %v1226
        %v1244 = vsub.f32 %v993, %v1230
        %v1245 = vsub.f32 %v997, %v1226
        %v1246 = vsub.f32 %v999, %v1230
        %v1247 = vsub.f32 %v1001, %v1226
        %v1248 = vsub.f32 %v1003, %v1230
        %v1249 = vsub.f32 %v1007, %v1226
        %v1250 = vsub.f32 %v1009, %v1230
        %v1251 = vsub.f32 %v1011, %v1226
        %v1252 = vsub.f32 %v1013, %v1230
        %v1253 = vsub.f32 %v1017, %v1226
        %v1254 = vsub.f32 %v1019, %v1230
        %v1255 = vsub.f32 %v1021, %v1226
        %v1256 = vsub.f32 %v1023, %v1230
        %v1257 = vsub.f32 %v1027, %v1226
        %v1258 = vsub.f32 %v1029, %v1230
        %v1259 = vsub.f32 %v1031, %v1226
        %v1260 = vsub.f32 %v1033, %v1230
        %v1261 = vsub.f32 %v1037, %v1226
        %v1262 = vsub.f32 %v1039, %v1230
        %v1263 = vsub.f32 %v1041, %v1226
        %v1264 = vsub.f32 %v1043, %v1230
        %v1265 = vsub.f32 %v1047, %v1226
        %v1266 = vsub.f32 %v1049, %v1230
        %v1267 = vsub.f32 %v1051, %v1226
        %v1268 = vsub.f32 %v1053, %v1230
        %v1269 = vsub.f32 %v1057, %v1226
        %v1270 = vsub.f32 %v1059, %v1230
        %v1271 = vsub.f32 %v1061, %v1226
        %v1272 = vsub.f32 %v1063, %v1230
        %v1273 = vsub.f32 %v1067, %v1226
        %v1274 = vsub.f32 %v1069, %v1230
        %v1275 = vsub.f32 %v1071, %v1226
        %v1276 = vsub.f32 %v1073, %v1230
        %v1277 = vsub.f32 %v1077, %v1226
        %v1278 = vsub.f32 %v1079, %v1230
        %v1279 = vsub.f32 %v1081, %v1226
        %v1280 = vsub.f32 %v1083, %v1230
        %v1281 = vsub.f32 %v1087, %v1226
        %v1282 = vsub.f32 %v1089, %v1230
        %v1283 = vsub.f32 %v1091, %v1226
        %v1284 = vsub.f32 %v1093, %v1230
        %v1285 = vsub.f32 %v1097, %v1226
        %v1286 = vsub.f32 %v1099, %v1230
        %v1287 = vsub.f32 %v1101, %v1226
        %v1288 = vsub.f32 %v1103, %v1230
        %v1289 = vsub.f32 %v1107, %v1226
        %v1290 = vsub.f32 %v1109, %v1230
        %v1291 = vsub.f32 %v1111, %v1226
        %v1292 = vsub.f32 %v1113, %v1230
        %v1293 = vsub.f32 %v1117, %v1226
        %v1294 = vsub.f32 %v1119, %v1230
        %v1295 = vsub.f32 %v1121, %v1226
        %v1296 = vsub.f32 %v1123, %v1230
        %v1297 = vmul.f32 %v1233, 1.442695
        %v1298 = vpow.pop %v1297
        %v1299 = vmul.f32 %v1234, 1.442695
        %v1300 = vpow.pop %v1299
        %v1301 = vmul.f32 %v1235, 1.442695
        %v1302 = vpow.pop %v1301
        %v1303 = vmul.f32 %v1236, 1.442695
        %v1304 = vpow.pop %v1303
        %v1305 = vmul.f32 %v1237, 1.442695
        %v1306 = vpow.pop %v1305
        %v1307 = vmul.f32 %v1238, 1.442695
        %v1308 = vpow.pop %v1307
        %v1309 = vmul.f32 %v1239, 1.442695
        %v1310 = vpow.pop %v1309
        %v1311 = vmul.f32 %v1240, 1.442695
        %v1312 = vpow.pop %v1311
        %v1313 = vmul.f32 %v1241, 1.442695
        %v1314 = vpow.pop %v1313
        %v1315 = vmul.f32 %v1242, 1.442695
        %v1316 = vpow.pop %v1315
        %v1317 = vmul.f32 %v1243, 1.442695
        %v1318 = vpow.pop %v1317
        %v1319 = vmul.f32 %v1244, 1.442695
        %v1320 = vpow.pop %v1319
        %v1321 = vmul.f32 %v1245, 1.442695
        %v1322 = vpow.pop %v1321
        %v1323 = vmul.f32 %v1246, 1.442695
        %v1324 = vpow.pop %v1323
        %v1325 = vmul.f32 %v1247, 1.442695
        %v1326 = vpow.pop %v1325
        %v1327 = vmul.f32 %v1248, 1.442695
        %v1328 = vpow.pop %v1327
        %v1329 = vmul.f32 %v1249, 1.442695
        %v1330 = vpow.pop %v1329
        %v1331 = vmul.f32 %v1250, 1.442695
        %v1332 = vpow.pop %v1331
        %v1333 = vmul.f32 %v1251, 1.442695
        %v1334 = vpow.pop %v1333
        %v1335 = vmul.f32 %v1252, 1.442695
        %v1336 = vpow.pop %v1335
        %v1337 = vmul.f32 %v1253, 1.442695
        %v1338 = vpow.pop %v1337
        %v1339 = vmul.f32 %v1254, 1.442695
        %v1340 = vpow.pop %v1339
        %v1341 = vmul.f32 %v1255, 1.442695
        %v1342 = vpow.pop %v1341
        %v1343 = vmul.f32 %v1256, 1.442695
        %v1344 = vpow.pop %v1343
        %v1345 = vmul.f32 %v1257, 1.442695
        %v1346 = vpow.pop %v1345
        %v1347 = vmul.f32 %v1258, 1.442695
        %v1348 = vpow.pop %v1347
        %v1349 = vmul.f32 %v1259, 1.442695
        %v1350 = vpow.pop %v1349
        %v1351 = vmul.f32 %v1260, 1.442695
        %v1352 = vpow.pop %v1351
        %v1353 = vmul.f32 %v1261, 1.442695
        %v1354 = vpow.pop %v1353
        %v1355 = vmul.f32 %v1262, 1.442695
        %v1356 = vpow.pop %v1355
        %v1357 = vmul.f32 %v1263, 1.442695
        %v1358 = vpow.pop %v1357
        %v1359 = vmul.f32 %v1264, 1.442695
        %v1360 = vpow.pop %v1359
        %v1361 = vmul.f32 %v1265, 1.442695
        %v1362 = vpow.pop %v1361
        %v1363 = vmul.f32 %v1266, 1.442695
        %v1364 = vpow.pop %v1363
        %v1365 = vmul.f32 %v1267, 1.442695
        %v1366 = vpow.pop %v1365
        %v1367 = vmul.f32 %v1268, 1.442695
        %v1368 = vpow.pop %v1367
        %v1369 = vmul.f32 %v1269, 1.442695
        %v1370 = vpow.pop %v1369
        %v1371 = vmul.f32 %v1270, 1.442695
        %v1372 = vpow.pop %v1371
        %v1373 = vmul.f32 %v1271, 1.442695
        %v1374 = vpow.pop %v1373
        %v1375 = vmul.f32 %v1272, 1.442695
        %v1376 = vpow.pop %v1375
        %v1377 = vmul.f32 %v1273, 1.442695
        %v1378 = vpow.pop %v1377
        %v1379 = vmul.f32 %v1274, 1.442695
        %v1380 = vpow.pop %v1379
        %v1381 = vmul.f32 %v1275, 1.442695
        %v1382 = vpow.pop %v1381
        %v1383 = vmul.f32 %v1276, 1.442695
        %v1384 = vpow.pop %v1383
        %v1385 = vmul.f32 %v1277, 1.442695
        %v1386 = vpow.pop %v1385
        %v1387 = vmul.f32 %v1278, 1.442695
        %v1388 = vpow.pop %v1387
        %v1389 = vmul.f32 %v1279, 1.442695
        %v1390 = vpow.pop %v1389
        %v1391 = vmul.f32 %v1280, 1.442695
        %v1392 = vpow.pop %v1391
        %v1393 = vmul.f32 %v1281, 1.442695
        %v1394 = vpow.pop %v1393
        %v1395 = vmul.f32 %v1282, 1.442695
        %v1396 = vpow.pop %v1395
        %v1397 = vmul.f32 %v1283, 1.442695
        %v1398 = vpow.pop %v1397
        %v1399 = vmul.f32 %v1284, 1.442695
        %v1400 = vpow.pop %v1399
        %v1401 = vmul.f32 %v1285, 1.442695
        %v1402 = vpow.pop %v1401
        %v1403 = vmul.f32 %v1286, 1.442695
        %v1404 = vpow.pop %v1403
        %v1405 = vmul.f32 %v1287, 1.442695
        %v1406 = vpow.pop %v1405
        %v1407 = vmul.f32 %v1288, 1.442695
        %v1408 = vpow.pop %v1407
        %v1409 = vmul.f32 %v1289, 1.442695
        %v1410 = vpow.pop %v1409
        %v1411 = vmul.f32 %v1290, 1.442695
        %v1412 = vpow.pop %v1411
        %v1413 = vmul.f32 %v1291, 1.442695
        %v1414 = vpow.pop %v1413
        %v1415 = vmul.f32 %v1292, 1.442695
        %v1416 = vpow.pop %v1415
        %v1417 = vmul.f32 %v1293, 1.442695
        %v1418 = vpow.pop %v1417
        %v1419 = vmul.f32 %v1294, 1.442695
        %v1420 = vpow.pop %v1419
        %v1421 = vmul.f32 %v1295, 1.442695
        %v1422 = vpow.pop %v1421
        %v1423 = vmul.f32 %v1296, 1.442695
        %v1424 = vpow.pop %v1423
        %v1425 = vld [vmem:[#allocation4] sm:$0x3]
        %v1426 = vmul.f32 %v1221, %v1425
        %v1427 = vadd.f32 %v1298, %v1302
        %v1428 = vadd.f32 %v1427, %v1306
        %v1429 = vadd.f32 %v1428, %v1310
        %v1430 = vadd.f32 %v1429, %v1314
        %v1431 = vadd.f32 %v1430, %v1318
        %v1432 = vadd.f32 %v1431, %v1322
        %v1433 = vadd.f32 %v1432, %v1326
        %v1434 = vadd.f32 %v1433, %v1330
        %v1435 = vadd.f32 %v1434, %v1334
        %v1436 = vadd.f32 %v1435, %v1338
        %v1437 = vadd.f32 %v1436, %v1342
        %v1438 = vadd.f32 %v1437, %v1346
        %v1439 = vadd.f32 %v1438, %v1350
        %v1440 = vadd.f32 %v1439, %v1354
        %v1441 = vadd.f32 %v1440, %v1358
        %v1442 = vadd.f32 %v1441, %v1362
        %v1443 = vadd.f32 %v1442, %v1366
        %v1444 = vadd.f32 %v1443, %v1370
        %v1445 = vadd.f32 %v1444, %v1374
        %v1446 = vadd.f32 %v1445, %v1378
        %v1447 = vadd.f32 %v1446, %v1382
        %v1448 = vadd.f32 %v1447, %v1386
        %v1449 = vadd.f32 %v1448, %v1390
        %v1450 = vadd.f32 %v1449, %v1394
        %v1451 = vadd.f32 %v1450, %v1398
        %v1452 = vadd.f32 %v1451, %v1402
        %v1453 = vadd.f32 %v1452, %v1406
        %v1454 = vadd.f32 %v1453, %v1410
        %v1455 = vadd.f32 %v1454, %v1414
        %v1456 = vadd.f32 %v1455, %v1418
        %v1457 = vadd.f32 %v1456, %v1422
        %v1458 = vrot.slane %v1457, 4
        %v1459 = vadd.f32 %v1457, %v1458
        %v1460 = vrot.slane %v1459, 2
        %v1461 = vadd.f32 %v1459, %v1460
        %v1462 = vrot.slane %v1461, 1
        %v1463 = vadd.f32 %v1461, %v1462
        %v1464 = vadd.f32 %v1300, %v1304
        %v1465 = vadd.f32 %v1464, %v1308
        %v1466 = vadd.f32 %v1465, %v1312
        %v1467 = vadd.f32 %v1466, %v1316
        %v1468 = vadd.f32 %v1467, %v1320
        %v1469 = vadd.f32 %v1468, %v1324
        %v1470 = vadd.f32 %v1469, %v1328
        %v1471 = vadd.f32 %v1470, %v1332
        %v1472 = vadd.f32 %v1471, %v1336
        %v1473 = vadd.f32 %v1472, %v1340
        %v1474 = vadd.f32 %v1473, %v1344
        %v1475 = vadd.f32 %v1474, %v1348
        %v1476 = vadd.f32 %v1475, %v1352
        %v1477 = vadd.f32 %v1476, %v1356
        %v1478 = vadd.f32 %v1477, %v1360
        %v1479 = vadd.f32 %v1478, %v1364
        %v1480 = vadd.f32 %v1479, %v1368
        %v1481 = vadd.f32 %v1480, %v1372
        %v1482 = vadd.f32 %v1481, %v1376
        %v1483 = vadd.f32 %v1482, %v1380
        %v1484 = vadd.f32 %v1483, %v1384
        %v1485 = vadd.f32 %v1484, %v1388
        %v1486 = vadd.f32 %v1485, %v1392
        %v1487 = vadd.f32 %v1486, %v1396
        %v1488 = vadd.f32 %v1487, %v1400
        %v1489 = vadd.f32 %v1488, %v1404
        %v1490 = vadd.f32 %v1489, %v1408
        %v1491 = vadd.f32 %v1490, %v1412
        %v1492 = vadd.f32 %v1491, %v1416
        %v1493 = vadd.f32 %v1492, %v1420
        %v1494 = vadd.f32 %v1493, %v1424
        %v1495 = vrot.slane %v1494, 4
        %v1496 = vadd.f32 %v1494, %v1495
        %v1497 = vrot.slane %v1496, 2
        %v1498 = vadd.f32 %v1496, %v1497
        %v1499 = vrot.slane %v1498, 1
        %v1500 = vadd.f32 %v1498, %v1499
        %v1503 = vcombine.low %v1463, %v1500
        %v1505 = vunpack.c.l.s4 1966171168
        %v1506 = vunpack.c.0.s8 %v1505
        %v1507 = vlaneseq
        %v1508 = vshrl.u32 %v1507, 7
        %v1509 = vsub.s32 %v1506, %v1508
        %v1510 = vrot.slane %v1503, %v1509
        %v1512 = vunpack.c.l.s4 1966171168
        %v1513 = vunpack.c.0.s8 %v1512
        %v1514 = vlaneseq
        %v1515 = vshrl.u32 %v1514, 7
        %v1516 = vsub.s32 %v1513, %v1515
        %v1517 = vrot.slane %v1510, %v1516
        %v1519 = vadd.f32 %v1426, %v1517
        %v1520 = vlaneseq
        %vm1521 = vcmp.ge.s32.totalorder %v1520, 0
        %vm1522 = vcmp.lt.s32.totalorder %v1520, 256
        %vm1523 = vmand %vm1521, %vm1522
        %1524 = vst.msk [vmem:[#allocation4] sm:$0x3] %vm1523, %v1519
        %v1525 = vld [vmem:[#allocation5] sm:$0xff]
        %v1526 = vld [vmem:[#allocation5 + $0x8] sm:$0xff]
        %v1527 = vld [vmem:[#allocation5 + $0x10] sm:$0xff]
        %v1528 = vld [vmem:[#allocation5 + $0x18] sm:$0xff]
        %v1530 = vlaneseq
        %v1531 = vshrl.u32 %v1530, 7
        %v1532 = vsub.s32 0, %v1531
        %v1533 = vrot.slane %v1221, %v1532
        %v1534 = vlaneseq
        %v1535 = vshrl.u32 %v1534, 7
        %v1536 = vsub.s32 1, %v1535
        %v1537 = vrot.slane %v1221, %v1536
        %v1540 = vmul.f32 %v1533, %v1525
        %v1541 = vmul.f32 %v1537, %v1526
        %v1542 = vmul.f32 %v1533, %v1527
        %v1543 = vmul.f32 %v1537, %v1528
        %v1544 = vpack.c.bf16 %v1302, %v1298
        %v1545 = vpack.c.bf16 %v1304, %v1300
        %v1546 = vpack.c.bf16 %v1310, %v1306
        %v1547 = vpack.c.bf16 %v1312, %v1308
        %v1548 = vpack.c.bf16 %v1318, %v1314
        %v1549 = vpack.c.bf16 %v1320, %v1316
        %v1550 = vpack.c.bf16 %v1326, %v1322
        %v1551 = vpack.c.bf16 %v1328, %v1324
        %v1552 = vpack.c.bf16 %v1334, %v1330
        %v1553 = vpack.c.bf16 %v1336, %v1332
        %v1554 = vpack.c.bf16 %v1342, %v1338
        %v1555 = vpack.c.bf16 %v1344, %v1340
        %v1556 = vpack.c.bf16 %v1350, %v1346
        %v1557 = vpack.c.bf16 %v1352, %v1348
        %v1558 = vpack.c.bf16 %v1358, %v1354
        %v1559 = vpack.c.bf16 %v1360, %v1356
        %v1560 = vpack.c.bf16 %v1366, %v1362
        %v1561 = vpack.c.bf16 %v1368, %v1364
        %v1562 = vpack.c.bf16 %v1374, %v1370
        %v1563 = vpack.c.bf16 %v1376, %v1372
        %v1564 = vpack.c.bf16 %v1382, %v1378
        %v1565 = vpack.c.bf16 %v1384, %v1380
        %v1566 = vpack.c.bf16 %v1390, %v1386
        %v1567 = vpack.c.bf16 %v1392, %v1388
        %v1568 = vpack.c.bf16 %v1398, %v1394
        %v1569 = vpack.c.bf16 %v1400, %v1396
        %v1570 = vpack.c.bf16 %v1406, %v1402
        %v1571 = vpack.c.bf16 %v1408, %v1404
        %v1572 = vpack.c.bf16 %v1414, %v1410
        %v1573 = vpack.c.bf16 %v1416, %v1412
        %v1574 = vpack.c.bf16 %v1422, %v1418
        %v1575 = vpack.c.bf16 %v1424, %v1420
        %1576 = vmatprep.subr.bf16.mxu0 %v1545
        %1577 = vmatpush1.bf16.msra.mxu0 %v1544
        %1578 = vmatprep.subr.bf16.mxu0 %v1547
        %1579 = vmatpush1.bf16.msra.mxu0 %v1546
        %1580 = vmatprep.subr.bf16.mxu0 %v1549
        %1581 = vmatpush1.bf16.msra.mxu0 %v1548
        %1582 = vmatprep.subr.bf16.mxu0 %v1551
        %1583 = vmatpush1.bf16.msra.mxu0 %v1550
        %1584 = vmatprep.subr.bf16.mxu0 %v1553
        %1585 = vmatpush1.bf16.msra.mxu0 %v1552
        %1586 = vmatprep.subr.bf16.mxu0 %v1555
        %1587 = vmatpush1.bf16.msra.mxu0 %v1554
        %1588 = vmatprep.subr.bf16.mxu0 %v1557
        %1589 = vmatpush1.bf16.msra.mxu0 %v1556
        %1590 = vmatprep.subr.bf16.mxu0 %v1559
        %1591 = vmatpush1.bf16.msra.mxu0 %v1558
        %1592 = vmatprep.subr.bf16.mxu0 %v1561
        %1593 = vmatpush1.bf16.msra.mxu0 %v1560
        %1594 = vmatprep.subr.bf16.mxu0 %v1563
        %1595 = vmatpush1.bf16.msra.mxu0 %v1562
        %1596 = vmatprep.subr.bf16.mxu0 %v1565
        %1597 = vmatpush1.bf16.msra.mxu0 %v1564
        %1598 = vmatprep.subr.bf16.mxu0 %v1567
        %1599 = vmatpush1.bf16.msra.mxu0 %v1566
        %1600 = vmatprep.subr.bf16.mxu0 %v1569
        %1601 = vmatpush1.bf16.msra.mxu0 %v1568
        %1602 = vmatprep.subr.bf16.mxu0 %v1571
        %1603 = vmatpush1.bf16.msra.mxu0 %v1570
        %1604 = vmatprep.subr.bf16.mxu0 %v1573
        %1605 = vmatpush1.bf16.msra.mxu0 %v1572
        %1606 = vmatprep.subr.bf16.mxu0 %v1575
        %1607 = vmatpush1.bf16.msra.mxu0 %v1574
        %1608 = vmatprep.mubr.bf16.mxu0 %v836
        %1609 = vmatmul.mubr.bf16.gmra.mrb[0].mxu0 %v835
        %v1610 = vpop.f32.mrb[0].mxu0
        %v1611 = vadd.f32 0.0, %v1610
        %v1612 = vpop.f32.mrb[0].mxu0
        %v1613 = vadd.f32 0.0, %v1612
        %v1614 = vpop.f32.mrb[0].mxu0
        %v1615 = vadd.f32 0.0, %v1614
        %v1616 = vpop.f32.mrb[0].mxu0
        %v1617 = vadd.f32 0.0, %v1616
        %1618 = vdwg.mxu0
        %v1619 = vadd.f32 %v1540, %v1611
        %v1620 = vadd.f32 %v1541, %v1613
        %v1621 = vadd.f32 %v1542, %v1615
        %v1622 = vadd.f32 %v1543, %v1617
        %1623 = vst [vmem:[#allocation5] sm:$0xff] %v1619
        %1624 = vst [vmem:[#allocation5 + $0x8] sm:$0xff] %v1620
        %1625 = vst [vmem:[#allocation5 + $0x10] sm:$0xff] %v1621
        %1626 = vst [vmem:[#allocation5 + $0x18] sm:$0xff] %v1622
        %1627 = vst.msk [vmem:[#allocation3] sm:$0x3] %vm1523, %v1218
        %1628 = vxpose.xlu0.c.b16.start [1/8] %v829, 128
        %1629 = vxpose.xlu0.c.b16.cont [2/8] 0, 128
        %1630 = vxpose.xlu0.c.b16.cont [3/8] 0, 128
        %1631 = vxpose.xlu0.c.b16.cont [4/8] 0, 128
        %1632 = vxpose.xlu0.c.b16.cont [5/8] 0, 128
        %1633 = vxpose.xlu0.c.b16.cont [6/8] 0, 128
        %1634 = vxpose.xlu0.c.b16.cont [7/8] 0, 128
        %1635 = vxpose.xlu0.c.b16.end [8/8] 0, 128
        %v1636 = vpop.trf.xlu0
        %v1637 = vpop.trf.xlu0
        %v1638 = vpop.trf.xlu0
        %v1639 = vpop.trf.xlu0
        %v1640 = vpop.trf.xlu0
        %v1641 = vpop.trf.xlu0
        %v1642 = vpop.trf.xlu0
        %v1643 = vpop.trf.xlu0
        %1644 = vxpose.xlu0.c.b16.start [1/8] %v830, 128
        %1645 = vxpose.xlu0.c.b16.cont [2/8] 0, 128
        %1646 = vxpose.xlu0.c.b16.cont [3/8] 0, 128
        %1647 = vxpose.xlu0.c.b16.cont [4/8] 0, 128
        %1648 = vxpose.xlu0.c.b16.cont [5/8] 0, 128
        %1649 = vxpose.xlu0.c.b16.cont [6/8] 0, 128
        %1650 = vxpose.xlu0.c.b16.cont [7/8] 0, 128
        %1651 = vxpose.xlu0.c.b16.end [8/8] 0, 128
        %v1652 = vpop.trf.xlu0
        %v1653 = vpop.trf.xlu0
        %v1654 = vpop.trf.xlu0
        %v1655 = vpop.trf.xlu0
        %v1656 = vpop.trf.xlu0
        %v1657 = vpop.trf.xlu0
        %v1658 = vpop.trf.xlu0
        %v1659 = vpop.trf.xlu0
        %v1661 = vsel %vm883, %v1636, 0
        %v1664 = vsel %vm883, %v1637, 0
        %v1667 = vsel %vm883, %v1638, 0
        %v1670 = vsel %vm883, %v1639, 0
        %v1673 = vsel %vm883, %v1640, 0
        %v1676 = vsel %vm883, %v1641, 0
        %v1679 = vsel %vm883, %v1642, 0
        %v1682 = vsel %vm883, %v1643, 0
        %v1685 = vsel %vm883, %v1652, 0
        %v1688 = vsel %vm883, %v1653, 0
        %v1691 = vsel %vm883, %v1654, 0
        %v1694 = vsel %vm883, %v1655, 0
        %v1697 = vsel %vm883, %v1656, 0
        %v1700 = vsel %vm883, %v1657, 0
        %v1703 = vsel %vm883, %v1658, 0
        %v1706 = vsel %vm883, %v1659, 0
        %1708 = vmatprep.subr.bf16.mxu0 %v846
        %1709 = vmatpush1.bf16.msra.mxu0 %v845
        %1710 = vmatprep.subr.bf16.mxu0 0
        %1711 = vmatpush1.bf16.msra.mxu0 0
        %1712 = vmatprep.subr.bf16.mxu0 0
        %1713 = vmatpush1.bf16.msra.mxu0 0
        %1714 = vmatprep.subr.bf16.mxu0 0
        %1715 = vmatpush1.bf16.msra.mxu0 0
        %1716 = vmatprep.subr.bf16.mxu0 0
        %1717 = vmatpush1.bf16.msra.mxu0 0
        %1718 = vmatprep.subr.bf16.mxu0 0
        %1719 = vmatpush1.bf16.msra.mxu0 0
        %1720 = vmatprep.subr.bf16.mxu0 0
        %1721 = vmatpush1.bf16.msra.mxu0 0
        %1722 = vmatprep.subr.bf16.mxu0 0
        %1723 = vmatpush1.bf16.msra.mxu0 0
        %1724 = vmatprep.subr.bf16.mxu0 0
        %1725 = vmatpush1.bf16.msra.mxu0 0
        %1726 = vmatprep.subr.bf16.mxu0 0
        %1727 = vmatpush1.bf16.msra.mxu0 0
        %1728 = vmatprep.subr.bf16.mxu0 0
        %1729 = vmatpush1.bf16.msra.mxu0 0
        %1730 = vmatprep.subr.bf16.mxu0 0
        %1731 = vmatpush1.bf16.msra.mxu0 0
        %1732 = vmatprep.subr.bf16.mxu0 0
        %1733 = vmatpush1.bf16.msra.mxu0 0
        %1734 = vmatprep.subr.bf16.mxu0 0
        %1735 = vmatpush1.bf16.msra.mxu0 0
        %1736 = vmatprep.subr.bf16.mxu0 0
        %1737 = vmatpush1.bf16.msra.mxu0 0
        %1738 = vmatprep.subr.bf16.mxu0 0
        %1739 = vmatpush1.bf16.msra.mxu0 0
        %1740 = vmatprep.mubr.bf16.mxu0 0
        %1741 = vmatmul.mubr.bf16.gmra.mrb[0].mxu0 %v1661
        %v1742 = vpop.f32.mrb[0].mxu0
        %v1743 = vadd.f32 0.0, %v1742
        %v1744 = vpop.f32.mrb[0].mxu0
        %v1745 = vadd.f32 0.0, %v1744
        %v1746 = vpop.f32.mrb[0].mxu0
        %v1747 = vadd.f32 0.0, %v1746
        %v1748 = vpop.f32.mrb[0].mxu0
        %v1749 = vadd.f32 0.0, %v1748
        %1750 = vmatprep.mubr.bf16.mxu0 0
        %1751 = vmatmul.mubr.bf16.gmra.mrb[0].mxu0 %v1664
        %v1752 = vpop.f32.mrb[0].mxu0
        %v1753 = vadd.f32 0.0, %v1752
        %v1754 = vpop.f32.mrb[0].mxu0
        %v1755 = vadd.f32 0.0, %v1754
        %v1756 = vpop.f32.mrb[0].mxu0
        %v1757 = vadd.f32 0.0, %v1756
        %v1758 = vpop.f32.mrb[0].mxu0
        %v1759 = vadd.f32 0.0, %v1758
        %1760 = vmatprep.mubr.bf16.mxu0 0
        %1761 = vmatmul.mubr.bf16.gmra.mrb[0].mxu0 %v1667
        %v1762 = vpop.f32.mrb[0].mxu0
        %v1763 = vadd.f32 0.0, %v1762
        %v1764 = vpop.f32.mrb[0].mxu0
        %v1765 = vadd.f32 0.0, %v1764
        %v1766 = vpop.f32.mrb[0].mxu0
        %v1767 = vadd.f32 0.0, %v1766
        %v1768 = vpop.f32.mrb[0].mxu0
        %v1769 = vadd.f32 0.0, %v1768
        %1770 = vmatprep.mubr.bf16.mxu0 0
        %1771 = vmatmul.mubr.bf16.gmra.mrb[0].mxu0 %v1670
        %v1772 = vpop.f32.mrb[0].mxu0
        %v1773 = vadd.f32 0.0, %v1772
        %v1774 = vpop.f32.mrb[0].mxu0
        %v1775 = vadd.f32 0.0, %v1774
        %v1776 = vpop.f32.mrb[0].mxu0
        %v1777 = vadd.f32 0.0, %v1776
        %v1778 = vpop.f32.mrb[0].mxu0
        %v1779 = vadd.f32 0.0, %v1778
        %1780 = vmatprep.mubr.bf16.mxu0 0
        %1781 = vmatmul.mubr.bf16.gmra.mrb[0].mxu0 %v1673
        %v1782 = vpop.f32.mrb[0].mxu0
        %v1783 = vadd.f32 0.0, %v1782
        %v1784 = vpop.f32.mrb[0].mxu0
        %v1785 = vadd.f32 0.0, %v1784
        %v1786 = vpop.f32.mrb[0].mxu0
        %v1787 = vadd.f32 0.0, %v1786
        %v1788 = vpop.f32.mrb[0].mxu0
        %v1789 = vadd.f32 0.0, %v1788
        %1790 = vmatprep.mubr.bf16.mxu0 0
        %1791 = vmatmul.mubr.bf16.gmra.mrb[0].mxu0 %v1676
        %v1792 = vpop.f32.mrb[0].mxu0
        %v1793 = vadd.f32 0.0, %v1792
        %v1794 = vpop.f32.mrb[0].mxu0
        %v1795 = vadd.f32 0.0, %v1794
        %v1796 = vpop.f32.mrb[0].mxu0
        %v1797 = vadd.f32 0.0, %v1796
        %v1798 = vpop.f32.mrb[0].mxu0
        %v1799 = vadd.f32 0.0, %v1798
        %1800 = vmatprep.mubr.bf16.mxu0 0
        %1801 = vmatmul.mubr.bf16.gmra.mrb[0].mxu0 %v1679
        %v1802 = vpop.f32.mrb[0].mxu0
        %v1803 = vadd.f32 0.0, %v1802
        %v1804 = vpop.f32.mrb[0].mxu0
        %v1805 = vadd.f32 0.0, %v1804
        %v1806 = vpop.f32.mrb[0].mxu0
        %v1807 = vadd.f32 0.0, %v1806
        %v1808 = vpop.f32.mrb[0].mxu0
        %v1809 = vadd.f32 0.0, %v1808
        %1810 = vmatprep.mubr.bf16.mxu0 0
        %1811 = vmatmul.mubr.bf16.gmra.mrb[0].mxu0 %v1682
        %v1812 = vpop.f32.mrb[0].mxu0
        %v1813 = vadd.f32 0.0, %v1812
        %v1814 = vpop.f32.mrb[0].mxu0
        %v1815 = vadd.f32 0.0, %v1814
        %v1816 = vpop.f32.mrb[0].mxu0
        %v1817 = vadd.f32 0.0, %v1816
        %v1818 = vpop.f32.mrb[0].mxu0
        %v1819 = vadd.f32 0.0, %v1818
        %1820 = vmatprep.mubr.bf16.mxu0 0
        %1821 = vmatmul.mubr.bf16.gmra.mrb[0].mxu0 %v1685
        %v1822 = vpop.f32.mrb[0].mxu0
        %v1823 = vadd.f32 0.0, %v1822
        %v1824 = vpop.f32.mrb[0].mxu0
        %v1825 = vadd.f32 0.0, %v1824
        %v1826 = vpop.f32.mrb[0].mxu0
        %v1827 = vadd.f32 0.0, %v1826
        %v1828 = vpop.f32.mrb[0].mxu0
        %v1829 = vadd.f32 0.0, %v1828
        %1830 = vmatprep.mubr.bf16.mxu0 0
        %1831 = vmatmul.mubr.bf16.gmra.mrb[0].mxu0 %v1688
        %v1832 = vpop.f32.mrb[0].mxu0
        %v1833 = vadd.f32 0.0, %v1832
        %v1834 = vpop.f32.mrb[0].mxu0
        %v1835 = vadd.f32 0.0, %v1834
        %v1836 = vpop.f32.mrb[0].mxu0
        %v1837 = vadd.f32 0.0, %v1836
        %v1838 = vpop.f32.mrb[0].mxu0
        %v1839 = vadd.f32 0.0, %v1838
        %1840 = vmatprep.mubr.bf16.mxu0 0
        %1841 = vmatmul.mubr.bf16.gmra.mrb[0].mxu0 %v1691
        %v1842 = vpop.f32.mrb[0].mxu0
        %v1843 = vadd.f32 0.0, %v1842
        %v1844 = vpop.f32.mrb[0].mxu0
        %v1845 = vadd.f32 0.0, %v1844
        %v1846 = vpop.f32.mrb[0].mxu0
        %v1847 = vadd.f32 0.0, %v1846
        %v1848 = vpop.f32.mrb[0].mxu0
        %v1849 = vadd.f32 0.0, %v1848
        %1850 = vmatprep.mubr.bf16.mxu0 0
        %1851 = vmatmul.mubr.bf16.gmra.mrb[0].mxu0 %v1694
        %v1852 = vpop.f32.mrb[0].mxu0
        %v1853 = vadd.f32 0.0, %v1852
        %v1854 = vpop.f32.mrb[0].mxu0
        %v1855 = vadd.f32 0.0, %v1854
        %v1856 = vpop.f32.mrb[0].mxu0
        %v1857 = vadd.f32 0.0, %v1856
        %v1858 = vpop.f32.mrb[0].mxu0
        %v1859 = vadd.f32 0.0, %v1858
        %1860 = vmatprep.mubr.bf16.mxu0 0
        %1861 = vmatmul.mubr.bf16.gmra.mrb[0].mxu0 %v1697
        %v1862 = vpop.f32.mrb[0].mxu0
        %v1863 = vadd.f32 0.0, %v1862
        %v1864 = vpop.f32.mrb[0].mxu0
        %v1865 = vadd.f32 0.0, %v1864
        %v1866 = vpop.f32.mrb[0].mxu0
        %v1867 = vadd.f32 0.0, %v1866
        %v1868 = vpop.f32.mrb[0].mxu0
        %v1869 = vadd.f32 0.0, %v1868
        %1870 = vmatprep.mubr.bf16.mxu0 0
        %1871 = vmatmul.mubr.bf16.gmra.mrb[0].mxu0 %v1700
        %v1872 = vpop.f32.mrb[0].mxu0
        %v1873 = vadd.f32 0.0, %v1872
        %v1874 = vpop.f32.mrb[0].mxu0
        %v1875 = vadd.f32 0.0, %v1874
        %v1876 = vpop.f32.mrb[0].mxu0
        %v1877 = vadd.f32 0.0, %v1876
        %v1878 = vpop.f32.mrb[0].mxu0
        %v1879 = vadd.f32 0.0, %v1878
        %1880 = vmatprep.mubr.bf16.mxu0 0
        %1881 = vmatmul.mubr.bf16.gmra.mrb[0].mxu0 %v1703
        %v1882 = vpop.f32.mrb[0].mxu0
        %v1883 = vadd.f32 0.0, %v1882
        %v1884 = vpop.f32.mrb[0].mxu0
        %v1885 = vadd.f32 0.0, %v1884
        %v1886 = vpop.f32.mrb[0].mxu0
        %v1887 = vadd.f32 0.0, %v1886
        %v1888 = vpop.f32.mrb[0].mxu0
        %v1889 = vadd.f32 0.0, %v1888
        %1890 = vmatprep.mubr.bf16.mxu0 0
        %1891 = vmatmul.mubr.bf16.gmra.mrb[0].mxu0 %v1706
        %v1892 = vpop.f32.mrb[0].mxu0
        %v1893 = vadd.f32 0.0, %v1892
        %v1894 = vpop.f32.mrb[0].mxu0
        %v1895 = vadd.f32 0.0, %v1894
        %v1896 = vpop.f32.mrb[0].mxu0
        %v1897 = vadd.f32 0.0, %v1896
        %v1898 = vpop.f32.mrb[0].mxu0
        %v1899 = vadd.f32 0.0, %v1898
        %1900 = vdwg.mxu0
        %s1901 = scalar_lea.vmem [#allocation3], 2
        %v1902 = vld [vmem:[%s1901] sm:$0x3]
        %v1903 = vmax.f32 %v1743, %v1753
        %v1904 = vmax.f32 %v1747, %v1757
        %v1905 = vmax.f32 %v1903, %v1763
        %v1906 = vmax.f32 %v1904, %v1767
        %v1907 = vmax.f32 %v1905, %v1773
        %v1908 = vmax.f32 %v1906, %v1777
        %v1909 = vmax.f32 %v1907, %v1783
        %v1910 = vmax.f32 %v1908, %v1787
        %v1911 = vmax.f32 %v1909, %v1793
        %v1912 = vmax.f32 %v1910, %v1797
        %v1913 = vmax.f32 %v1911, %v1803
        %v1914 = vmax.f32 %v1912, %v1807
        %v1915 = vmax.f32 %v1913, %v1813
        %v1916 = vmax.f32 %v1914, %v1817
        %v1917 = vmax.f32 %v1915, %v1823
        %v1918 = vmax.f32 %v1916, %v1827
        %v1919 = vmax.f32 %v1917, %v1833
        %v1920 = vmax.f32 %v1918, %v1837
        %v1921 = vmax.f32 %v1919, %v1843
        %v1922 = vmax.f32 %v1920, %v1847
        %v1923 = vmax.f32 %v1921, %v1853
        %v1924 = vmax.f32 %v1922, %v1857
        %v1925 = vmax.f32 %v1923, %v1863
        %v1926 = vmax.f32 %v1924, %v1867
        %v1927 = vmax.f32 %v1925, %v1873
        %v1928 = vmax.f32 %v1926, %v1877
        %v1929 = vmax.f32 %v1927, %v1883
        %v1930 = vmax.f32 %v1928, %v1887
        %v1931 = vmax.f32 %v1929, %v1893
        %v1932 = vmax.f32 %v1930, %v1897
        %v1933 = vmax.f32 %v1931, %v1932
        %v1934 = vrot.slane %v1933, 4
        %v1935 = vmax.f32 %v1933, %v1934
        %v1936 = vrot.slane %v1935, 2
        %v1937 = vmax.f32 %v1935, %v1936
        %v1938 = vrot.slane %v1937, 1
        %v1939 = vmax.f32 %v1937, %v1938
        %v1940 = vmax.f32 %v1745, %v1755
        %v1941 = vmax.f32 %v1749, %v1759
        %v1942 = vmax.f32 %v1940, %v1765
        %v1943 = vmax.f32 %v1941, %v1769
        %v1944 = vmax.f32 %v1942, %v1775
        %v1945 = vmax.f32 %v1943, %v1779
        %v1946 = vmax.f32 %v1944, %v1785
        %v1947 = vmax.f32 %v1945, %v1789
        %v1948 = vmax.f32 %v1946, %v1795
        %v1949 = vmax.f32 %v1947, %v1799
        %v1950 = vmax.f32 %v1948, %v1805
        %v1951 = vmax.f32 %v1949, %v1809
        %v1952 = vmax.f32 %v1950, %v1815
        %v1953 = vmax.f32 %v1951, %v1819
        %v1954 = vmax.f32 %v1952, %v1825
        %v1955 = vmax.f32 %v1953, %v1829
        %v1956 = vmax.f32 %v1954, %v1835
        %v1957 = vmax.f32 %v1955, %v1839
        %v1958 = vmax.f32 %v1956, %v1845
        %v1959 = vmax.f32 %v1957, %v1849
        %v1960 = vmax.f32 %v1958, %v1855
        %v1961 = vmax.f32 %v1959, %v1859
        %v1962 = vmax.f32 %v1960, %v1865
        %v1963 = vmax.f32 %v1961, %v1869
        %v1964 = vmax.f32 %v1962, %v1875
        %v1965 = vmax.f32 %v1963, %v1879
        %v1966 = vmax.f32 %v1964, %v1885
        %v1967 = vmax.f32 %v1965, %v1889
        %v1968 = vmax.f32 %v1966, %v1895
        %v1969 = vmax.f32 %v1967, %v1899
        %v1970 = vmax.f32 %v1968, %v1969
        %v1971 = vrot.slane %v1970, 4
        %v1972 = vmax.f32 %v1970, %v1971
        %v1973 = vrot.slane %v1972, 2
        %v1974 = vmax.f32 %v1972, %v1973
        %v1975 = vrot.slane %v1974, 1
        %v1976 = vmax.f32 %v1974, %v1975
        %v1979 = vcombine.low %v1939, %v1976
        %v1981 = vunpack.c.l.s4 1966171168
        %v1982 = vunpack.c.0.s8 %v1981
        %v1983 = vlaneseq
        %v1984 = vshrl.u32 %v1983, 7
        %v1985 = vsub.s32 %v1982, %v1984
        %v1986 = vrot.slane %v1979, %v1985
        %v1988 = vunpack.c.l.s4 1966171168
        %v1989 = vunpack.c.0.s8 %v1988
        %v1990 = vlaneseq
        %v1991 = vshrl.u32 %v1990, 7
        %v1992 = vsub.s32 %v1989, %v1991
        %v1993 = vrot.slane %v1986, %v1992
        %v1995 = vmax.f32 %v1902, %v1993
        %v1996 = vsub.f32 %v1902, %v1995
        %v1997 = vmul.f32 %v1996, 1.442695
        %v1998 = vpow.pop %v1997
        %v2000 = vlaneseq
        %v2001 = vshrl.u32 %v2000, 7
        %v2002 = vsub.s32 0, %v2001
        %v2003 = vrot.slane %v1995, %v2002
        %v2004 = vlaneseq
        %v2005 = vshrl.u32 %v2004, 7
        %v2006 = vsub.s32 1, %v2005
        %v2007 = vrot.slane %v1995, %v2006
        %v2010 = vsub.f32 %v1743, %v2003
        %v2011 = vsub.f32 %v1745, %v2007
        %v2012 = vsub.f32 %v1747, %v2003
        %v2013 = vsub.f32 %v1749, %v2007
        %v2014 = vsub.f32 %v1753, %v2003
        %v2015 = vsub.f32 %v1755, %v2007
        %v2016 = vsub.f32 %v1757, %v2003
        %v2017 = vsub.f32 %v1759, %v2007
        %v2018 = vsub.f32 %v1763, %v2003
        %v2019 = vsub.f32 %v1765, %v2007
        %v2020 = vsub.f32 %v1767, %v2003
        %v2021 = vsub.f32 %v1769, %v2007
        %v2022 = vsub.f32 %v1773, %v2003
        %v2023 = vsub.f32 %v1775, %v2007
        %v2024 = vsub.f32 %v1777, %v2003
        %v2025 = vsub.f32 %v1779, %v2007
        %v2026 = vsub.f32 %v1783, %v2003
        %v2027 = vsub.f32 %v1785, %v2007
        %v2028 = vsub.f32 %v1787, %v2003
        %v2029 = vsub.f32 %v1789, %v2007
        %v2030 = vsub.f32 %v1793, %v2003
        %v2031 = vsub.f32 %v1795, %v2007
        %v2032 = vsub.f32 %v1797, %v2003
        %v2033 = vsub.f32 %v1799, %v2007
        %v2034 = vsub.f32 %v1803, %v2003
        %v2035 = vsub.f32 %v1805, %v2007
        %v2036 = vsub.f32 %v1807, %v2003
        %v2037 = vsub.f32 %v1809, %v2007
        %v2038 = vsub.f32 %v1813, %v2003
        %v2039 = vsub.f32 %v1815, %v2007
        %v2040 = vsub.f32 %v1817, %v2003
        %v2041 = vsub.f32 %v1819, %v2007
        %v2042 = vsub.f32 %v1823, %v2003
        %v2043 = vsub.f32 %v1825, %v2007
        %v2044 = vsub.f32 %v1827, %v2003
        %v2045 = vsub.f32 %v1829, %v2007
        %v2046 = vsub.f32 %v1833, %v2003
        %v2047 = vsub.f32 %v1835, %v2007
        %v2048 = vsub.f32 %v1837, %v2003
        %v2049 = vsub.f32 %v1839, %v2007
        %v2050 = vsub.f32 %v1843, %v2003
        %v2051 = vsub.f32 %v1845, %v2007
        %v2052 = vsub.f32 %v1847, %v2003
        %v2053 = vsub.f32 %v1849, %v2007
        %v2054 = vsub.f32 %v1853, %v2003
        %v2055 = vsub.f32 %v1855, %v2007
        %v2056 = vsub.f32 %v1857, %v2003
        %v2057 = vsub.f32 %v1859, %v2007
        %v2058 = vsub.f32 %v1863, %v2003
        %v2059 = vsub.f32 %v1865, %v2007
        %v2060 = vsub.f32 %v1867, %v2003
        %v2061 = vsub.f32 %v1869, %v2007
        %v2062 = vsub.f32 %v1873, %v2003
        %v2063 = vsub.f32 %v1875, %v2007
        %v2064 = vsub.f32 %v1877, %v2003
        %v2065 = vsub.f32 %v1879, %v2007
        %v2066 = vsub.f32 %v1883, %v2003
        %v2067 = vsub.f32 %v1885, %v2007
        %v2068 = vsub.f32 %v1887, %v2003
        %v2069 = vsub.f32 %v1889, %v2007
        %v2070 = vsub.f32 %v1893, %v2003
        %v2071 = vsub.f32 %v1895, %v2007
        %v2072 = vsub.f32 %v1897, %v2003
        %v2073 = vsub.f32 %v1899, %v2007
        %v2074 = vmul.f32 %v2010, 1.442695
        %v2075 = vpow.pop %v2074
        %v2076 = vmul.f32 %v2011, 1.442695
        %v2077 = vpow.pop %v2076
        %v2078 = vmul.f32 %v2012, 1.442695
        %v2079 = vpow.pop %v2078
        %v2080 = vmul.f32 %v2013, 1.442695
        %v2081 = vpow.pop %v2080
        %v2082 = vmul.f32 %v2014, 1.442695
        %v2083 = vpow.pop %v2082
        %v2084 = vmul.f32 %v2015, 1.442695
        %v2085 = vpow.pop %v2084
        %v2086 = vmul.f32 %v2016, 1.442695
        %v2087 = vpow.pop %v2086
        %v2088 = vmul.f32 %v2017, 1.442695
        %v2089 = vpow.pop %v2088
        %v2090 = vmul.f32 %v2018, 1.442695
        %v2091 = vpow.pop %v2090
        %v2092 = vmul.f32 %v2019, 1.442695
        %v2093 = vpow.pop %v2092
        %v2094 = vmul.f32 %v2020, 1.442695
        %v2095 = vpow.pop %v2094
        %v2096 = vmul.f32 %v2021, 1.442695
        %v2097 = vpow.pop %v2096
        %v2098 = vmul.f32 %v2022, 1.442695
        %v2099 = vpow.pop %v2098
        %v2100 = vmul.f32 %v2023, 1.442695
        %v2101 = vpow.pop %v2100
        %v2102 = vmul.f32 %v2024, 1.442695
        %v2103 = vpow.pop %v2102
        %v2104 = vmul.f32 %v2025, 1.442695
        %v2105 = vpow.pop %v2104
        %v2106 = vmul.f32 %v2026, 1.442695
        %v2107 = vpow.pop %v2106
        %v2108 = vmul.f32 %v2027, 1.442695
        %v2109 = vpow.pop %v2108
        %v2110 = vmul.f32 %v2028, 1.442695
        %v2111 = vpow.pop %v2110
        %v2112 = vmul.f32 %v2029, 1.442695
        %v2113 = vpow.pop %v2112
        %v2114 = vmul.f32 %v2030, 1.442695
        %v2115 = vpow.pop %v2114
        %v2116 = vmul.f32 %v2031, 1.442695
        %v2117 = vpow.pop %v2116
        %v2118 = vmul.f32 %v2032, 1.442695
        %v2119 = vpow.pop %v2118
        %v2120 = vmul.f32 %v2033, 1.442695
        %v2121 = vpow.pop %v2120
        %v2122 = vmul.f32 %v2034, 1.442695
        %v2123 = vpow.pop %v2122
        %v2124 = vmul.f32 %v2035, 1.442695
        %v2125 = vpow.pop %v2124
        %v2126 = vmul.f32 %v2036, 1.442695
        %v2127 = vpow.pop %v2126
        %v2128 = vmul.f32 %v2037, 1.442695
        %v2129 = vpow.pop %v2128
        %v2130 = vmul.f32 %v2038, 1.442695
        %v2131 = vpow.pop %v2130
        %v2132 = vmul.f32 %v2039, 1.442695
        %v2133 = vpow.pop %v2132
        %v2134 = vmul.f32 %v2040, 1.442695
        %v2135 = vpow.pop %v2134
        %v2136 = vmul.f32 %v2041, 1.442695
        %v2137 = vpow.pop %v2136
        %v2138 = vmul.f32 %v2042, 1.442695
        %v2139 = vpow.pop %v2138
        %v2140 = vmul.f32 %v2043, 1.442695
        %v2141 = vpow.pop %v2140
        %v2142 = vmul.f32 %v2044, 1.442695
        %v2143 = vpow.pop %v2142
        %v2144 = vmul.f32 %v2045, 1.442695
        %v2145 = vpow.pop %v2144
        %v2146 = vmul.f32 %v2046, 1.442695
        %v2147 = vpow.pop %v2146
        %v2148 = vmul.f32 %v2047, 1.442695
        %v2149 = vpow.pop %v2148
        %v2150 = vmul.f32 %v2048, 1.442695
        %v2151 = vpow.pop %v2150
        %v2152 = vmul.f32 %v2049, 1.442695
        %v2153 = vpow.pop %v2152
        %v2154 = vmul.f32 %v2050, 1.442695
        %v2155 = vpow.pop %v2154
        %v2156 = vmul.f32 %v2051, 1.442695
        %v2157 = vpow.pop %v2156
        %v2158 = vmul.f32 %v2052, 1.442695
        %v2159 = vpow.pop %v2158
        %v2160 = vmul.f32 %v2053, 1.442695
        %v2161 = vpow.pop %v2160
        %v2162 = vmul.f32 %v2054, 1.442695
        %v2163 = vpow.pop %v2162
        %v2164 = vmul.f32 %v2055, 1.442695
        %v2165 = vpow.pop %v2164
        %v2166 = vmul.f32 %v2056, 1.442695
        %v2167 = vpow.pop %v2166
        %v2168 = vmul.f32 %v2057, 1.442695
        %v2169 = vpow.pop %v2168
        %v2170 = vmul.f32 %v2058, 1.442695
        %v2171 = vpow.pop %v2170
        %v2172 = vmul.f32 %v2059, 1.442695
        %v2173 = vpow.pop %v2172
        %v2174 = vmul.f32 %v2060, 1.442695
        %v2175 = vpow.pop %v2174
        %v2176 = vmul.f32 %v2061, 1.442695
        %v2177 = vpow.pop %v2176
        %v2178 = vmul.f32 %v2062, 1.442695
        %v2179 = vpow.pop %v2178
        %v2180 = vmul.f32 %v2063, 1.442695
        %v2181 = vpow.pop %v2180
        %v2182 = vmul.f32 %v2064, 1.442695
        %v2183 = vpow.pop %v2182
        %v2184 = vmul.f32 %v2065, 1.442695
        %v2185 = vpow.pop %v2184
        %v2186 = vmul.f32 %v2066, 1.442695
        %v2187 = vpow.pop %v2186
        %v2188 = vmul.f32 %v2067, 1.442695
        %v2189 = vpow.pop %v2188
        %v2190 = vmul.f32 %v2068, 1.442695
        %v2191 = vpow.pop %v2190
        %v2192 = vmul.f32 %v2069, 1.442695
        %v2193 = vpow.pop %v2192
        %v2194 = vmul.f32 %v2070, 1.442695
        %v2195 = vpow.pop %v2194
        %v2196 = vmul.f32 %v2071, 1.442695
        %v2197 = vpow.pop %v2196
        %v2198 = vmul.f32 %v2072, 1.442695
        %v2199 = vpow.pop %v2198
        %v2200 = vmul.f32 %v2073, 1.442695
        %v2201 = vpow.pop %v2200
        %s2202 = scalar_lea.vmem [#allocation4], 2
        %v2203 = vld [vmem:[%s2202] sm:$0x3]
        %v2204 = vmul.f32 %v1998, %v2203
        %v2205 = vadd.f32 %v2075, %v2079
        %v2206 = vadd.f32 %v2205, %v2083
        %v2207 = vadd.f32 %v2206, %v2087
        %v2208 = vadd.f32 %v2207, %v2091
        %v2209 = vadd.f32 %v2208, %v2095
        %v2210 = vadd.f32 %v2209, %v2099
        %v2211 = vadd.f32 %v2210, %v2103
        %v2212 = vadd.f32 %v2211, %v2107
        %v2213 = vadd.f32 %v2212, %v2111
        %v2214 = vadd.f32 %v2213, %v2115
        %v2215 = vadd.f32 %v2214, %v2119
        %v2216 = vadd.f32 %v2215, %v2123
        %v2217 = vadd.f32 %v2216, %v2127
        %v2218 = vadd.f32 %v2217, %v2131
        %v2219 = vadd.f32 %v2218, %v2135
        %v2220 = vadd.f32 %v2219, %v2139
        %v2221 = vadd.f32 %v2220, %v2143
        %v2222 = vadd.f32 %v2221, %v2147
        %v2223 = vadd.f32 %v2222, %v2151
        %v2224 = vadd.f32 %v2223, %v2155
        %v2225 = vadd.f32 %v2224, %v2159
        %v2226 = vadd.f32 %v2225, %v2163
        %v2227 = vadd.f32 %v2226, %v2167
        %v2228 = vadd.f32 %v2227, %v2171
        %v2229 = vadd.f32 %v2228, %v2175
        %v2230 = vadd.f32 %v2229, %v2179
        %v2231 = vadd.f32 %v2230, %v2183
        %v2232 = vadd.f32 %v2231, %v2187
        %v2233 = vadd.f32 %v2232, %v2191
        %v2234 = vadd.f32 %v2233, %v2195
        %v2235 = vadd.f32 %v2234, %v2199
        %v2236 = vrot.slane %v2235, 4
        %v2237 = vadd.f32 %v2235, %v2236
        %v2238 = vrot.slane %v2237, 2
        %v2239 = vadd.f32 %v2237, %v2238
        %v2240 = vrot.slane %v2239, 1
        %v2241 = vadd.f32 %v2239, %v2240
        %v2242 = vadd.f32 %v2077, %v2081
        %v2243 = vadd.f32 %v2242, %v2085
        %v2244 = vadd.f32 %v2243, %v2089
        %v2245 = vadd.f32 %v2244, %v2093
        %v2246 = vadd.f32 %v2245, %v2097
        %v2247 = vadd.f32 %v2246, %v2101
        %v2248 = vadd.f32 %v2247, %v2105
        %v2249 = vadd.f32 %v2248, %v2109
        %v2250 = vadd.f32 %v2249, %v2113
        %v2251 = vadd.f32 %v2250, %v2117
        %v2252 = vadd.f32 %v2251, %v2121
        %v2253 = vadd.f32 %v2252, %v2125
        %v2254 = vadd.f32 %v2253, %v2129
        %v2255 = vadd.f32 %v2254, %v2133
        %v2256 = vadd.f32 %v2255, %v2137
        %v2257 = vadd.f32 %v2256, %v2141
        %v2258 = vadd.f32 %v2257, %v2145
        %v2259 = vadd.f32 %v2258, %v2149
        %v2260 = vadd.f32 %v2259, %v2153
        %v2261 = vadd.f32 %v2260, %v2157
        %v2262 = vadd.f32 %v2261, %v2161
        %v2263 = vadd.f32 %v2262, %v2165
        %v2264 = vadd.f32 %v2263, %v2169
        %v2265 = vadd.f32 %v2264, %v2173
        %v2266 = vadd.f32 %v2265, %v2177
        %v2267 = vadd.f32 %v2266, %v2181
        %v2268 = vadd.f32 %v2267, %v2185
        %v2269 = vadd.f32 %v2268, %v2189
        %v2270 = vadd.f32 %v2269, %v2193
        %v2271 = vadd.f32 %v2270, %v2197
        %v2272 = vadd.f32 %v2271, %v2201
        %v2273 = vrot.slane %v2272, 4
        %v2274 = vadd.f32 %v2272, %v2273
        %v2275 = vrot.slane %v2274, 2
        %v2276 = vadd.f32 %v2274, %v2275
        %v2277 = vrot.slane %v2276, 1
        %v2278 = vadd.f32 %v2276, %v2277
        %v2281 = vcombine.low %v2241, %v2278
        %v2283 = vunpack.c.l.s4 1966171168
        %v2284 = vunpack.c.0.s8 %v2283
        %v2285 = vlaneseq
        %v2286 = vshrl.u32 %v2285, 7
        %v2287 = vsub.s32 %v2284, %v2286
        %v2288 = vrot.slane %v2281, %v2287
        %v2290 = vunpack.c.l.s4 1966171168
        %v2291 = vunpack.c.0.s8 %v2290
        %v2292 = vlaneseq
        %v2293 = vshrl.u32 %v2292, 7
        %v2294 = vsub.s32 %v2291, %v2293
        %v2295 = vrot.slane %v2288, %v2294
        %v2297 = vadd.f32 %v2204, %v2295
        %2298 = vst.msk [vmem:[%s2202] sm:$0x3] %vm1523, %v2297
        %s2299 = scalar_lea.vmem [#allocation5], 32
        %v2300 = vld [vmem:[%s2299] sm:$0xff]
        %v2301 = vld [vmem:[%s2299 + $0x8] sm:$0xff]
        %v2302 = vld [vmem:[%s2299 + $0x10] sm:$0xff]
        %v2303 = vld [vmem:[%s2299 + $0x18] sm:$0xff]
        %v2305 = vlaneseq
        %v2306 = vshrl.u32 %v2305, 7
        %v2307 = vsub.s32 0, %v2306
        %v2308 = vrot.slane %v1998, %v2307
        %v2309 = vlaneseq
        %v2310 = vshrl.u32 %v2309, 7
        %v2311 = vsub.s32 1, %v2310
        %v2312 = vrot.slane %v1998, %v2311
        %v2315 = vmul.f32 %v2308, %v2300
        %v2316 = vmul.f32 %v2312, %v2301
        %v2317 = vmul.f32 %v2308, %v2302
        %v2318 = vmul.f32 %v2312, %v2303
        %v2319 = vpack.c.bf16 %v2079, %v2075
        %v2320 = vpack.c.bf16 %v2081, %v2077
        %v2321 = vpack.c.bf16 %v2087, %v2083
        %v2322 = vpack.c.bf16 %v2089, %v2085
        %v2323 = vpack.c.bf16 %v2095, %v2091
        %v2324 = vpack.c.bf16 %v2097, %v2093
        %v2325 = vpack.c.bf16 %v2103, %v2099
        %v2326 = vpack.c.bf16 %v2105, %v2101
        %v2327 = vpack.c.bf16 %v2111, %v2107
        %v2328 = vpack.c.bf16 %v2113, %v2109
        %v2329 = vpack.c.bf16 %v2119, %v2115
        %v2330 = vpack.c.bf16 %v2121, %v2117
        %v2331 = vpack.c.bf16 %v2127, %v2123
        %v2332 = vpack.c.bf16 %v2129, %v2125
        %v2333 = vpack.c.bf16 %v2135, %v2131
        %v2334 = vpack.c.bf16 %v2137, %v2133
        %v2335 = vpack.c.bf16 %v2143, %v2139
        %v2336 = vpack.c.bf16 %v2145, %v2141
        %v2337 = vpack.c.bf16 %v2151, %v2147
        %v2338 = vpack.c.bf16 %v2153, %v2149
        %v2339 = vpack.c.bf16 %v2159, %v2155
        %v2340 = vpack.c.bf16 %v2161, %v2157
        %v2341 = vpack.c.bf16 %v2167, %v2163
        %v2342 = vpack.c.bf16 %v2169, %v2165
        %v2343 = vpack.c.bf16 %v2175, %v2171
        %v2344 = vpack.c.bf16 %v2177, %v2173
        %v2345 = vpack.c.bf16 %v2183, %v2179
        %v2346 = vpack.c.bf16 %v2185, %v2181
        %v2347 = vpack.c.bf16 %v2191, %v2187
        %v2348 = vpack.c.bf16 %v2193, %v2189
        %v2349 = vpack.c.bf16 %v2199, %v2195
        %v2350 = vpack.c.bf16 %v2201, %v2197
        %2351 = vmatprep.subr.bf16.mxu0 %v2320
        %2352 = vmatpush1.bf16.msra.mxu0 %v2319
        %2353 = vmatprep.subr.bf16.mxu0 %v2322
        %2354 = vmatpush1.bf16.msra.mxu0 %v2321
        %2355 = vmatprep.subr.bf16.mxu0 %v2324
        %2356 = vmatpush1.bf16.msra.mxu0 %v2323
        %2357 = vmatprep.subr.bf16.mxu0 %v2326
        %2358 = vmatpush1.bf16.msra.mxu0 %v2325
        %2359 = vmatprep.subr.bf16.mxu0 %v2328
        %2360 = vmatpush1.bf16.msra.mxu0 %v2327
        %2361 = vmatprep.subr.bf16.mxu0 %v2330
        %2362 = vmatpush1.bf16.msra.mxu0 %v2329
        %2363 = vmatprep.subr.bf16.mxu0 %v2332
        %2364 = vmatpush1.bf16.msra.mxu0 %v2331
        %2365 = vmatprep.subr.bf16.mxu0 %v2334
        %2366 = vmatpush1.bf16.msra.mxu0 %v2333
        %2367 = vmatprep.subr.bf16.mxu0 %v2336
        %2368 = vmatpush1.bf16.msra.mxu0 %v2335
        %2369 = vmatprep.subr.bf16.mxu0 %v2338
        %2370 = vmatpush1.bf16.msra.mxu0 %v2337
        %2371 = vmatprep.subr.bf16.mxu0 %v2340
        %2372 = vmatpush1.bf16.msra.mxu0 %v2339
        %2373 = vmatprep.subr.bf16.mxu0 %v2342
        %2374 = vmatpush1.bf16.msra.mxu0 %v2341
        %2375 = vmatprep.subr.bf16.mxu0 %v2344
        %2376 = vmatpush1.bf16.msra.mxu0 %v2343
        %2377 = vmatprep.subr.bf16.mxu0 %v2346
        %2378 = vmatpush1.bf16.msra.mxu0 %v2345
        %2379 = vmatprep.subr.bf16.mxu0 %v2348
        %2380 = vmatpush1.bf16.msra.mxu0 %v2347
        %2381 = vmatprep.subr.bf16.mxu0 %v2350
        %2382 = vmatpush1.bf16.msra.mxu0 %v2349
        %2383 = vmatprep.mubr.bf16.mxu0 %v838
        %2384 = vmatmul.mubr.bf16.gmra.mrb[0].mxu0 %v837
        %v2385 = vpop.f32.mrb[0].mxu0
        %v2386 = vadd.f32 0.0, %v2385
        %v2387 = vpop.f32.mrb[0].mxu0
        %v2388 = vadd.f32 0.0, %v2387
        %v2389 = vpop.f32.mrb[0].mxu0
        %v2390 = vadd.f32 0.0, %v2389
        %v2391 = vpop.f32.mrb[0].mxu0
        %v2392 = vadd.f32 0.0, %v2391
        %2393 = vdwg.mxu0
        %v2394 = vadd.f32 %v2315, %v2386
        %v2395 = vadd.f32 %v2316, %v2388
        %v2396 = vadd.f32 %v2317, %v2390
        %v2397 = vadd.f32 %v2318, %v2392
        %2398 = vst [vmem:[%s2299] sm:$0xff] %v2394
        %2399 = vst [vmem:[%s2299 + $0x8] sm:$0xff] %v2395
        %2400 = vst [vmem:[%s2299 + $0x10] sm:$0xff] %v2396
        %2401 = vst [vmem:[%s2299 + $0x18] sm:$0xff] %v2397
        %2402 = vst.msk [vmem:[%s1901] sm:$0x3] %vm1523, %v1995
        %2403 = vxpose.xlu0.c.b16.start [1/8] %v831, 128
        %2404 = vxpose.xlu0.c.b16.cont [2/8] 0, 128
        %2405 = vxpose.xlu0.c.b16.cont [3/8] 0, 128
        %2406 = vxpose.xlu0.c.b16.cont [4/8] 0, 128
        %2407 = vxpose.xlu0.c.b16.cont [5/8] 0, 128
        %2408 = vxpose.xlu0.c.b16.cont [6/8] 0, 128
        %2409 = vxpose.xlu0.c.b16.cont [7/8] 0, 128
        %2410 = vxpose.xlu0.c.b16.end [8/8] 0, 128
        %v2411 = vpop.trf.xlu0
        %v2412 = vpop.trf.xlu0
        %v2413 = vpop.trf.xlu0
        %v2414 = vpop.trf.xlu0
        %v2415 = vpop.trf.xlu0
        %v2416 = vpop.trf.xlu0
        %v2417 = vpop.trf.xlu0
        %v2418 = vpop.trf.xlu0
        %2419 = vxpose.xlu0.c.b16.start [1/8] %v832, 128
        %2420 = vxpose.xlu0.c.b16.cont [2/8] 0, 128
        %2421 = vxpose.xlu0.c.b16.cont [3/8] 0, 128
        %2422 = vxpose.xlu0.c.b16.cont [4/8] 0, 128
        %2423 = vxpose.xlu0.c.b16.cont [5/8] 0, 128
        %2424 = vxpose.xlu0.c.b16.cont [6/8] 0, 128
        %2425 = vxpose.xlu0.c.b16.cont [7/8] 0, 128
        %2426 = vxpose.xlu0.c.b16.end [8/8] 0, 128
        %v2427 = vpop.trf.xlu0
        %v2428 = vpop.trf.xlu0
        %v2429 = vpop.trf.xlu0
        %v2430 = vpop.trf.xlu0
        %v2431 = vpop.trf.xlu0
        %v2432 = vpop.trf.xlu0
        %v2433 = vpop.trf.xlu0
        %v2434 = vpop.trf.xlu0
        %v2436 = vsel %vm883, %v2411, 0
        %v2439 = vsel %vm883, %v2412, 0
        %v2442 = vsel %vm883, %v2413, 0
        %v2445 = vsel %vm883, %v2414, 0
        %v2448 = vsel %vm883, %v2415, 0
        %v2451 = vsel %vm883, %v2416, 0
        %v2454 = vsel %vm883, %v2417, 0
        %v2457 = vsel %vm883, %v2418, 0
        %v2460 = vsel %vm883, %v2427, 0
        %v2463 = vsel %vm883, %v2428, 0
        %v2466 = vsel %vm883, %v2429, 0
        %v2469 = vsel %vm883, %v2430, 0
        %v2472 = vsel %vm883, %v2431, 0
        %v2475 = vsel %vm883, %v2432, 0
        %v2478 = vsel %vm883, %v2433, 0
        %v2481 = vsel %vm883, %v2434, 0
        %2483 = vmatprep.subr.bf16.mxu0 %v848
        %2484 = vmatpush1.bf16.msra.mxu0 %v847
        %2485 = vmatprep.subr.bf16.mxu0 0
        %2486 = vmatpush1.bf16.msra.mxu0 0
        %2487 = vmatprep.subr.bf16.mxu0 0
        %2488 = vmatpush1.bf16.msra.mxu0 0
        %2489 = vmatprep.subr.bf16.mxu0 0
        %2490 = vmatpush1.bf16.msra.mxu0 0
        %2491 = vmatprep.subr.bf16.mxu0 0
        %2492 = vmatpush1.bf16.msra.mxu0 0
        %2493 = vmatprep.subr.bf16.mxu0 0
        %2494 = vmatpush1.bf16.msra.mxu0 0
        %2495 = vmatprep.subr.bf16.mxu0 0
        %2496 = vmatpush1.bf16.msra.mxu0 0
        %2497 = vmatprep.subr.bf16.mxu0 0
        %2498 = vmatpush1.bf16.msra.mxu0 0
        %2499 = vmatprep.subr.bf16.mxu0 0
        %2500 = vmatpush1.bf16.msra.mxu0 0
        %2501 = vmatprep.subr.bf16.mxu0 0
        %2502 = vmatpush1.bf16.msra.mxu0 0
        %2503 = vmatprep.subr.bf16.mxu0 0
        %2504 = vmatpush1.bf16.msra.mxu0 0
        %2505 = vmatprep.subr.bf16.mxu0 0
        %2506 = vmatpush1.bf16.msra.mxu0 0
        %2507 = vmatprep.subr.bf16.mxu0 0
        %2508 = vmatpush1.bf16.msra.mxu0 0
        %2509 = vmatprep.subr.bf16.mxu0 0
        %2510 = vmatpush1.bf16.msra.mxu0 0
        %2511 = vmatprep.subr.bf16.mxu0 0
        %2512 = vmatpush1.bf16.msra.mxu0 0
        %2513 = vmatprep.subr.bf16.mxu0 0
        %2514 = vmatpush1.bf16.msra.mxu0 0
        %2515 = vmatprep.mubr.bf16.mxu0 0
        %2516 = vmatmul.mubr.bf16.gmra.mrb[0].mxu0 %v2436
        %v2517 = vpop.f32.mrb[0].mxu0
        %v2518 = vadd.f32 0.0, %v2517
        %v2519 = vpop.f32.mrb[0].mxu0
        %v2520 = vadd.f32 0.0, %v2519
        %v2521 = vpop.f32.mrb[0].mxu0
        %v2522 = vadd.f32 0.0, %v2521
        %v2523 = vpop.f32.mrb[0].mxu0
        %v2524 = vadd.f32 0.0, %v2523
        %2525 = vmatprep.mubr.bf16.mxu0 0
        %2526 = vmatmul.mubr.bf16.gmra.mrb[0].mxu0 %v2439
        %v2527 = vpop.f32.mrb[0].mxu0
        %v2528 = vadd.f32 0.0, %v2527
        %v2529 = vpop.f32.mrb[0].mxu0
        %v2530 = vadd.f32 0.0, %v2529
        %v2531 = vpop.f32.mrb[0].mxu0
        %v2532 = vadd.f32 0.0, %v2531
        %v2533 = vpop.f32.mrb[0].mxu0
        %v2534 = vadd.f32 0.0, %v2533
        %2535 = vmatprep.mubr.bf16.mxu0 0
        %2536 = vmatmul.mubr.bf16.gmra.mrb[0].mxu0 %v2442
        %v2537 = vpop.f32.mrb[0].mxu0
        %v2538 = vadd.f32 0.0, %v2537
        %v2539 = vpop.f32.mrb[0].mxu0
        %v2540 = vadd.f32 0.0, %v2539
        %v2541 = vpop.f32.mrb[0].mxu0
        %v2542 = vadd.f32 0.0, %v2541
        %v2543 = vpop.f32.mrb[0].mxu0
        %v2544 = vadd.f32 0.0, %v2543
        %2545 = vmatprep.mubr.bf16.mxu0 0
        %2546 = vmatmul.mubr.bf16.gmra.mrb[0].mxu0 %v2445
        %v2547 = vpop.f32.mrb[0].mxu0
        %v2548 = vadd.f32 0.0, %v2547
        %v2549 = vpop.f32.mrb[0].mxu0
        %v2550 = vadd.f32 0.0, %v2549
        %v2551 = vpop.f32.mrb[0].mxu0
        %v2552 = vadd.f32 0.0, %v2551
        %v2553 = vpop.f32.mrb[0].mxu0
        %v2554 = vadd.f32 0.0, %v2553
        %2555 = vmatprep.mubr.bf16.mxu0 0
        %2556 = vmatmul.mubr.bf16.gmra.mrb[0].mxu0 %v2448
        %v2557 = vpop.f32.mrb[0].mxu0
        %v2558 = vadd.f32 0.0, %v2557
        %v2559 = vpop.f32.mrb[0].mxu0
        %v2560 = vadd.f32 0.0, %v2559
        %v2561 = vpop.f32.mrb[0].mxu0
        %v2562 = vadd.f32 0.0, %v2561
        %v2563 = vpop.f32.mrb[0].mxu0
        %v2564 = vadd.f32 0.0, %v2563
        %2565 = vmatprep.mubr.bf16.mxu0 0
        %2566 = vmatmul.mubr.bf16.gmra.mrb[0].mxu0 %v2451
        %v2567 = vpop.f32.mrb[0].mxu0
        %v2568 = vadd.f32 0.0, %v2567
        %v2569 = vpop.f32.mrb[0].mxu0
        %v2570 = vadd.f32 0.0, %v2569
        %v2571 = vpop.f32.mrb[0].mxu0
        %v2572 = vadd.f32 0.0, %v2571
        %v2573 = vpop.f32.mrb[0].mxu0
        %v2574 = vadd.f32 0.0, %v2573
        %2575 = vmatprep.mubr.bf16.mxu0 0
        %2576 = vmatmul.mubr.bf16.gmra.mrb[0].mxu0 %v2454
        %v2577 = vpop.f32.mrb[0].mxu0
        %v2578 = vadd.f32 0.0, %v2577
        %v2579 = vpop.f32.mrb[0].mxu0
        %v2580 = vadd.f32 0.0, %v2579
        %v2581 = vpop.f32.mrb[0].mxu0
        %v2582 = vadd.f32 0.0, %v2581
        %v2583 = vpop.f32.mrb[0].mxu0
        %v2584 = vadd.f32 0.0, %v2583
        %2585 = vmatprep.mubr.bf16.mxu0 0
        %2586 = vmatmul.mubr.bf16.gmra.mrb[0].mxu0 %v2457
        %v2587 = vpop.f32.mrb[0].mxu0
        %v2588 = vadd.f32 0.0, %v2587
        %v2589 = vpop.f32.mrb[0].mxu0
        %v2590 = vadd.f32 0.0, %v2589
        %v2591 = vpop.f32.mrb[0].mxu0
        %v2592 = vadd.f32 0.0, %v2591
        %v2593 = vpop.f32.mrb[0].mxu0
        %v2594 = vadd.f32 0.0, %v2593
        %2595 = vmatprep.mubr.bf16.mxu0 0
        %2596 = vmatmul.mubr.bf16.gmra.mrb[0].mxu0 %v2460
        %v2597 = vpop.f32.mrb[0].mxu0
        %v2598 = vadd.f32 0.0, %v2597
        %v2599 = vpop.f32.mrb[0].mxu0
        %v2600 = vadd.f32 0.0, %v2599
        %v2601 = vpop.f32.mrb[0].mxu0
        %v2602 = vadd.f32 0.0, %v2601
        %v2603 = vpop.f32.mrb[0].mxu0
        %v2604 = vadd.f32 0.0, %v2603
        %2605 = vmatprep.mubr.bf16.mxu0 0
        %2606 = vmatmul.mubr.bf16.gmra.mrb[0].mxu0 %v2463
        %v2607 = vpop.f32.mrb[0].mxu0
        %v2608 = vadd.f32 0.0, %v2607
        %v2609 = vpop.f32.mrb[0].mxu0
        %v2610 = vadd.f32 0.0, %v2609
        %v2611 = vpop.f32.mrb[0].mxu0
        %v2612 = vadd.f32 0.0, %v2611
        %v2613 = vpop.f32.mrb[0].mxu0
        %v2614 = vadd.f32 0.0, %v2613
        %2615 = vmatprep.mubr.bf16.mxu0 0
        %2616 = vmatmul.mubr.bf16.gmra.mrb[0].mxu0 %v2466
        %v2617 = vpop.f32.mrb[0].mxu0
        %v2618 = vadd.f32 0.0, %v2617
        %v2619 = vpop.f32.mrb[0].mxu0
        %v2620 = vadd.f32 0.0, %v2619
        %v2621 = vpop.f32.mrb[0].mxu0
        %v2622 = vadd.f32 0.0, %v2621
        %v2623 = vpop.f32.mrb[0].mxu0
        %v2624 = vadd.f32 0.0, %v2623
        %2625 = vmatprep.mubr.bf16.mxu0 0
        %2626 = vmatmul.mubr.bf16.gmra.mrb[0].mxu0 %v2469
        %v2627 = vpop.f32.mrb[0].mxu0
        %v2628 = vadd.f32 0.0, %v2627
        %v2629 = vpop.f32.mrb[0].mxu0
        %v2630 = vadd.f32 0.0, %v2629
        %v2631 = vpop.f32.mrb[0].mxu0
        %v2632 = vadd.f32 0.0, %v2631
        %v2633 = vpop.f32.mrb[0].mxu0
        %v2634 = vadd.f32 0.0, %v2633
        %2635 = vmatprep.mubr.bf16.mxu0 0
        %2636 = vmatmul.mubr.bf16.gmra.mrb[0].mxu0 %v2472
        %v2637 = vpop.f32.mrb[0].mxu0
        %v2638 = vadd.f32 0.0, %v2637
        %v2639 = vpop.f32.mrb[0].mxu0
        %v2640 = vadd.f32 0.0, %v2639
        %v2641 = vpop.f32.mrb[0].mxu0
        %v2642 = vadd.f32 0.0, %v2641
        %v2643 = vpop.f32.mrb[0].mxu0
        %v2644 = vadd.f32 0.0, %v2643
        %2645 = vmatprep.mubr.bf16.mxu0 0
        %2646 = vmatmul.mubr.bf16.gmra.mrb[0].mxu0 %v2475
        %v2647 = vpop.f32.mrb[0].mxu0
        %v2648 = vadd.f32 0.0, %v2647
        %v2649 = vpop.f32.mrb[0].mxu0
        %v2650 = vadd.f32 0.0, %v2649
        %v2651 = vpop.f32.mrb[0].mxu0
        %v2652 = vadd.f32 0.0, %v2651
        %v2653 = vpop.f32.mrb[0].mxu0
        %v2654 = vadd.f32 0.0, %v2653
        %2655 = vmatprep.mubr.bf16.mxu0 0
        %2656 = vmatmul.mubr.bf16.gmra.mrb[0].mxu0 %v2478
        %v2657 = vpop.f32.mrb[0].mxu0
        %v2658 = vadd.f32 0.0, %v2657
        %v2659 = vpop.f32.mrb[0].mxu0
        %v2660 = vadd.f32 0.0, %v2659
        %v2661 = vpop.f32.mrb[0].mxu0
        %v2662 = vadd.f32 0.0, %v2661
        %v2663 = vpop.f32.mrb[0].mxu0
        %v2664 = vadd.f32 0.0, %v2663
        %2665 = vmatprep.mubr.bf16.mxu0 0
        %2666 = vmatmul.mubr.bf16.gmra.mrb[0].mxu0 %v2481
        %v2667 = vpop.f32.mrb[0].mxu0
        %v2668 = vadd.f32 0.0, %v2667
        %v2669 = vpop.f32.mrb[0].mxu0
        %v2670 = vadd.f32 0.0, %v2669
        %v2671 = vpop.f32.mrb[0].mxu0
        %v2672 = vadd.f32 0.0, %v2671
        %v2673 = vpop.f32.mrb[0].mxu0
        %v2674 = vadd.f32 0.0, %v2673
        %2675 = vdwg.mxu0
        %s2676 = scalar_lea.vmem [#allocation3], 4
        %v2677 = vld [vmem:[%s2676] sm:$0x3]
        %v2678 = vmax.f32 %v2518, %v2528
        %v2679 = vmax.f32 %v2522, %v2532
        %v2680 = vmax.f32 %v2678, %v2538
        %v2681 = vmax.f32 %v2679, %v2542
        %v2682 = vmax.f32 %v2680, %v2548
        %v2683 = vmax.f32 %v2681, %v2552
        %v2684 = vmax.f32 %v2682, %v2558
        %v2685 = vmax.f32 %v2683, %v2562
        %v2686 = vmax.f32 %v2684, %v2568
        %v2687 = vmax.f32 %v2685, %v2572
        %v2688 = vmax.f32 %v2686, %v2578
        %v2689 = vmax.f32 %v2687, %v2582
        %v2690 = vmax.f32 %v2688, %v2588
        %v2691 = vmax.f32 %v2689, %v2592
        %v2692 = vmax.f32 %v2690, %v2598
        %v2693 = vmax.f32 %v2691, %v2602
        %v2694 = vmax.f32 %v2692, %v2608
        %v2695 = vmax.f32 %v2693, %v2612
        %v2696 = vmax.f32 %v2694, %v2618
        %v2697 = vmax.f32 %v2695, %v2622
        %v2698 = vmax.f32 %v2696, %v2628
        %v2699 = vmax.f32 %v2697, %v2632
        %v2700 = vmax.f32 %v2698, %v2638
        %v2701 = vmax.f32 %v2699, %v2642
        %v2702 = vmax.f32 %v2700, %v2648
        %v2703 = vmax.f32 %v2701, %v2652
        %v2704 = vmax.f32 %v2702, %v2658
        %v2705 = vmax.f32 %v2703, %v2662
        %v2706 = vmax.f32 %v2704, %v2668
        %v2707 = vmax.f32 %v2705, %v2672
        %v2708 = vmax.f32 %v2706, %v2707
        %v2709 = vrot.slane %v2708, 4
        %v2710 = vmax.f32 %v2708, %v2709
        %v2711 = vrot.slane %v2710, 2
        %v2712 = vmax.f32 %v2710, %v2711
        %v2713 = vrot.slane %v2712, 1
        %v2714 = vmax.f32 %v2712, %v2713
        %v2715 = vmax.f32 %v2520, %v2530
        %v2716 = vmax.f32 %v2524, %v2534
        %v2717 = vmax.f32 %v2715, %v2540
        %v2718 = vmax.f32 %v2716, %v2544
        %v2719 = vmax.f32 %v2717, %v2550
        %v2720 = vmax.f32 %v2718, %v2554
        %v2721 = vmax.f32 %v2719, %v2560
        %v2722 = vmax.f32 %v2720, %v2564
        %v2723 = vmax.f32 %v2721, %v2570
        %v2724 = vmax.f32 %v2722, %v2574
        %v2725 = vmax.f32 %v2723, %v2580
        %v2726 = vmax.f32 %v2724, %v2584
        %v2727 = vmax.f32 %v2725, %v2590
        %v2728 = vmax.f32 %v2726, %v2594
        %v2729 = vmax.f32 %v2727, %v2600
        %v2730 = vmax.f32 %v2728, %v2604
        %v2731 = vmax.f32 %v2729, %v2610
        %v2732 = vmax.f32 %v2730, %v2614
        %v2733 = vmax.f32 %v2731, %v2620
        %v2734 = vmax.f32 %v2732, %v2624
        %v2735 = vmax.f32 %v2733, %v2630
        %v2736 = vmax.f32 %v2734, %v2634
        %v2737 = vmax.f32 %v2735, %v2640
        %v2738 = vmax.f32 %v2736, %v2644
        %v2739 = vmax.f32 %v2737, %v2650
        %v2740 = vmax.f32 %v2738, %v2654
        %v2741 = vmax.f32 %v2739, %v2660
        %v2742 = vmax.f32 %v2740, %v2664
        %v2743 = vmax.f32 %v2741, %v2670
        %v2744 = vmax.f32 %v2742, %v2674
        %v2745 = vmax.f32 %v2743, %v2744
        %v2746 = vrot.slane %v2745, 4
        %v2747 = vmax.f32 %v2745, %v2746
        %v2748 = vrot.slane %v2747, 2
        %v2749 = vmax.f32 %v2747, %v2748
        %v2750 = vrot.slane %v2749, 1
        %v2751 = vmax.f32 %v2749, %v2750
        %v2754 = vcombine.low %v2714, %v2751
        %v2756 = vunpack.c.l.s4 1966171168
        %v2757 = vunpack.c.0.s8 %v2756
        %v2758 = vlaneseq
        %v2759 = vshrl.u32 %v2758, 7
        %v2760 = vsub.s32 %v2757, %v2759
        %v2761 = vrot.slane %v2754, %v2760
        %v2763 = vunpack.c.l.s4 1966171168
        %v2764 = vunpack.c.0.s8 %v2763
        %v2765 = vlaneseq
        %v2766 = vshrl.u32 %v2765, 7
        %v2767 = vsub.s32 %v2764, %v2766
        %v2768 = vrot.slane %v2761, %v2767
        %v2770 = vmax.f32 %v2677, %v2768
        %v2771 = vsub.f32 %v2677, %v2770
        %v2772 = vmul.f32 %v2771, 1.442695
        %v2773 = vpow.pop %v2772
        %v2775 = vlaneseq
        %v2776 = vshrl.u32 %v2775, 7
        %v2777 = vsub.s32 0, %v2776
        %v2778 = vrot.slane %v2770, %v2777
        %v2779 = vlaneseq
        %v2780 = vshrl.u32 %v2779, 7
        %v2781 = vsub.s32 1, %v2780
        %v2782 = vrot.slane %v2770, %v2781
        %v2785 = vsub.f32 %v2518, %v2778
        %v2786 = vsub.f32 %v2520, %v2782
        %v2787 = vsub.f32 %v2522, %v2778
        %v2788 = vsub.f32 %v2524, %v2782
        %v2789 = vsub.f32 %v2528, %v2778
        %v2790 = vsub.f32 %v2530, %v2782
        %v2791 = vsub.f32 %v2532, %v2778
        %v2792 = vsub.f32 %v2534, %v2782
        %v2793 = vsub.f32 %v2538, %v2778
        %v2794 = vsub.f32 %v2540, %v2782
        %v2795 = vsub.f32 %v2542, %v2778
        %v2796 = vsub.f32 %v2544, %v2782
        %v2797 = vsub.f32 %v2548, %v2778
        %v2798 = vsub.f32 %v2550, %v2782
        %v2799 = vsub.f32 %v2552, %v2778
        %v2800 = vsub.f32 %v2554, %v2782
        %v2801 = vsub.f32 %v2558, %v2778
        %v2802 = vsub.f32 %v2560, %v2782
        %v2803 = vsub.f32 %v2562, %v2778
        %v2804 = vsub.f32 %v2564, %v2782
        %v2805 = vsub.f32 %v2568, %v2778
        %v2806 = vsub.f32 %v2570, %v2782
        %v2807 = vsub.f32 %v2572, %v2778
        %v2808 = vsub.f32 %v2574, %v2782
        %v2809 = vsub.f32 %v2578, %v2778
        %v2810 = vsub.f32 %v2580, %v2782
        %v2811 = vsub.f32 %v2582, %v2778
        %v2812 = vsub.f32 %v2584, %v2782
        %v2813 = vsub.f32 %v2588, %v2778
        %v2814 = vsub.f32 %v2590, %v2782
        %v2815 = vsub.f32 %v2592, %v2778
        %v2816 = vsub.f32 %v2594, %v2782
        %v2817 = vsub.f32 %v2598, %v2778
        %v2818 = vsub.f32 %v2600, %v2782
        %v2819 = vsub.f32 %v2602, %v2778
        %v2820 = vsub.f32 %v2604, %v2782
        %v2821 = vsub.f32 %v2608, %v2778
        %v2822 = vsub.f32 %v2610, %v2782
        %v2823 = vsub.f32 %v2612, %v2778
        %v2824 = vsub.f32 %v2614, %v2782
        %v2825 = vsub.f32 %v2618, %v2778
        %v2826 = vsub.f32 %v2620, %v2782
        %v2827 = vsub.f32 %v2622, %v2778
        %v2828 = vsub.f32 %v2624, %v2782
        %v2829 = vsub.f32 %v2628, %v2778
        %v2830 = vsub.f32 %v2630, %v2782
        %v2831 = vsub.f32 %v2632, %v2778
        %v2832 = vsub.f32 %v2634, %v2782
        %v2833 = vsub.f32 %v2638, %v2778
        %v2834 = vsub.f32 %v2640, %v2782
        %v2835 = vsub.f32 %v2642, %v2778
        %v2836 = vsub.f32 %v2644, %v2782
        %v2837 = vsub.f32 %v2648, %v2778
        %v2838 = vsub.f32 %v2650, %v2782
        %v2839 = vsub.f32 %v2652, %v2778
        %v2840 = vsub.f32 %v2654, %v2782
        %v2841 = vsub.f32 %v2658, %v2778
        %v2842 = vsub.f32 %v2660, %v2782
        %v2843 = vsub.f32 %v2662, %v2778
        %v2844 = vsub.f32 %v2664, %v2782
        %v2845 = vsub.f32 %v2668, %v2778
        %v2846 = vsub.f32 %v2670, %v2782
        %v2847 = vsub.f32 %v2672, %v2778
        %v2848 = vsub.f32 %v2674, %v2782
        %v2849 = vmul.f32 %v2785, 1.442695
        %v2850 = vpow.pop %v2849
        %v2851 = vmul.f32 %v2786, 1.442695
        %v2852 = vpow.pop %v2851
        %v2853 = vmul.f32 %v2787, 1.442695
        %v2854 = vpow.pop %v2853
        %v2855 = vmul.f32 %v2788, 1.442695
        %v2856 = vpow.pop %v2855
        %v2857 = vmul.f32 %v2789, 1.442695
        %v2858 = vpow.pop %v2857
        %v2859 = vmul.f32 %v2790, 1.442695
        %v2860 = vpow.pop %v2859
        %v2861 = vmul.f32 %v2791, 1.442695
        %v2862 = vpow.pop %v2861
        %v2863 = vmul.f32 %v2792, 1.442695
        %v2864 = vpow.pop %v2863
        %v2865 = vmul.f32 %v2793, 1.442695
        %v2866 = vpow.pop %v2865
        %v2867 = vmul.f32 %v2794, 1.442695
        %v2868 = vpow.pop %v2867
        %v2869 = vmul.f32 %v2795, 1.442695
        %v2870 = vpow.pop %v2869
        %v2871 = vmul.f32 %v2796, 1.442695
        %v2872 = vpow.pop %v2871
        %v2873 = vmul.f32 %v2797, 1.442695
        %v2874 = vpow.pop %v2873
        %v2875 = vmul.f32 %v2798, 1.442695
        %v2876 = vpow.pop %v2875
        %v2877 = vmul.f32 %v2799, 1.442695
        %v2878 = vpow.pop %v2877
        %v2879 = vmul.f32 %v2800, 1.442695
        %v2880 = vpow.pop %v2879
        %v2881 = vmul.f32 %v2801, 1.442695
        %v2882 = vpow.pop %v2881
        %v2883 = vmul.f32 %v2802, 1.442695
        %v2884 = vpow.pop %v2883
        %v2885 = vmul.f32 %v2803, 1.442695
        %v2886 = vpow.pop %v2885
        %v2887 = vmul.f32 %v2804, 1.442695
        %v2888 = vpow.pop %v2887
        %v2889 = vmul.f32 %v2805, 1.442695
        %v2890 = vpow.pop %v2889
        %v2891 = vmul.f32 %v2806, 1.442695
        %v2892 = vpow.pop %v2891
        %v2893 = vmul.f32 %v2807, 1.442695
        %v2894 = vpow.pop %v2893
        %v2895 = vmul.f32 %v2808, 1.442695
        %v2896 = vpow.pop %v2895
        %v2897 = vmul.f32 %v2809, 1.442695
        %v2898 = vpow.pop %v2897
        %v2899 = vmul.f32 %v2810, 1.442695
        %v2900 = vpow.pop %v2899
        %v2901 = vmul.f32 %v2811, 1.442695
        %v2902 = vpow.pop %v2901
        %v2903 = vmul.f32 %v2812, 1.442695
        %v2904 = vpow.pop %v2903
        %v2905 = vmul.f32 %v2813, 1.442695
        %v2906 = vpow.pop %v2905
        %v2907 = vmul.f32 %v2814, 1.442695
        %v2908 = vpow.pop %v2907
        %v2909 = vmul.f32 %v2815, 1.442695
        %v2910 = vpow.pop %v2909
        %v2911 = vmul.f32 %v2816, 1.442695
        %v2912 = vpow.pop %v2911
        %v2913 = vmul.f32 %v2817, 1.442695
        %v2914 = vpow.pop %v2913
        %v2915 = vmul.f32 %v2818, 1.442695
        %v2916 = vpow.pop %v2915
        %v2917 = vmul.f32 %v2819, 1.442695
        %v2918 = vpow.pop %v2917
        %v2919 = vmul.f32 %v2820, 1.442695
        %v2920 = vpow.pop %v2919
        %v2921 = vmul.f32 %v2821, 1.442695
        %v2922 = vpow.pop %v2921
        %v2923 = vmul.f32 %v2822, 1.442695
        %v2924 = vpow.pop %v2923
        %v2925 = vmul.f32 %v2823, 1.442695
        %v2926 = vpow.pop %v2925
        %v2927 = vmul.f32 %v2824, 1.442695
        %v2928 = vpow.pop %v2927
        %v2929 = vmul.f32 %v2825, 1.442695
        %v2930 = vpow.pop %v2929
        %v2931 = vmul.f32 %v2826, 1.442695
        %v2932 = vpow.pop %v2931
        %v2933 = vmul.f32 %v2827, 1.442695
        %v2934 = vpow.pop %v2933
        %v2935 = vmul.f32 %v2828, 1.442695
        %v2936 = vpow.pop %v2935
        %v2937 = vmul.f32 %v2829, 1.442695
        %v2938 = vpow.pop %v2937
        %v2939 = vmul.f32 %v2830, 1.442695
        %v2940 = vpow.pop %v2939
        %v2941 = vmul.f32 %v2831, 1.442695
        %v2942 = vpow.pop %v2941
        %v2943 = vmul.f32 %v2832, 1.442695
        %v2944 = vpow.pop %v2943
        %v2945 = vmul.f32 %v2833, 1.442695
        %v2946 = vpow.pop %v2945
        %v2947 = vmul.f32 %v2834, 1.442695
        %v2948 = vpow.pop %v2947
        %v2949 = vmul.f32 %v2835, 1.442695
        %v2950 = vpow.pop %v2949
        %v2951 = vmul.f32 %v2836, 1.442695
        %v2952 = vpow.pop %v2951
        %v2953 = vmul.f32 %v2837, 1.442695
        %v2954 = vpow.pop %v2953
        %v2955 = vmul.f32 %v2838, 1.442695
        %v2956 = vpow.pop %v2955
        %v2957 = vmul.f32 %v2839, 1.442695
        %v2958 = vpow.pop %v2957
        %v2959 = vmul.f32 %v2840, 1.442695
        %v2960 = vpow.pop %v2959
        %v2961 = vmul.f32 %v2841, 1.442695
        %v2962 = vpow.pop %v2961
        %v2963 = vmul.f32 %v2842, 1.442695
        %v2964 = vpow.pop %v2963
        %v2965 = vmul.f32 %v2843, 1.442695
        %v2966 = vpow.pop %v2965
        %v2967 = vmul.f32 %v2844, 1.442695
        %v2968 = vpow.pop %v2967
        %v2969 = vmul.f32 %v2845, 1.442695
        %v2970 = vpow.pop %v2969
        %v2971 = vmul.f32 %v2846, 1.442695
        %v2972 = vpow.pop %v2971
        %v2973 = vmul.f32 %v2847, 1.442695
        %v2974 = vpow.pop %v2973
        %v2975 = vmul.f32 %v2848, 1.442695
        %v2976 = vpow.pop %v2975
        %s2977 = scalar_lea.vmem [#allocation4], 4
        %v2978 = vld [vmem:[%s2977] sm:$0x3]
        %v2979 = vmul.f32 %v2773, %v2978
        %v2980 = vadd.f32 %v2850, %v2854
        %v2981 = vadd.f32 %v2980, %v2858
        %v2982 = vadd.f32 %v2981, %v2862
        %v2983 = vadd.f32 %v2982, %v2866
        %v2984 = vadd.f32 %v2983, %v2870
        %v2985 = vadd.f32 %v2984, %v2874
        %v2986 = vadd.f32 %v2985, %v2878
        %v2987 = vadd.f32 %v2986, %v2882
        %v2988 = vadd.f32 %v2987, %v2886
        %v2989 = vadd.f32 %v2988, %v2890
        %v2990 = vadd.f32 %v2989, %v2894
        %v2991 = vadd.f32 %v2990, %v2898
        %v2992 = vadd.f32 %v2991, %v2902
        %v2993 = vadd.f32 %v2992, %v2906
        %v2994 = vadd.f32 %v2993, %v2910
        %v2995 = vadd.f32 %v2994, %v2914
        %v2996 = vadd.f32 %v2995, %v2918
        %v2997 = vadd.f32 %v2996, %v2922
        %v2998 = vadd.f32 %v2997, %v2926
        %v2999 = vadd.f32 %v2998, %v2930
        %v3000 = vadd.f32 %v2999, %v2934
        %v3001 = vadd.f32 %v3000, %v2938
        %v3002 = vadd.f32 %v3001, %v2942
        %v3003 = vadd.f32 %v3002, %v2946
        %v3004 = vadd.f32 %v3003, %v2950
        %v3005 = vadd.f32 %v3004, %v2954
        %v3006 = vadd.f32 %v3005, %v2958
        %v3007 = vadd.f32 %v3006, %v2962
        %v3008 = vadd.f32 %v3007, %v2966
        %v3009 = vadd.f32 %v3008, %v2970
        %v3010 = vadd.f32 %v3009, %v2974
        %v3011 = vrot.slane %v3010, 4
        %v3012 = vadd.f32 %v3010, %v3011
        %v3013 = vrot.slane %v3012, 2
        %v3014 = vadd.f32 %v3012, %v3013
        %v3015 = vrot.slane %v3014, 1
        %v3016 = vadd.f32 %v3014, %v3015
        %v3017 = vadd.f32 %v2852, %v2856
        %v3018 = vadd.f32 %v3017, %v2860
        %v3019 = vadd.f32 %v3018, %v2864
        %v3020 = vadd.f32 %v3019, %v2868
        %v3021 = vadd.f32 %v3020, %v2872
        %v3022 = vadd.f32 %v3021, %v2876
        %v3023 = vadd.f32 %v3022, %v2880
        %v3024 = vadd.f32 %v3023, %v2884
        %v3025 = vadd.f32 %v3024, %v2888
        %v3026 = vadd.f32 %v3025, %v2892
        %v3027 = vadd.f32 %v3026, %v2896
        %v3028 = vadd.f32 %v3027, %v2900
        %v3029 = vadd.f32 %v3028, %v2904
        %v3030 = vadd.f32 %v3029, %v2908
        %v3031 = vadd.f32 %v3030, %v2912
        %v3032 = vadd.f32 %v3031, %v2916
        %v3033 = vadd.f32 %v3032, %v2920
        %v3034 = vadd.f32 %v3033, %v2924
        %v3035 = vadd.f32 %v3034, %v2928
        %v3036 = vadd.f32 %v3035, %v2932
        %v3037 = vadd.f32 %v3036, %v2936
        %v3038 = vadd.f32 %v3037, %v2940
        %v3039 = vadd.f32 %v3038, %v2944
        %v3040 = vadd.f32 %v3039, %v2948
        %v3041 = vadd.f32 %v3040, %v2952
        %v3042 = vadd.f32 %v3041, %v2956
        %v3043 = vadd.f32 %v3042, %v2960
        %v3044 = vadd.f32 %v3043, %v2964
        %v3045 = vadd.f32 %v3044, %v2968
        %v3046 = vadd.f32 %v3045, %v2972
        %v3047 = vadd.f32 %v3046, %v2976
        %v3048 = vrot.slane %v3047, 4
        %v3049 = vadd.f32 %v3047, %v3048
        %v3050 = vrot.slane %v3049, 2
        %v3051 = vadd.f32 %v3049, %v3050
        %v3052 = vrot.slane %v3051, 1
        %v3053 = vadd.f32 %v3051, %v3052
        %v3056 = vcombine.low %v3016, %v3053
        %v3058 = vunpack.c.l.s4 1966171168
        %v3059 = vunpack.c.0.s8 %v3058
        %v3060 = vlaneseq
        %v3061 = vshrl.u32 %v3060, 7
        %v3062 = vsub.s32 %v3059, %v3061
        %v3063 = vrot.slane %v3056, %v3062
        %v3065 = vunpack.c.l.s4 1966171168
        %v3066 = vunpack.c.0.s8 %v3065
        %v3067 = vlaneseq
        %v3068 = vshrl.u32 %v3067, 7
        %v3069 = vsub.s32 %v3066, %v3068
        %v3070 = vrot.slane %v3063, %v3069
        %v3072 = vadd.f32 %v2979, %v3070
        %3073 = vst.msk [vmem:[%s2977] sm:$0x3] %vm1523, %v3072
        %s3074 = scalar_lea.vmem [#allocation5], 64
        %v3075 = vld [vmem:[%s3074] sm:$0xff]
        %v3076 = vld [vmem:[%s3074 + $0x8] sm:$0xff]
        %v3077 = vld [vmem:[%s3074 + $0x10] sm:$0xff]
        %v3078 = vld [vmem:[%s3074 + $0x18] sm:$0xff]
        %v3080 = vlaneseq
        %v3081 = vshrl.u32 %v3080, 7
        %v3082 = vsub.s32 0, %v3081
        %v3083 = vrot.slane %v2773, %v3082
        %v3084 = vlaneseq
        %v3085 = vshrl.u32 %v3084, 7
        %v3086 = vsub.s32 1, %v3085
        %v3087 = vrot.slane %v2773, %v3086
        %v3090 = vmul.f32 %v3083, %v3075
        %v3091 = vmul.f32 %v3087, %v3076
        %v3092 = vmul.f32 %v3083, %v3077
        %v3093 = vmul.f32 %v3087, %v3078
        %v3094 = vpack.c.bf16 %v2854, %v2850
        %v3095 = vpack.c.bf16 %v2856, %v2852
        %v3096 = vpack.c.bf16 %v2862, %v2858
        %v3097 = vpack.c.bf16 %v2864, %v2860
        %v3098 = vpack.c.bf16 %v2870, %v2866
        %v3099 = vpack.c.bf16 %v2872, %v2868
        %v3100 = vpack.c.bf16 %v2878, %v2874
        %v3101 = vpack.c.bf16 %v2880, %v2876
        %v3102 = vpack.c.bf16 %v2886, %v2882
        %v3103 = vpack.c.bf16 %v2888, %v2884
        %v3104 = vpack.c.bf16 %v2894, %v2890
        %v3105 = vpack.c.bf16 %v2896, %v2892
        %v3106 = vpack.c.bf16 %v2902, %v2898
        %v3107 = vpack.c.bf16 %v2904, %v2900
        %v3108 = vpack.c.bf16 %v2910, %v2906
        %v3109 = vpack.c.bf16 %v2912, %v2908
        %v3110 = vpack.c.bf16 %v2918, %v2914
        %v3111 = vpack.c.bf16 %v2920, %v2916
        %v3112 = vpack.c.bf16 %v2926, %v2922
        %v3113 = vpack.c.bf16 %v2928, %v2924
        %v3114 = vpack.c.bf16 %v2934, %v2930
        %v3115 = vpack.c.bf16 %v2936, %v2932
        %v3116 = vpack.c.bf16 %v2942, %v2938
        %v3117 = vpack.c.bf16 %v2944, %v2940
        %v3118 = vpack.c.bf16 %v2950, %v2946
        %v3119 = vpack.c.bf16 %v2952, %v2948
        %v3120 = vpack.c.bf16 %v2958, %v2954
        %v3121 = vpack.c.bf16 %v2960, %v2956
        %v3122 = vpack.c.bf16 %v2966, %v2962
        %v3123 = vpack.c.bf16 %v2968, %v2964
        %v3124 = vpack.c.bf16 %v2974, %v2970
        %v3125 = vpack.c.bf16 %v2976, %v2972
        %3126 = vmatprep.subr.bf16.mxu0 %v3095
        %3127 = vmatpush1.bf16.msra.mxu0 %v3094
        %3128 = vmatprep.subr.bf16.mxu0 %v3097
        %3129 = vmatpush1.bf16.msra.mxu0 %v3096
        %3130 = vmatprep.subr.bf16.mxu0 %v3099
        %3131 = vmatpush1.bf16.msra.mxu0 %v3098
        %3132 = vmatprep.subr.bf16.mxu0 %v3101
        %3133 = vmatpush1.bf16.msra.mxu0 %v3100
        %3134 = vmatprep.subr.bf16.mxu0 %v3103
        %3135 = vmatpush1.bf16.msra.mxu0 %v3102
        %3136 = vmatprep.subr.bf16.mxu0 %v3105
        %3137 = vmatpush1.bf16.msra.mxu0 %v3104
        %3138 = vmatprep.subr.bf16.mxu0 %v3107
        %3139 = vmatpush1.bf16.msra.mxu0 %v3106
        %3140 = vmatprep.subr.bf16.mxu0 %v3109
        %3141 = vmatpush1.bf16.msra.mxu0 %v3108
        %3142 = vmatprep.subr.bf16.mxu0 %v3111
        %3143 = vmatpush1.bf16.msra.mxu0 %v3110
        %3144 = vmatprep.subr.bf16.mxu0 %v3113
        %3145 = vmatpush1.bf16.msra.mxu0 %v3112
        %3146 = vmatprep.subr.bf16.mxu0 %v3115
        %3147 = vmatpush1.bf16.msra.mxu0 %v3114
        %3148 = vmatprep.subr.bf16.mxu0 %v3117
        %3149 = vmatpush1.bf16.msra.mxu0 %v3116
        %3150 = vmatprep.subr.bf16.mxu0 %v3119
        %3151 = vmatpush1.bf16.msra.mxu0 %v3118
        %3152 = vmatprep.subr.bf16.mxu0 %v3121
        %3153 = vmatpush1.bf16.msra.mxu0 %v3120
        %3154 = vmatprep.subr.bf16.mxu0 %v3123
        %3155 = vmatpush1.bf16.msra.mxu0 %v3122
        %3156 = vmatprep.subr.bf16.mxu0 %v3125
        %3157 = vmatpush1.bf16.msra.mxu0 %v3124
        %3158 = vmatprep.mubr.bf16.mxu0 %v840
        %3159 = vmatmul.mubr.bf16.gmra.mrb[0].mxu0 %v839
        %v3160 = vpop.f32.mrb[0].mxu0
        %v3161 = vadd.f32 0.0, %v3160
        %v3162 = vpop.f32.mrb[0].mxu0
        %v3163 = vadd.f32 0.0, %v3162
        %v3164 = vpop.f32.mrb[0].mxu0
        %v3165 = vadd.f32 0.0, %v3164
        %v3166 = vpop.f32.mrb[0].mxu0
        %v3167 = vadd.f32 0.0, %v3166
        %3168 = vdwg.mxu0
        %v3169 = vadd.f32 %v3090, %v3161
        %v3170 = vadd.f32 %v3091, %v3163
        %v3171 = vadd.f32 %v3092, %v3165
        %v3172 = vadd.f32 %v3093, %v3167
        %3173 = vst [vmem:[%s3074] sm:$0xff] %v3169
        %3174 = vst [vmem:[%s3074 + $0x8] sm:$0xff] %v3170
        %3175 = vst [vmem:[%s3074 + $0x10] sm:$0xff] %v3171
        %3176 = vst [vmem:[%s3074 + $0x18] sm:$0xff] %v3172
        %3177 = vst.msk [vmem:[%s2676] sm:$0x3] %vm1523, %v2770
        %3178 = vxpose.xlu0.c.b16.start [1/8] %v833, 128
        %3179 = vxpose.xlu0.c.b16.cont [2/8] 0, 128
        %3180 = vxpose.xlu0.c.b16.cont [3/8] 0, 128
        %3181 = vxpose.xlu0.c.b16.cont [4/8] 0, 128
        %3182 = vxpose.xlu0.c.b16.cont [5/8] 0, 128
        %3183 = vxpose.xlu0.c.b16.cont [6/8] 0, 128
        %3184 = vxpose.xlu0.c.b16.cont [7/8] 0, 128
        %3185 = vxpose.xlu0.c.b16.end [8/8] 0, 128
        %v3186 = vpop.trf.xlu0
        %v3187 = vpop.trf.xlu0
        %v3188 = vpop.trf.xlu0
        %v3189 = vpop.trf.xlu0
        %v3190 = vpop.trf.xlu0
        %v3191 = vpop.trf.xlu0
        %v3192 = vpop.trf.xlu0
        %v3193 = vpop.trf.xlu0
        %3194 = vxpose.xlu0.c.b16.start [1/8] %v834, 128
        %3195 = vxpose.xlu0.c.b16.cont [2/8] 0, 128
        %3196 = vxpose.xlu0.c.b16.cont [3/8] 0, 128
        %3197 = vxpose.xlu0.c.b16.cont [4/8] 0, 128
        %3198 = vxpose.xlu0.c.b16.cont [5/8] 0, 128
        %3199 = vxpose.xlu0.c.b16.cont [6/8] 0, 128
        %3200 = vxpose.xlu0.c.b16.cont [7/8] 0, 128
        %3201 = vxpose.xlu0.c.b16.end [8/8] 0, 128
        %v3202 = vpop.trf.xlu0
        %v3203 = vpop.trf.xlu0
        %v3204 = vpop.trf.xlu0
        %v3205 = vpop.trf.xlu0
        %v3206 = vpop.trf.xlu0
        %v3207 = vpop.trf.xlu0
        %v3208 = vpop.trf.xlu0
        %v3209 = vpop.trf.xlu0
        %v3211 = vsel %vm883, %v3186, 0
        %v3214 = vsel %vm883, %v3187, 0
        %v3217 = vsel %vm883, %v3188, 0
        %v3220 = vsel %vm883, %v3189, 0
        %v3223 = vsel %vm883, %v3190, 0
        %v3226 = vsel %vm883, %v3191, 0
        %v3229 = vsel %vm883, %v3192, 0
        %v3232 = vsel %vm883, %v3193, 0
        %v3235 = vsel %vm883, %v3202, 0
        %v3238 = vsel %vm883, %v3203, 0
        %v3241 = vsel %vm883, %v3204, 0
        %v3244 = vsel %vm883, %v3205, 0
        %v3247 = vsel %vm883, %v3206, 0
        %v3250 = vsel %vm883, %v3207, 0
        %v3253 = vsel %vm883, %v3208, 0
        %v3256 = vsel %vm883, %v3209, 0
        %3258 = vmatprep.subr.bf16.mxu0 %v850
        %3259 = vmatpush1.bf16.msra.mxu0 %v849
        %3260 = vmatprep.subr.bf16.mxu0 0
        %3261 = vmatpush1.bf16.msra.mxu0 0
        %3262 = vmatprep.subr.bf16.mxu0 0
        %3263 = vmatpush1.bf16.msra.mxu0 0
        %3264 = vmatprep.subr.bf16.mxu0 0
        %3265 = vmatpush1.bf16.msra.mxu0 0
        %3266 = vmatprep.subr.bf16.mxu0 0
        %3267 = vmatpush1.bf16.msra.mxu0 0
        %3268 = vmatprep.subr.bf16.mxu0 0
        %3269 = vmatpush1.bf16.msra.mxu0 0
        %3270 = vmatprep.subr.bf16.mxu0 0
        %3271 = vmatpush1.bf16.msra.mxu0 0
        %3272 = vmatprep.subr.bf16.mxu0 0
        %3273 = vmatpush1.bf16.msra.mxu0 0
        %3274 = vmatprep.subr.bf16.mxu0 0
        %3275 = vmatpush1.bf16.msra.mxu0 0
        %3276 = vmatprep.subr.bf16.mxu0 0
        %3277 = vmatpush1.bf16.msra.mxu0 0
        %3278 = vmatprep.subr.bf16.mxu0 0
        %3279 = vmatpush1.bf16.msra.mxu0 0
        %3280 = vmatprep.subr.bf16.mxu0 0
        %3281 = vmatpush1.bf16.msra.mxu0 0
        %3282 = vmatprep.subr.bf16.mxu0 0
        %3283 = vmatpush1.bf16.msra.mxu0 0
        %3284 = vmatprep.subr.bf16.mxu0 0
        %3285 = vmatpush1.bf16.msra.mxu0 0
        %3286 = vmatprep.subr.bf16.mxu0 0
        %3287 = vmatpush1.bf16.msra.mxu0 0
        %3288 = vmatprep.subr.bf16.mxu0 0
        %3289 = vmatpush1.bf16.msra.mxu0 0
        %3290 = vmatprep.mubr.bf16.mxu0 0
        %3291 = vmatmul.mubr.bf16.gmra.mrb[0].mxu0 %v3211
        %v3292 = vpop.f32.mrb[0].mxu0
        %v3293 = vadd.f32 0.0, %v3292
        %v3294 = vpop.f32.mrb[0].mxu0
        %v3295 = vadd.f32 0.0, %v3294
        %v3296 = vpop.f32.mrb[0].mxu0
        %v3297 = vadd.f32 0.0, %v3296
        %v3298 = vpop.f32.mrb[0].mxu0
        %v3299 = vadd.f32 0.0, %v3298
        %3300 = vmatprep.mubr.bf16.mxu0 0
        %3301 = vmatmul.mubr.bf16.gmra.mrb[0].mxu0 %v3214
        %v3302 = vpop.f32.mrb[0].mxu0
        %v3303 = vadd.f32 0.0, %v3302
        %v3304 = vpop.f32.mrb[0].mxu0
        %v3305 = vadd.f32 0.0, %v3304
        %v3306 = vpop.f32.mrb[0].mxu0
        %v3307 = vadd.f32 0.0, %v3306
        %v3308 = vpop.f32.mrb[0].mxu0
        %v3309 = vadd.f32 0.0, %v3308
        %3310 = vmatprep.mubr.bf16.mxu0 0
        %3311 = vmatmul.mubr.bf16.gmra.mrb[0].mxu0 %v3217
        %v3312 = vpop.f32.mrb[0].mxu0
        %v3313 = vadd.f32 0.0, %v3312
        %v3314 = vpop.f32.mrb[0].mxu0
        %v3315 = vadd.f32 0.0, %v3314
        %v3316 = vpop.f32.mrb[0].mxu0
        %v3317 = vadd.f32 0.0, %v3316
        %v3318 = vpop.f32.mrb[0].mxu0
        %v3319 = vadd.f32 0.0, %v3318
        %3320 = vmatprep.mubr.bf16.mxu0 0
        %3321 = vmatmul.mubr.bf16.gmra.mrb[0].mxu0 %v3220
        %v3322 = vpop.f32.mrb[0].mxu0
        %v3323 = vadd.f32 0.0, %v3322
        %v3324 = vpop.f32.mrb[0].mxu0
        %v3325 = vadd.f32 0.0, %v3324
        %v3326 = vpop.f32.mrb[0].mxu0
        %v3327 = vadd.f32 0.0, %v3326
        %v3328 = vpop.f32.mrb[0].mxu0
        %v3329 = vadd.f32 0.0, %v3328
        %3330 = vmatprep.mubr.bf16.mxu0 0
        %3331 = vmatmul.mubr.bf16.gmra.mrb[0].mxu0 %v3223
        %v3332 = vpop.f32.mrb[0].mxu0
        %v3333 = vadd.f32 0.0, %v3332
        %v3334 = vpop.f32.mrb[0].mxu0
        %v3335 = vadd.f32 0.0, %v3334
        %v3336 = vpop.f32.mrb[0].mxu0
        %v3337 = vadd.f32 0.0, %v3336
        %v3338 = vpop.f32.mrb[0].mxu0
        %v3339 = vadd.f32 0.0, %v3338
        %3340 = vmatprep.mubr.bf16.mxu0 0
        %3341 = vmatmul.mubr.bf16.gmra.mrb[0].mxu0 %v3226
        %v3342 = vpop.f32.mrb[0].mxu0
        %v3343 = vadd.f32 0.0, %v3342
        %v3344 = vpop.f32.mrb[0].mxu0
        %v3345 = vadd.f32 0.0, %v3344
        %v3346 = vpop.f32.mrb[0].mxu0
        %v3347 = vadd.f32 0.0, %v3346
        %v3348 = vpop.f32.mrb[0].mxu0
        %v3349 = vadd.f32 0.0, %v3348
        %3350 = vmatprep.mubr.bf16.mxu0 0
        %3351 = vmatmul.mubr.bf16.gmra.mrb[0].mxu0 %v3229
        %v3352 = vpop.f32.mrb[0].mxu0
        %v3353 = vadd.f32 0.0, %v3352
        %v3354 = vpop.f32.mrb[0].mxu0
        %v3355 = vadd.f32 0.0, %v3354
        %v3356 = vpop.f32.mrb[0].mxu0
        %v3357 = vadd.f32 0.0, %v3356
        %v3358 = vpop.f32.mrb[0].mxu0
        %v3359 = vadd.f32 0.0, %v3358
        %3360 = vmatprep.mubr.bf16.mxu0 0
        %3361 = vmatmul.mubr.bf16.gmra.mrb[0].mxu0 %v3232
        %v3362 = vpop.f32.mrb[0].mxu0
        %v3363 = vadd.f32 0.0, %v3362
        %v3364 = vpop.f32.mrb[0].mxu0
        %v3365 = vadd.f32 0.0, %v3364
        %v3366 = vpop.f32.mrb[0].mxu0
        %v3367 = vadd.f32 0.0, %v3366
        %v3368 = vpop.f32.mrb[0].mxu0
        %v3369 = vadd.f32 0.0, %v3368
        %3370 = vmatprep.mubr.bf16.mxu0 0
        %3371 = vmatmul.mubr.bf16.gmra.mrb[0].mxu0 %v3235
        %v3372 = vpop.f32.mrb[0].mxu0
        %v3373 = vadd.f32 0.0, %v3372
        %v3374 = vpop.f32.mrb[0].mxu0
        %v3375 = vadd.f32 0.0, %v3374
        %v3376 = vpop.f32.mrb[0].mxu0
        %v3377 = vadd.f32 0.0, %v3376
        %v3378 = vpop.f32.mrb[0].mxu0
        %v3379 = vadd.f32 0.0, %v3378
        %3380 = vmatprep.mubr.bf16.mxu0 0
        %3381 = vmatmul.mubr.bf16.gmra.mrb[0].mxu0 %v3238
        %v3382 = vpop.f32.mrb[0].mxu0
        %v3383 = vadd.f32 0.0, %v3382
        %v3384 = vpop.f32.mrb[0].mxu0
        %v3385 = vadd.f32 0.0, %v3384
        %v3386 = vpop.f32.mrb[0].mxu0
        %v3387 = vadd.f32 0.0, %v3386
        %v3388 = vpop.f32.mrb[0].mxu0
        %v3389 = vadd.f32 0.0, %v3388
        %3390 = vmatprep.mubr.bf16.mxu0 0
        %3391 = vmatmul.mubr.bf16.gmra.mrb[0].mxu0 %v3241
        %v3392 = vpop.f32.mrb[0].mxu0
        %v3393 = vadd.f32 0.0, %v3392
        %v3394 = vpop.f32.mrb[0].mxu0
        %v3395 = vadd.f32 0.0, %v3394
        %v3396 = vpop.f32.mrb[0].mxu0
        %v3397 = vadd.f32 0.0, %v3396
        %v3398 = vpop.f32.mrb[0].mxu0
        %v3399 = vadd.f32 0.0, %v3398
        %3400 = vmatprep.mubr.bf16.mxu0 0
        %3401 = vmatmul.mubr.bf16.gmra.mrb[0].mxu0 %v3244
        %v3402 = vpop.f32.mrb[0].mxu0
        %v3403 = vadd.f32 0.0, %v3402
        %v3404 = vpop.f32.mrb[0].mxu0
        %v3405 = vadd.f32 0.0, %v3404
        %v3406 = vpop.f32.mrb[0].mxu0
        %v3407 = vadd.f32 0.0, %v3406
        %v3408 = vpop.f32.mrb[0].mxu0
        %v3409 = vadd.f32 0.0, %v3408
        %3410 = vmatprep.mubr.bf16.mxu0 0
        %3411 = vmatmul.mubr.bf16.gmra.mrb[0].mxu0 %v3247
        %v3412 = vpop.f32.mrb[0].mxu0
        %v3413 = vadd.f32 0.0, %v3412
        %v3414 = vpop.f32.mrb[0].mxu0
        %v3415 = vadd.f32 0.0, %v3414
        %v3416 = vpop.f32.mrb[0].mxu0
        %v3417 = vadd.f32 0.0, %v3416
        %v3418 = vpop.f32.mrb[0].mxu0
        %v3419 = vadd.f32 0.0, %v3418
        %3420 = vmatprep.mubr.bf16.mxu0 0
        %3421 = vmatmul.mubr.bf16.gmra.mrb[0].mxu0 %v3250
        %v3422 = vpop.f32.mrb[0].mxu0
        %v3423 = vadd.f32 0.0, %v3422
        %v3424 = vpop.f32.mrb[0].mxu0
        %v3425 = vadd.f32 0.0, %v3424
        %v3426 = vpop.f32.mrb[0].mxu0
        %v3427 = vadd.f32 0.0, %v3426
        %v3428 = vpop.f32.mrb[0].mxu0
        %v3429 = vadd.f32 0.0, %v3428
        %3430 = vmatprep.mubr.bf16.mxu0 0
        %3431 = vmatmul.mubr.bf16.gmra.mrb[0].mxu0 %v3253
        %v3432 = vpop.f32.mrb[0].mxu0
        %v3433 = vadd.f32 0.0, %v3432
        %v3434 = vpop.f32.mrb[0].mxu0
        %v3435 = vadd.f32 0.0, %v3434
        %v3436 = vpop.f32.mrb[0].mxu0
        %v3437 = vadd.f32 0.0, %v3436
        %v3438 = vpop.f32.mrb[0].mxu0
        %v3439 = vadd.f32 0.0, %v3438
        %3440 = vmatprep.mubr.bf16.mxu0 0
        %3441 = vmatmul.mubr.bf16.gmra.mrb[0].mxu0 %v3256
        %v3442 = vpop.f32.mrb[0].mxu0
        %v3443 = vadd.f32 0.0, %v3442
        %v3444 = vpop.f32.mrb[0].mxu0
        %v3445 = vadd.f32 0.0, %v3444
        %v3446 = vpop.f32.mrb[0].mxu0
        %v3447 = vadd.f32 0.0, %v3446
        %v3448 = vpop.f32.mrb[0].mxu0
        %v3449 = vadd.f32 0.0, %v3448
        %3450 = vdwg.mxu0
        %s3451 = scalar_lea.vmem [#allocation3], 6
        %v3452 = vld [vmem:[%s3451] sm:$0x3]
        %v3453 = vmax.f32 %v3293, %v3303
        %v3454 = vmax.f32 %v3297, %v3307
        %v3455 = vmax.f32 %v3453, %v3313
        %v3456 = vmax.f32 %v3454, %v3317
        %v3457 = vmax.f32 %v3455, %v3323
        %v3458 = vmax.f32 %v3456, %v3327
        %v3459 = vmax.f32 %v3457, %v3333
        %v3460 = vmax.f32 %v3458, %v3337
        %v3461 = vmax.f32 %v3459, %v3343
        %v3462 = vmax.f32 %v3460, %v3347
        %v3463 = vmax.f32 %v3461, %v3353
        %v3464 = vmax.f32 %v3462, %v3357
        %v3465 = vmax.f32 %v3463, %v3363
        %v3466 = vmax.f32 %v3464, %v3367
        %v3467 = vmax.f32 %v3465, %v3373
        %v3468 = vmax.f32 %v3466, %v3377
        %v3469 = vmax.f32 %v3467, %v3383
        %v3470 = vmax.f32 %v3468, %v3387
        %v3471 = vmax.f32 %v3469, %v3393
        %v3472 = vmax.f32 %v3470, %v3397
        %v3473 = vmax.f32 %v3471, %v3403
        %v3474 = vmax.f32 %v3472, %v3407
        %v3475 = vmax.f32 %v3473, %v3413
        %v3476 = vmax.f32 %v3474, %v3417
        %v3477 = vmax.f32 %v3475, %v3423
        %v3478 = vmax.f32 %v3476, %v3427
        %v3479 = vmax.f32 %v3477, %v3433
        %v3480 = vmax.f32 %v3478, %v3437
        %v3481 = vmax.f32 %v3479, %v3443
        %v3482 = vmax.f32 %v3480, %v3447
        %v3483 = vmax.f32 %v3481, %v3482
        %v3484 = vrot.slane %v3483, 4
        %v3485 = vmax.f32 %v3483, %v3484
        %v3486 = vrot.slane %v3485, 2
        %v3487 = vmax.f32 %v3485, %v3486
        %v3488 = vrot.slane %v3487, 1
        %v3489 = vmax.f32 %v3487, %v3488
        %v3490 = vmax.f32 %v3295, %v3305
        %v3491 = vmax.f32 %v3299, %v3309
        %v3492 = vmax.f32 %v3490, %v3315
        %v3493 = vmax.f32 %v3491, %v3319
        %v3494 = vmax.f32 %v3492, %v3325
        %v3495 = vmax.f32 %v3493, %v3329
        %v3496 = vmax.f32 %v3494, %v3335
        %v3497 = vmax.f32 %v3495, %v3339
        %v3498 = vmax.f32 %v3496, %v3345
        %v3499 = vmax.f32 %v3497, %v3349
        %v3500 = vmax.f32 %v3498, %v3355
        %v3501 = vmax.f32 %v3499, %v3359
        %v3502 = vmax.f32 %v3500, %v3365
        %v3503 = vmax.f32 %v3501, %v3369
        %v3504 = vmax.f32 %v3502, %v3375
        %v3505 = vmax.f32 %v3503, %v3379
        %v3506 = vmax.f32 %v3504, %v3385
        %v3507 = vmax.f32 %v3505, %v3389
        %v3508 = vmax.f32 %v3506, %v3395
        %v3509 = vmax.f32 %v3507, %v3399
        %v3510 = vmax.f32 %v3508, %v3405
        %v3511 = vmax.f32 %v3509, %v3409
        %v3512 = vmax.f32 %v3510, %v3415
        %v3513 = vmax.f32 %v3511, %v3419
        %v3514 = vmax.f32 %v3512, %v3425
        %v3515 = vmax.f32 %v3513, %v3429
        %v3516 = vmax.f32 %v3514, %v3435
        %v3517 = vmax.f32 %v3515, %v3439
        %v3518 = vmax.f32 %v3516, %v3445
        %v3519 = vmax.f32 %v3517, %v3449
        %v3520 = vmax.f32 %v3518, %v3519
        %v3521 = vrot.slane %v3520, 4
        %v3522 = vmax.f32 %v3520, %v3521
        %v3523 = vrot.slane %v3522, 2
        %v3524 = vmax.f32 %v3522, %v3523
        %v3525 = vrot.slane %v3524, 1
        %v3526 = vmax.f32 %v3524, %v3525
        %v3529 = vcombine.low %v3489, %v3526
        %v3531 = vunpack.c.l.s4 1966171168
        %v3532 = vunpack.c.0.s8 %v3531
        %v3533 = vlaneseq
        %v3534 = vshrl.u32 %v3533, 7
        %v3535 = vsub.s32 %v3532, %v3534
        %v3536 = vrot.slane %v3529, %v3535
        %v3538 = vunpack.c.l.s4 1966171168
        %v3539 = vunpack.c.0.s8 %v3538
        %v3540 = vlaneseq
        %v3541 = vshrl.u32 %v3540, 7
        %v3542 = vsub.s32 %v3539, %v3541
        %v3543 = vrot.slane %v3536, %v3542
        %v3545 = vmax.f32 %v3452, %v3543
        %v3546 = vsub.f32 %v3452, %v3545
        %v3547 = vmul.f32 %v3546, 1.442695
        %v3548 = vpow.pop %v3547
        %v3550 = vlaneseq
        %v3551 = vshrl.u32 %v3550, 7
        %v3552 = vsub.s32 0, %v3551
        %v3553 = vrot.slane %v3545, %v3552
        %v3554 = vlaneseq
        %v3555 = vshrl.u32 %v3554, 7
        %v3556 = vsub.s32 1, %v3555
        %v3557 = vrot.slane %v3545, %v3556
        %v3560 = vsub.f32 %v3293, %v3553
        %v3561 = vsub.f32 %v3295, %v3557
        %v3562 = vsub.f32 %v3297, %v3553
        %v3563 = vsub.f32 %v3299, %v3557
        %v3564 = vsub.f32 %v3303, %v3553
        %v3565 = vsub.f32 %v3305, %v3557
        %v3566 = vsub.f32 %v3307, %v3553
        %v3567 = vsub.f32 %v3309, %v3557
        %v3568 = vsub.f32 %v3313, %v3553
        %v3569 = vsub.f32 %v3315, %v3557
        %v3570 = vsub.f32 %v3317, %v3553
        %v3571 = vsub.f32 %v3319, %v3557
        %v3572 = vsub.f32 %v3323, %v3553
        %v3573 = vsub.f32 %v3325, %v3557
        %v3574 = vsub.f32 %v3327, %v3553
        %v3575 = vsub.f32 %v3329, %v3557
        %v3576 = vsub.f32 %v3333, %v3553
        %v3577 = vsub.f32 %v3335, %v3557
        %v3578 = vsub.f32 %v3337, %v3553
        %v3579 = vsub.f32 %v3339, %v3557
        %v3580 = vsub.f32 %v3343, %v3553
        %v3581 = vsub.f32 %v3345, %v3557
        %v3582 = vsub.f32 %v3347, %v3553
        %v3583 = vsub.f32 %v3349, %v3557
        %v3584 = vsub.f32 %v3353, %v3553
        %v3585 = vsub.f32 %v3355, %v3557
        %v3586 = vsub.f32 %v3357, %v3553
        %v3587 = vsub.f32 %v3359, %v3557
        %v3588 = vsub.f32 %v3363, %v3553
        %v3589 = vsub.f32 %v3365, %v3557
        %v3590 = vsub.f32 %v3367, %v3553
        %v3591 = vsub.f32 %v3369, %v3557
        %v3592 = vsub.f32 %v3373, %v3553
        %v3593 = vsub.f32 %v3375, %v3557
        %v3594 = vsub.f32 %v3377, %v3553
        %v3595 = vsub.f32 %v3379, %v3557
        %v3596 = vsub.f32 %v3383, %v3553
        %v3597 = vsub.f32 %v3385, %v3557
        %v3598 = vsub.f32 %v3387, %v3553
        %v3599 = vsub.f32 %v3389, %v3557
        %v3600 = vsub.f32 %v3393, %v3553
        %v3601 = vsub.f32 %v3395, %v3557
        %v3602 = vsub.f32 %v3397, %v3553
        %v3603 = vsub.f32 %v3399, %v3557
        %v3604 = vsub.f32 %v3403, %v3553
        %v3605 = vsub.f32 %v3405, %v3557
        %v3606 = vsub.f32 %v3407, %v3553
        %v3607 = vsub.f32 %v3409, %v3557
        %v3608 = vsub.f32 %v3413, %v3553
        %v3609 = vsub.f32 %v3415, %v3557
        %v3610 = vsub.f32 %v3417, %v3553
        %v3611 = vsub.f32 %v3419, %v3557
        %v3612 = vsub.f32 %v3423, %v3553
        %v3613 = vsub.f32 %v3425, %v3557
        %v3614 = vsub.f32 %v3427, %v3553
        %v3615 = vsub.f32 %v3429, %v3557
        %v3616 = vsub.f32 %v3433, %v3553
        %v3617 = vsub.f32 %v3435, %v3557
        %v3618 = vsub.f32 %v3437, %v3553
        %v3619 = vsub.f32 %v3439, %v3557
        %v3620 = vsub.f32 %v3443, %v3553
        %v3621 = vsub.f32 %v3445, %v3557
        %v3622 = vsub.f32 %v3447, %v3553
        %v3623 = vsub.f32 %v3449, %v3557
        %v3624 = vmul.f32 %v3560, 1.442695
        %v3625 = vpow.pop %v3624
        %v3626 = vmul.f32 %v3561, 1.442695
        %v3627 = vpow.pop %v3626
        %v3628 = vmul.f32 %v3562, 1.442695
        %v3629 = vpow.pop %v3628
        %v3630 = vmul.f32 %v3563, 1.442695
        %v3631 = vpow.pop %v3630
        %v3632 = vmul.f32 %v3564, 1.442695
        %v3633 = vpow.pop %v3632
        %v3634 = vmul.f32 %v3565, 1.442695
        %v3635 = vpow.pop %v3634
        %v3636 = vmul.f32 %v3566, 1.442695
        %v3637 = vpow.pop %v3636
        %v3638 = vmul.f32 %v3567, 1.442695
        %v3639 = vpow.pop %v3638
        %v3640 = vmul.f32 %v3568, 1.442695
        %v3641 = vpow.pop %v3640
        %v3642 = vmul.f32 %v3569, 1.442695
        %v3643 = vpow.pop %v3642
        %v3644 = vmul.f32 %v3570, 1.442695
        %v3645 = vpow.pop %v3644
        %v3646 = vmul.f32 %v3571, 1.442695
        %v3647 = vpow.pop %v3646
        %v3648 = vmul.f32 %v3572, 1.442695
        %v3649 = vpow.pop %v3648
        %v3650 = vmul.f32 %v3573, 1.442695
        %v3651 = vpow.pop %v3650
        %v3652 = vmul.f32 %v3574, 1.442695
        %v3653 = vpow.pop %v3652
        %v3654 = vmul.f32 %v3575, 1.442695
        %v3655 = vpow.pop %v3654
        %v3656 = vmul.f32 %v3576, 1.442695
        %v3657 = vpow.pop %v3656
        %v3658 = vmul.f32 %v3577, 1.442695
        %v3659 = vpow.pop %v3658
        %v3660 = vmul.f32 %v3578, 1.442695
        %v3661 = vpow.pop %v3660
        %v3662 = vmul.f32 %v3579, 1.442695
        %v3663 = vpow.pop %v3662
        %v3664 = vmul.f32 %v3580, 1.442695
        %v3665 = vpow.pop %v3664
        %v3666 = vmul.f32 %v3581, 1.442695
        %v3667 = vpow.pop %v3666
        %v3668 = vmul.f32 %v3582, 1.442695
        %v3669 = vpow.pop %v3668
        %v3670 = vmul.f32 %v3583, 1.442695
        %v3671 = vpow.pop %v3670
        %v3672 = vmul.f32 %v3584, 1.442695
        %v3673 = vpow.pop %v3672
        %v3674 = vmul.f32 %v3585, 1.442695
        %v3675 = vpow.pop %v3674
        %v3676 = vmul.f32 %v3586, 1.442695
        %v3677 = vpow.pop %v3676
        %v3678 = vmul.f32 %v3587, 1.442695
        %v3679 = vpow.pop %v3678
        %v3680 = vmul.f32 %v3588, 1.442695
        %v3681 = vpow.pop %v3680
        %v3682 = vmul.f32 %v3589, 1.442695
        %v3683 = vpow.pop %v3682
        %v3684 = vmul.f32 %v3590, 1.442695
        %v3685 = vpow.pop %v3684
        %v3686 = vmul.f32 %v3591, 1.442695
        %v3687 = vpow.pop %v3686
        %v3688 = vmul.f32 %v3592, 1.442695
        %v3689 = vpow.pop %v3688
        %v3690 = vmul.f32 %v3593, 1.442695
        %v3691 = vpow.pop %v3690
        %v3692 = vmul.f32 %v3594, 1.442695
        %v3693 = vpow.pop %v3692
        %v3694 = vmul.f32 %v3595, 1.442695
        %v3695 = vpow.pop %v3694
        %v3696 = vmul.f32 %v3596, 1.442695
        %v3697 = vpow.pop %v3696
        %v3698 = vmul.f32 %v3597, 1.442695
        %v3699 = vpow.pop %v3698
        %v3700 = vmul.f32 %v3598, 1.442695
        %v3701 = vpow.pop %v3700
        %v3702 = vmul.f32 %v3599, 1.442695
        %v3703 = vpow.pop %v3702
        %v3704 = vmul.f32 %v3600, 1.442695
        %v3705 = vpow.pop %v3704
        %v3706 = vmul.f32 %v3601, 1.442695
        %v3707 = vpow.pop %v3706
        %v3708 = vmul.f32 %v3602, 1.442695
        %v3709 = vpow.pop %v3708
        %v3710 = vmul.f32 %v3603, 1.442695
        %v3711 = vpow.pop %v3710
        %v3712 = vmul.f32 %v3604, 1.442695
        %v3713 = vpow.pop %v3712
        %v3714 = vmul.f32 %v3605, 1.442695
        %v3715 = vpow.pop %v3714
        %v3716 = vmul.f32 %v3606, 1.442695
        %v3717 = vpow.pop %v3716
        %v3718 = vmul.f32 %v3607, 1.442695
        %v3719 = vpow.pop %v3718
        %v3720 = vmul.f32 %v3608, 1.442695
        %v3721 = vpow.pop %v3720
        %v3722 = vmul.f32 %v3609, 1.442695
        %v3723 = vpow.pop %v3722
        %v3724 = vmul.f32 %v3610, 1.442695
        %v3725 = vpow.pop %v3724
        %v3726 = vmul.f32 %v3611, 1.442695
        %v3727 = vpow.pop %v3726
        %v3728 = vmul.f32 %v3612, 1.442695
        %v3729 = vpow.pop %v3728
        %v3730 = vmul.f32 %v3613, 1.442695
        %v3731 = vpow.pop %v3730
        %v3732 = vmul.f32 %v3614, 1.442695
        %v3733 = vpow.pop %v3732
        %v3734 = vmul.f32 %v3615, 1.442695
        %v3735 = vpow.pop %v3734
        %v3736 = vmul.f32 %v3616, 1.442695
        %v3737 = vpow.pop %v3736
        %v3738 = vmul.f32 %v3617, 1.442695
        %v3739 = vpow.pop %v3738
        %v3740 = vmul.f32 %v3618, 1.442695
        %v3741 = vpow.pop %v3740
        %v3742 = vmul.f32 %v3619, 1.442695
        %v3743 = vpow.pop %v3742
        %v3744 = vmul.f32 %v3620, 1.442695
        %v3745 = vpow.pop %v3744
        %v3746 = vmul.f32 %v3621, 1.442695
        %v3747 = vpow.pop %v3746
        %v3748 = vmul.f32 %v3622, 1.442695
        %v3749 = vpow.pop %v3748
        %v3750 = vmul.f32 %v3623, 1.442695
        %v3751 = vpow.pop %v3750
        %s3752 = scalar_lea.vmem [#allocation4], 6
        %v3753 = vld [vmem:[%s3752] sm:$0x3]
        %v3754 = vmul.f32 %v3548, %v3753
        %v3755 = vadd.f32 %v3625, %v3629
        %v3756 = vadd.f32 %v3755, %v3633
        %v3757 = vadd.f32 %v3756, %v3637
        %v3758 = vadd.f32 %v3757, %v3641
        %v3759 = vadd.f32 %v3758, %v3645
        %v3760 = vadd.f32 %v3759, %v3649
        %v3761 = vadd.f32 %v3760, %v3653
        %v3762 = vadd.f32 %v3761, %v3657
        %v3763 = vadd.f32 %v3762, %v3661
        %v3764 = vadd.f32 %v3763, %v3665
        %v3765 = vadd.f32 %v3764, %v3669
        %v3766 = vadd.f32 %v3765, %v3673
        %v3767 = vadd.f32 %v3766, %v3677
        %v3768 = vadd.f32 %v3767, %v3681
        %v3769 = vadd.f32 %v3768, %v3685
        %v3770 = vadd.f32 %v3769, %v3689
        %v3771 = vadd.f32 %v3770, %v3693
        %v3772 = vadd.f32 %v3771, %v3697
        %v3773 = vadd.f32 %v3772, %v3701
        %v3774 = vadd.f32 %v3773, %v3705
        %v3775 = vadd.f32 %v3774, %v3709
        %v3776 = vadd.f32 %v3775, %v3713
        %v3777 = vadd.f32 %v3776, %v3717
        %v3778 = vadd.f32 %v3777, %v3721
        %v3779 = vadd.f32 %v3778, %v3725
        %v3780 = vadd.f32 %v3779, %v3729
        %v3781 = vadd.f32 %v3780, %v3733
        %v3782 = vadd.f32 %v3781, %v3737
        %v3783 = vadd.f32 %v3782, %v3741
        %v3784 = vadd.f32 %v3783, %v3745
        %v3785 = vadd.f32 %v3784, %v3749
        %v3786 = vrot.slane %v3785, 4
        %v3787 = vadd.f32 %v3785, %v3786
        %v3788 = vrot.slane %v3787, 2
        %v3789 = vadd.f32 %v3787, %v3788
        %v3790 = vrot.slane %v3789, 1
        %v3791 = vadd.f32 %v3789, %v3790
        %v3792 = vadd.f32 %v3627, %v3631
        %v3793 = vadd.f32 %v3792, %v3635
        %v3794 = vadd.f32 %v3793, %v3639
        %v3795 = vadd.f32 %v3794, %v3643
        %v3796 = vadd.f32 %v3795, %v3647
        %v3797 = vadd.f32 %v3796, %v3651
        %v3798 = vadd.f32 %v3797, %v3655
        %v3799 = vadd.f32 %v3798, %v3659
        %v3800 = vadd.f32 %v3799, %v3663
        %v3801 = vadd.f32 %v3800, %v3667
        %v3802 = vadd.f32 %v3801, %v3671
        %v3803 = vadd.f32 %v3802, %v3675
        %v3804 = vadd.f32 %v3803, %v3679
        %v3805 = vadd.f32 %v3804, %v3683
        %v3806 = vadd.f32 %v3805, %v3687
        %v3807 = vadd.f32 %v3806, %v3691
        %v3808 = vadd.f32 %v3807, %v3695
        %v3809 = vadd.f32 %v3808, %v3699
        %v3810 = vadd.f32 %v3809, %v3703
        %v3811 = vadd.f32 %v3810, %v3707
        %v3812 = vadd.f32 %v3811, %v3711
        %v3813 = vadd.f32 %v3812, %v3715
        %v3814 = vadd.f32 %v3813, %v3719
        %v3815 = vadd.f32 %v3814, %v3723
        %v3816 = vadd.f32 %v3815, %v3727
        %v3817 = vadd.f32 %v3816, %v3731
        %v3818 = vadd.f32 %v3817, %v3735
        %v3819 = vadd.f32 %v3818, %v3739
        %v3820 = vadd.f32 %v3819, %v3743
        %v3821 = vadd.f32 %v3820, %v3747
        %v3822 = vadd.f32 %v3821, %v3751
        %v3823 = vrot.slane %v3822, 4
        %v3824 = vadd.f32 %v3822, %v3823
        %v3825 = vrot.slane %v3824, 2
        %v3826 = vadd.f32 %v3824, %v3825
        %v3827 = vrot.slane %v3826, 1
        %v3828 = vadd.f32 %v3826, %v3827
        %v3831 = vcombine.low %v3791, %v3828
        %v3833 = vunpack.c.l.s4 1966171168
        %v3834 = vunpack.c.0.s8 %v3833
        %v3835 = vlaneseq
        %v3836 = vshrl.u32 %v3835, 7
        %v3837 = vsub.s32 %v3834, %v3836
        %v3838 = vrot.slane %v3831, %v3837
        %v3840 = vunpack.c.l.s4 1966171168
        %v3841 = vunpack.c.0.s8 %v3840
        %v3842 = vlaneseq
        %v3843 = vshrl.u32 %v3842, 7
        %v3844 = vsub.s32 %v3841, %v3843
        %v3845 = vrot.slane %v3838, %v3844
        %v3847 = vadd.f32 %v3754, %v3845
        %3848 = vst.msk [vmem:[%s3752] sm:$0x3] %vm1523, %v3847
        %s3849 = scalar_lea.vmem [#allocation5], 96
        %v3850 = vld [vmem:[%s3849] sm:$0xff]
        %v3851 = vld [vmem:[%s3849 + $0x8] sm:$0xff]
        %v3852 = vld [vmem:[%s3849 + $0x10] sm:$0xff]
        %v3853 = vld [vmem:[%s3849 + $0x18] sm:$0xff]
        %v3855 = vlaneseq
        %v3856 = vshrl.u32 %v3855, 7
        %v3857 = vsub.s32 0, %v3856
        %v3858 = vrot.slane %v3548, %v3857
        %v3859 = vlaneseq
        %v3860 = vshrl.u32 %v3859, 7
        %v3861 = vsub.s32 1, %v3860
        %v3862 = vrot.slane %v3548, %v3861
        %v3865 = vmul.f32 %v3858, %v3850
        %v3866 = vmul.f32 %v3862, %v3851
        %v3867 = vmul.f32 %v3858, %v3852
        %v3868 = vmul.f32 %v3862, %v3853
        %v3869 = vpack.c.bf16 %v3629, %v3625
        %v3870 = vpack.c.bf16 %v3631, %v3627
        %v3871 = vpack.c.bf16 %v3637, %v3633
        %v3872 = vpack.c.bf16 %v3639, %v3635
        %v3873 = vpack.c.bf16 %v3645, %v3641
        %v3874 = vpack.c.bf16 %v3647, %v3643
        %v3875 = vpack.c.bf16 %v3653, %v3649
        %v3876 = vpack.c.bf16 %v3655, %v3651
        %v3877 = vpack.c.bf16 %v3661, %v3657
        %v3878 = vpack.c.bf16 %v3663, %v3659
        %v3879 = vpack.c.bf16 %v3669, %v3665
        %v3880 = vpack.c.bf16 %v3671, %v3667
        %v3881 = vpack.c.bf16 %v3677, %v3673
        %v3882 = vpack.c.bf16 %v3679, %v3675
        %v3883 = vpack.c.bf16 %v3685, %v3681
        %v3884 = vpack.c.bf16 %v3687, %v3683
        %v3885 = vpack.c.bf16 %v3693, %v3689
        %v3886 = vpack.c.bf16 %v3695, %v3691
        %v3887 = vpack.c.bf16 %v3701, %v3697
        %v3888 = vpack.c.bf16 %v3703, %v3699
        %v3889 = vpack.c.bf16 %v3709, %v3705
        %v3890 = vpack.c.bf16 %v3711, %v3707
        %v3891 = vpack.c.bf16 %v3717, %v3713
        %v3892 = vpack.c.bf16 %v3719, %v3715
        %v3893 = vpack.c.bf16 %v3725, %v3721
        %v3894 = vpack.c.bf16 %v3727, %v3723
        %v3895 = vpack.c.bf16 %v3733, %v3729
        %v3896 = vpack.c.bf16 %v3735, %v3731
        %v3897 = vpack.c.bf16 %v3741, %v3737
        %v3898 = vpack.c.bf16 %v3743, %v3739
        %v3899 = vpack.c.bf16 %v3749, %v3745
        %v3900 = vpack.c.bf16 %v3751, %v3747
        %3901 = vmatprep.subr.bf16.mxu0 %v3870
        %3902 = vmatpush1.bf16.msra.mxu0 %v3869
        %3903 = vmatprep.subr.bf16.mxu0 %v3872
        %3904 = vmatpush1.bf16.msra.mxu0 %v3871
        %3905 = vmatprep.subr.bf16.mxu0 %v3874
        %3906 = vmatpush1.bf16.msra.mxu0 %v3873
        %3907 = vmatprep.subr.bf16.mxu0 %v3876
        %3908 = vmatpush1.bf16.msra.mxu0 %v3875
        %3909 = vmatprep.subr.bf16.mxu0 %v3878
        %3910 = vmatpush1.bf16.msra.mxu0 %v3877
        %3911 = vmatprep.subr.bf16.mxu0 %v3880
        %3912 = vmatpush1.bf16.msra.mxu0 %v3879
        %3913 = vmatprep.subr.bf16.mxu0 %v3882
        %3914 = vmatpush1.bf16.msra.mxu0 %v3881
        %3915 = vmatprep.subr.bf16.mxu0 %v3884
        %3916 = vmatpush1.bf16.msra.mxu0 %v3883
        %3917 = vmatprep.subr.bf16.mxu0 %v3886
        %3918 = vmatpush1.bf16.msra.mxu0 %v3885
        %3919 = vmatprep.subr.bf16.mxu0 %v3888
        %3920 = vmatpush1.bf16.msra.mxu0 %v3887
        %3921 = vmatprep.subr.bf16.mxu0 %v3890
        %3922 = vmatpush1.bf16.msra.mxu0 %v3889
        %3923 = vmatprep.subr.bf16.mxu0 %v3892
        %3924 = vmatpush1.bf16.msra.mxu0 %v3891
        %3925 = vmatprep.subr.bf16.mxu0 %v3894
        %3926 = vmatpush1.bf16.msra.mxu0 %v3893
        %3927 = vmatprep.subr.bf16.mxu0 %v3896
        %3928 = vmatpush1.bf16.msra.mxu0 %v3895
        %3929 = vmatprep.subr.bf16.mxu0 %v3898
        %3930 = vmatpush1.bf16.msra.mxu0 %v3897
        %3931 = vmatprep.subr.bf16.mxu0 %v3900
        %3932 = vmatpush1.bf16.msra.mxu0 %v3899
        %3933 = vmatprep.mubr.bf16.mxu0 %v842
        %3934 = vmatmul.mubr.bf16.gmra.mrb[0].mxu0 %v841
        %v3935 = vpop.f32.mrb[0].mxu0
        %v3936 = vadd.f32 0.0, %v3935
        %v3937 = vpop.f32.mrb[0].mxu0
        %v3938 = vadd.f32 0.0, %v3937
        %v3939 = vpop.f32.mrb[0].mxu0
        %v3940 = vadd.f32 0.0, %v3939
        %v3941 = vpop.f32.mrb[0].mxu0
        %v3942 = vadd.f32 0.0, %v3941
        %3943 = vdwg.mxu0
        %v3944 = vadd.f32 %v3865, %v3936
        %v3945 = vadd.f32 %v3866, %v3938
        %v3946 = vadd.f32 %v3867, %v3940
        %v3947 = vadd.f32 %v3868, %v3942
        %3948 = vst [vmem:[%s3849] sm:$0xff] %v3944
        %3949 = vst [vmem:[%s3849 + $0x8] sm:$0xff] %v3945
        %3950 = vst [vmem:[%s3849 + $0x10] sm:$0xff] %v3946
        %3951 = vst [vmem:[%s3849 + $0x18] sm:$0xff] %v3947
        %3952 = vst.msk [vmem:[%s3451] sm:$0x3] %vm1523, %v3545
        %p3953 = scmp.eq.s32.totalorder %s25, 1
        // Predicated region
        $region117: #{point2point_embedding.1} parent=103 // pred_check
          %p3954 = pneg %p3953
        $region118: #{point2point_embedding.1} parent=103 // pred_check_branch
          %3956 = sbr.rel (%p3954) target = $region120
        $region119: #{point2point_embedding.1} parent=103 // pred_region
          %v3957 = vld [vmem:[#allocation4] sm:$0x3]
          %v3958 = vld [vmem:[#allocation4 + $0x2] sm:$0x3]
          %v3959 = vld [vmem:[#allocation4 + $0x4] sm:$0x3]
          %v3960 = vld [vmem:[#allocation4 + $0x6] sm:$0x3]
          %v3961 = vrcp.pop %v3957
          %v3962 = vrcp.pop %v3958
          %v3963 = vrcp.pop %v3959
          %v3964 = vrcp.pop %v3960
          %v3965 = vld [vmem:[#allocation5] sm:$0xff]
          %v3966 = vld [vmem:[#allocation5 + $0x8] sm:$0xff]
          %v3967 = vld [vmem:[#allocation5 + $0x10] sm:$0xff]
          %v3968 = vld [vmem:[#allocation5 + $0x18] sm:$0xff]
          %v3969 = vld [vmem:[#allocation5 + $0x20] sm:$0xff]
          %v3970 = vld [vmem:[#allocation5 + $0x28] sm:$0xff]
          %v3971 = vld [vmem:[#allocation5 + $0x30] sm:$0xff]
          %v3972 = vld [vmem:[#allocation5 + $0x38] sm:$0xff]
          %v3973 = vld [vmem:[#allocation5 + $0x40] sm:$0xff]
          %v3974 = vld [vmem:[#allocation5 + $0x48] sm:$0xff]
          %v3975 = vld [vmem:[#allocation5 + $0x50] sm:$0xff]
          %v3976 = vld [vmem:[#allocation5 + $0x58] sm:$0xff]
          %v3977 = vld [vmem:[#allocation5 + $0x60] sm:$0xff]
          %v3978 = vld [vmem:[#allocation5 + $0x68] sm:$0xff]
          %v3979 = vld [vmem:[#allocation5 + $0x70] sm:$0xff]
          %v3980 = vld [vmem:[#allocation5 + $0x78] sm:$0xff]
          %v3985 = vlaneseq
          %v3986 = vshrl.u32 %v3985, 7
          %v3987 = vsub.s32 0, %v3986
          %v3988 = vrot.slane %v3961, %v3987
          %v3989 = vlaneseq
          %v3990 = vshrl.u32 %v3989, 7
          %v3991 = vsub.s32 1, %v3990
          %v3992 = vrot.slane %v3961, %v3991
          %v3993 = vlaneseq
          %v3994 = vshrl.u32 %v3993, 7
          %v3995 = vsub.s32 0, %v3994
          %v3996 = vrot.slane %v3962, %v3995
          %v3997 = vlaneseq
          %v3998 = vshrl.u32 %v3997, 7
          %v3999 = vsub.s32 1, %v3998
          %v4000 = vrot.slane %v3962, %v3999
          %v4001 = vlaneseq
          %v4002 = vshrl.u32 %v4001, 7
          %v4003 = vsub.s32 0, %v4002
          %v4004 = vrot.slane %v3963, %v4003
          %v4005 = vlaneseq
          %v4006 = vshrl.u32 %v4005, 7
          %v4007 = vsub.s32 1, %v4006
          %v4008 = vrot.slane %v3963, %v4007
          %v4009 = vlaneseq
          %v4010 = vshrl.u32 %v4009, 7
          %v4011 = vsub.s32 0, %v4010
          %v4012 = vrot.slane %v3964, %v4011
          %v4013 = vlaneseq
          %v4014 = vshrl.u32 %v4013, 7
          %v4015 = vsub.s32 1, %v4014
          %v4016 = vrot.slane %v3964, %v4015
          %v4025 = vmul.f32 %v3965, %v3988
          %v4026 = vmul.f32 %v3966, %v3992
          %v4027 = vmul.f32 %v3967, %v3988
          %v4028 = vmul.f32 %v3968, %v3992
          %v4029 = vmul.f32 %v3969, %v3996
          %v4030 = vmul.f32 %v3970, %v4000
          %v4031 = vmul.f32 %v3971, %v3996
          %v4032 = vmul.f32 %v3972, %v4000
          %v4033 = vmul.f32 %v3973, %v4004
          %v4034 = vmul.f32 %v3974, %v4008
          %v4035 = vmul.f32 %v3975, %v4004
          %v4036 = vmul.f32 %v3976, %v4008
          %v4037 = vmul.f32 %v3977, %v4012
          %v4038 = vmul.f32 %v3978, %v4016
          %v4039 = vmul.f32 %v3979, %v4012
          %v4040 = vmul.f32 %v3980, %v4016
          %4041 = vst [vmem:[%s370] sm:$0xff] %v4025
          %4042 = vst [vmem:[%s370 + $0x8] sm:$0xff] %v4026
          %4043 = vst [vmem:[%s370 + $0x10] sm:$0xff] %v4027
          %4044 = vst [vmem:[%s370 + $0x18] sm:$0xff] %v4028
          %4045 = vst [vmem:[%s370 + $0x20] sm:$0xff] %v4029
          %4046 = vst [vmem:[%s370 + $0x28] sm:$0xff] %v4030
          %4047 = vst [vmem:[%s370 + $0x30] sm:$0xff] %v4031
          %4048 = vst [vmem:[%s370 + $0x38] sm:$0xff] %v4032
          %4049 = vst [vmem:[%s370 + $0x40] sm:$0xff] %v4033
          %4050 = vst [vmem:[%s370 + $0x48] sm:$0xff] %v4034
          %4051 = vst [vmem:[%s370 + $0x50] sm:$0xff] %v4035
          %4052 = vst [vmem:[%s370 + $0x58] sm:$0xff] %v4036
          %4053 = vst [vmem:[%s370 + $0x60] sm:$0xff] %v4037
          %4054 = vst [vmem:[%s370 + $0x68] sm:$0xff] %v4038
          %4055 = vst [vmem:[%s370 + $0x70] sm:$0xff] %v4039
          %4056 = vst [vmem:[%s370 + $0x78] sm:$0xff] %v4040
        $region120: #{point2point_embedding.1} parent=103 // pred_fallthru
          _
        %s4057 = sand.u32 %s145, 1
        %s4058 = scalar_lea.sflag [#allocation9], %s4057
        %s4059 = sand.u32 %s145, 1
        %s4060 = smul.addr %s4059, 128
        %s4061 = scalar_lea.vmem [#allocation8], %s4060
        // Predicated region
        $region121: #{point2point_embedding.1} parent=103 // pred_check
          %p4062 = pneg %p155
        $region122: #{point2point_embedding.1} parent=103 // pred_check_branch
          %4064 = sbr.rel (%p4062) target = $region124
        $region123: #{point2point_embedding.1} parent=103 // pred_region
          %s4065 = smul.u32 2, %s24
          %s4067 = ssub.s32 2048, 2048
          %4068 = vsyncadd %s4058, %s4067
          %s4069 = smul.addr %s23, 32
          %s4070 = sadd.s32 %s4065, %s4069
          %s4071 = smul.addr %s4070, 128
          %s4072 = scalar_lea.hbm %s4, %s4071
          %s4073 = sshll.u32 %s4061, 4
          %s4074 = int_to_ptr.vmem [resolvable:$true] %s4073
          %4079 = dma.vmem_to_hbm [thread:$0]  %s4074, 2048, %s4072, %s4058, 256, 512, 16
        $region124: #{point2point_embedding.1} parent=103 // pred_fallthru
          _
      $region104: #{point2point_embedding.1} parent=5 // pred_fallthru
        _
      %p4080 = scmp.le.s32.totalorder 2, %s13
      // Predicated region
      $region125: #{point2point_embedding.1} parent=5 // pred_check
        %p4081 = pneg %p4080
      $region126: #{point2point_embedding.1} parent=5 // pred_check_branch
        %4083 = sbr.rel (%p4081) target = $region128
      $region127: #{point2point_embedding.1} parent=5 // pred_region
        %s4084 = ssub.s32 %s13, 2
        // Predicated region
        $region129: #{point2point_embedding.1} parent=127 // pred_check
          %p4085 = pneg %p161
        $region130: #{point2point_embedding.1} parent=127 // pred_check_branch
          %4087 = sbr.rel (%p4085) target = $region132
        $region131: #{point2point_embedding.1} parent=127 // pred_region
          %s4088 = sand.u32 %s146, 1
          %s4089 = scalar_lea.sflag [#allocation9], %s4088
          %s4090 = sand.u32 %s146, 1
          %s4091 = smul.addr %s4090, 128
          %s4092 = scalar_lea.vmem [#allocation8], %s4091
          %4093 = dma.done %s4089, 2048
        $region132: #{point2point_embedding.1} parent=127 // pred_fallthru
          _
      $region128: #{point2point_embedding.1} parent=5 // pred_fallthru
        _
    $region6: #{point2point_embedding.1} parent=1 // loop_footer
      %s17 = sadd.s32 1, %s13
    $region7: #{point2point_embedding.1} parent=1 // loop_footer_branch
      %12 = sbr.rel target = $region3
    $region8: #{point2point_embedding.1} parent=1 // loop_exit
      _
    %4094 = vsyncpa [#allocation9], 1
    %s4095 = scalar_lea.sflag [#allocation9], 1
    %4096 = vsyncpa %s4095, 1

</llo_original>
